<compile_context>
chip_gen: v5e
topology: v5e:2x2
jax: 0.10.0
libtpu: 0.0.40
codegen_flags: <defaults>
</compile_context>

<pallas_src>
import jax
import jax.numpy as jnp
from jax import lax
from jax.experimental import pallas as pl
from jax.experimental.pallas import tpu as pltpu

# ----------------------------- configuration -----------------------------
IMG = 32
PATCH = 16
C_IN = 3
HIDDEN = 256
NHEAD = 4
DHEAD = HIDDEN // NHEAD
MLP = 512
LAYERS = 2
NPATCH = (IMG // PATCH) ** 2          # 4 patches
SEQ = NPATCH + 1                      # 5 tokens (class token + patches)
SEQ_PAD = 8                           # padded to a full sublane tile
PATCH_DIM = C_IN * PATCH * PATCH      # 768
EPS = 1e-6                            # torchvision ViT LayerNorm eps
NEG_INF = -1e30


# ----------------------------- kernel helpers -----------------------------
def _layernorm(x, gamma, beta):
    mu = jnp.mean(x, axis=-1, keepdims=True)
    var = jnp.mean((x - mu) ** 2, axis=-1, keepdims=True)
    return (x - mu) * lax.rsqrt(var + EPS) * gamma + beta


def _gelu_exact(x):
    # PyTorch nn.GELU() default (erf-based, exact)
    return 0.5 * x * (1.0 + lax.erf(x * 0.7071067811865476))


# ----------------------------- fused Pallas kernel -----------------------------
def vit_layer_kernel(patches_ref, base_ref, mask_ref, pw_ref,
                     ln1w_ref, ln1b_ref, wqkv_ref, bqkv_ref, wo_ref, bo_ref,
                     ln2w_ref, ln2b_ref, w1_ref, b1_ref, w2_ref, b2_ref,
                     lnfw_ref, lnfb_ref,
                     o_ref, x_ref, att_ref):
    """One grid step == one encoder layer.  x_ref persists the residual stream."""
    l = pl.program_id(0)

    # ---- layer 0: patch embedding fused with conv bias / class token / pos emb ----
    @pl.when(l == 0)
    def _():
        x_ref[...] = (jnp.dot(patches_ref[...], pw_ref[...],
                              preferred_element_type=jnp.float32) + base_ref[...])

    x = x_ref[...]                           # (T, HIDDEN) f32 residual stream
    mask = mask_ref[...]                     # (T, T) block-diag batch + key-pad mask

    # ---------------- attention block: x += W_o @ MHA(LN1(x)) ----------------
    y = _layernorm(x, ln1w_ref[...], ln1b_ref[...]).astype(jnp.bfloat16)
    # single fused QKV projection (1/sqrt(DHEAD) folded into the Q columns/bias)
    qkv = jnp.dot(y, wqkv_ref[...],
                  preferred_element_type=jnp.float32) + bqkv_ref[...]   # (T, 3*HIDDEN)

    for h in range(NHEAD):                   # static unroll; scores are (T, T)
        q_h = qkv[:, h * DHEAD:(h + 1) * DHEAD].astype(jnp.bfloat16)
        k_h = qkv[:, HIDDEN + h * DHEAD:HIDDEN + (h + 1) * DHEAD].astype(jnp.bfloat16)
        v_h = qkv[:, 2 * HIDDEN + h * DHEAD:2 * HIDDEN + (h + 1) * DHEAD].astype(jnp.bfloat16)
        # s = q_h @ k_h^T  (MXU, bf16 operands, f32 accumulate)
        s = lax.dot_general(q_h, k_h, (((1,), (1,)), ((), ())),
                            preferred_element_type=jnp.float32) + mask
        s = s - jnp.max(s, axis=-1, keepdims=True)
        e = jnp.exp(s)
        p = (e / jnp.sum(e, axis=-1, keepdims=True)).astype(jnp.bfloat16)
        # write this head's output into its lane slice -> concatenated layout
        att_ref[:, h * DHEAD:(h + 1) * DHEAD] = jnp.dot(
            p, v_h, preferred_element_type=jnp.float32)

    # single K=256 output projection over the concatenated heads
    x = x + jnp.dot(att_ref[...].astype(jnp.bfloat16), wo_ref[...],
                    preferred_element_type=jnp.float32) + bo_ref[...]

    # ---------------- MLP block: x += W2 @ GELU(W1 @ LN2(x)) ----------------
    z = _layernorm(x, ln2w_ref[...], ln2b_ref[...]).astype(jnp.bfloat16)
    h1 = _gelu_exact(jnp.dot(z, w1_ref[...],
                             preferred_element_type=jnp.float32) + b1_ref[...])
    x = x + jnp.dot(h1.astype(jnp.bfloat16), w2_ref[...],
                    preferred_element_type=jnp.float32) + b2_ref[...]

    x_ref[...] = x

    # ---- last layer: final encoder LayerNorm, single output writeback ----
    @pl.when(l == LAYERS - 1)
    def _():
        o_ref[...] = _layernorm(x, lnfw_ref[...], lnfb_ref[...])


# ----------------------------- kernel wrapper -----------------------------
def _const_spec(shape):
    """Full-array block whose index never changes -> fetched once, kept resident."""
    n = len(shape)
    return pl.BlockSpec(tuple(shape), lambda l, n=n: (0,) * n)


def _layer_spec(shape):
    """Leading LAYERS axis blocked at 1 (squeezed); layer l's slice per grid step."""
    rest = tuple(shape[1:])
    n = len(rest)
    return pl.BlockSpec((None,) + rest, lambda l, n=n: (l,) + (0,) * n)


def vit_fused(patches, base, mask, kw):
    (pw, ln1w, ln1b, wqkv, bqkv, wo, bo, ln2w, ln2b,
     w1, b1, w2, b2, lnfw, lnfb) = kw
    T = base.shape[0]
    in_specs = [
        _const_spec(patches.shape), _const_spec(base.shape), _const_spec(mask.shape),
        _const_spec(pw.shape),
        _layer_spec(ln1w.shape), _layer_spec(ln1b.shape),
        _layer_spec(wqkv.shape), _layer_spec(bqkv.shape),
        _layer_spec(wo.shape), _layer_spec(bo.shape),
        _layer_spec(ln2w.shape), _layer_spec(ln2b.shape),
        _layer_spec(w1.shape), _layer_spec(b1.shape),
        _layer_spec(w2.shape), _layer_spec(b2.shape),
        _const_spec(lnfw.shape), _const_spec(lnfb.shape),
    ]
    return pl.pallas_call(
        vit_layer_kernel,
        out_shape=jax.ShapeDtypeStruct((T, HIDDEN), jnp.float32),
        grid=(LAYERS,),
        in_specs=in_specs,
        out_specs=pl.BlockSpec((T, HIDDEN), lambda l: (0, 0)),
        scratch_shapes=[pltpu.VMEM((T, HIDDEN), jnp.float32),   # residual stream x
                        pltpu.VMEM((T, HIDDEN), jnp.float32)],  # concat'd head outputs
        compiler_params=pltpu.CompilerParams(
            dimension_semantics=("arbitrary",)),
    )(patches, base, mask, *kw)


# ----------------------------- glue (plain JAX) -----------------------------
def extract_patches(x):
    """x: (B, C_IN, IMG, IMG) NCHW -> (B, NPATCH, C_IN*PATCH*PATCH).

    Flatten order per patch is (c, kh, kw), matching the PyTorch 16x16/16 conv
    expressed as a matmul against conv_proj.weight.reshape(HIDDEN, -1).T.
    """
    B = x.shape[0]
    nh = IMG // PATCH
    p = x.reshape(B, C_IN, nh, PATCH, nh, PATCH)
    p = p.transpose(0, 2, 4, 1, 3, 5)        # (B, nh, nw, C, PATCH, PATCH)
    return p.reshape(B, NPATCH, PATCH_DIM)


def build_inputs(x, base_row):
    """Padded (bf16) patch rows + per-row additive base (conv bias / cls / pos)."""
    B = x.shape[0]
    patches = extract_patches(x)                                   # (B, NPATCH, 768)
    padded = jnp.zeros((B, SEQ_PAD, PATCH_DIM), jnp.float32)
    padded = padded.at[:, 1:SEQ, :].set(patches)                   # row0=cls, tail=pad
    patches_padded = padded.reshape(B * SEQ_PAD, PATCH_DIM).astype(jnp.bfloat16)
    token_base = jnp.broadcast_to(base_row[None], (B, SEQ_PAD, HIDDEN))
    token_base = token_base.reshape(B * SEQ_PAD, HIDDEN)
    return patches_padded, token_base


def build_mask(T):
    """(T, T) additive mask: block-diagonal over images + padded-key masking."""
    tid = jnp.arange(T)[:, None]
    sid = jnp.arange(T)[None, :]
    valid = (tid // SEQ_PAD == sid // SEQ_PAD) & (sid % SEQ_PAD < SEQ)
    return jnp.where(valid, 0.0, NEG_INF).astype(jnp.float32)


def pack_params(params):
    """One-time re-layout of torch-style params into kernel layout (call once and
    cache; kept OUT of the jitted per-forward path):
      - per-layer params stacked on a leading LAYERS axis,
      - fused QKV weight (HIDDEN, 3*HIDDEN) with 1/sqrt(DHEAD) folded into Q,
      - matmul weights cast to bf16; biases / LayerNorm params kept f32,
      - per-token additive base row (cls / conv-bias + pos emb) precomputed.
    """
    scale = 1.0 / (DHEAD ** 0.5)
    acc = {k: [] for k in ("ln1w", "ln1b", "wqkv", "bqkv", "wo", "bo",
                           "ln2w", "ln2b", "w1", "b1", "w2", "b2")}
    for lp in params["layers"]:
        wqkv = lp["w_in"].at[:, :HIDDEN].multiply(scale)     # fold attention scale
        bqkv = lp["b_in"].at[:, :HIDDEN].multiply(scale)
        acc["ln1w"].append(lp["ln1_w"]); acc["ln1b"].append(lp["ln1_b"])
        acc["wqkv"].append(wqkv.astype(jnp.bfloat16))
        acc["bqkv"].append(bqkv)
        acc["wo"].append(lp["w_out"].astype(jnp.bfloat16))
        acc["bo"].append(lp["b_out"])
        acc["ln2w"].append(lp["ln2_w"]); acc["ln2b"].append(lp["ln2_b"])
        acc["w1"].append(lp["w1"].astype(jnp.bfloat16)); acc["b1"].append(lp["b1"])
        acc["w2"].append(lp["w2"].astype(jnp.bfloat16)); acc["b2"].append(lp["b2"])

    stk = lambda xs: jnp.stack(xs, axis=0)
    kw = (params["patch_w"].astype(jnp.bfloat16),
          stk(acc["ln1w"]), stk(acc["ln1b"]),
          stk(acc["wqkv"]), stk(acc["bqkv"]),
          stk(acc["wo"]), stk(acc["bo"]),
          stk(acc["ln2w"]), stk(acc["ln2b"]),
          stk(acc["w1"]), stk(acc["b1"]), stk(acc["w2"]), stk(acc["b2"]),
          params["ln_w"], params["ln_b"])

    base_row = jnp.zeros((SEQ_PAD, HIDDEN), jnp.float32)
    base_row = base_row.at[0].set(params["cls"][0, 0] + params["pos"][0, 0])
    base_row = base_row.at[1:SEQ].set(params["patch_b"][0] + params["pos"][0, 1:SEQ])
    return base_row, kw


def init_params(key):
    def nrm(k, shape, scale=0.02):
        return scale * jax.random.normal(k, shape, dtype=jnp.float32)

    keys = iter(jax.random.split(key, 4 + 6 * LAYERS))
    params = {
        "patch_w": nrm(next(keys), (PATCH_DIM, HIDDEN)),
        "patch_b": jnp.zeros((1, HIDDEN), jnp.float32),
        "cls": nrm(next(keys), (1, 1, HIDDEN)),
        "pos": nrm(next(keys), (1, SEQ, HIDDEN)),
        "ln_w": jnp.ones((1, HIDDEN), jnp.float32),
        "ln_b": jnp.zeros((1, HIDDEN), jnp.float32),
    }
    layers = []
    for _ in range(LAYERS):
        layers.append(dict(
            ln1_w=jnp.ones((1, HIDDEN), jnp.float32),
            ln1_b=jnp.zeros((1, HIDDEN), jnp.float32),
            w_in=nrm(next(keys), (HIDDEN, 3 * HIDDEN)),       # in_proj W^T (Q|K|V)
            b_in=jnp.zeros((1, 3 * HIDDEN), jnp.float32),
            w_out=nrm(next(keys), (HIDDEN, HIDDEN)),          # out_proj W^T
            b_out=jnp.zeros((1, HIDDEN), jnp.float32),
            ln2_w=jnp.ones((1, HIDDEN), jnp.float32),
            ln2_b=jnp.zeros((1, HIDDEN), jnp.float32),
            w1=nrm(next(keys), (HIDDEN, MLP)),
            b1=jnp.zeros((1, MLP), jnp.float32),
            w2=nrm(next(keys), (MLP, HIDDEN)),
            b2=jnp.zeros((1, HIDDEN), jnp.float32),
        ))
    params["layers"] = layers
    return params


def vit_forward(x, packed):
    base_row, kw = packed
    B = x.shape[0]
    T = B * SEQ_PAD
    patches_padded, token_base = build_inputs(x, base_row)
    mask = build_mask(T)
    tokens = vit_fused(patches_padded, token_base, mask, kw)   # (B*SEQ_PAD, HIDDEN)
    tokens = tokens.reshape(B, SEQ_PAD, HIDDEN)[:, :SEQ, :]    # drop pad rows
    # Matches PyTorch: out['encoder'].view(B, -1, 16, 16)
    return tokens.reshape(B, -1, 16, 16)


# ----------------------------------- main -----------------------------------
if __name__ == "__main__":
    key = jax.random.PRNGKey(0)
    pkey, xkey = jax.random.split(key)
    params = init_params(pkey)
    packed = pack_params(params)        # hoisted out of the per-call jitted path
    x = jax.random.normal(xkey, (2, C_IN, IMG, IMG), dtype=jnp.float32)

    out = jax.jit(vit_forward)(x, packed)
    out = jax.block_until_ready(out)

    expected_channels = SEQ * HIDDEN // 256   # analogue of self.out_channels (=5)
    assert out.shape == (2, expected_channels, 16, 16), out.shape
    assert bool(jnp.all(jnp.isfinite(out)))
    print("KERNEL_OK")
</pallas_src>

<mosaic_0001>
module attributes {stable_mosaic.version = 11 : i64} {
  func.func @vit_layer_kernel(%arg0: i32, %arg1: memref<16x768xbf16, #tpu.memory_space<vmem>>, %arg2: memref<16x256xf32, #tpu.memory_space<vmem>>, %arg3: memref<16x16xf32, #tpu.memory_space<vmem>>, %arg4: memref<768x256xbf16, #tpu.memory_space<vmem>>, %arg5: memref<1x1x256xf32, #tpu.memory_space<vmem>>, %arg6: memref<1x1x256xf32, #tpu.memory_space<vmem>>, %arg7: memref<1x256x768xbf16, #tpu.memory_space<vmem>>, %arg8: memref<1x1x768xf32, #tpu.memory_space<vmem>>, %arg9: memref<1x256x256xbf16, #tpu.memory_space<vmem>>, %arg10: memref<1x1x256xf32, #tpu.memory_space<vmem>>, %arg11: memref<1x1x256xf32, #tpu.memory_space<vmem>>, %arg12: memref<1x1x256xf32, #tpu.memory_space<vmem>>, %arg13: memref<1x256x512xbf16, #tpu.memory_space<vmem>>, %arg14: memref<1x1x512xf32, #tpu.memory_space<vmem>>, %arg15: memref<1x512x256xbf16, #tpu.memory_space<vmem>>, %arg16: memref<1x1x256xf32, #tpu.memory_space<vmem>>, %arg17: memref<1x256xf32, #tpu.memory_space<vmem>>, %arg18: memref<1x256xf32, #tpu.memory_space<vmem>>, %arg19: memref<16x256xf32, #tpu.memory_space<vmem>>, %arg20: memref<16x256xf32, #tpu.memory_space<vmem>>, %arg21: memref<16x256xf32, #tpu.memory_space<vmem>>) attributes {dimension_semantics = [#tpu.dimension_semantics<arbitrary>], iteration_bounds = array<i64: 2>, scalar_prefetch = 0 : i64, scratch_operands = 2 : i64, tpu.core_type = #tpu.core_type<tc>, window_params = [{pipeline_mode = #tpu.pipeline_mode<synchronous>, transform_indices = @transform_0, window_bounds = array<i64: 16, 768>}, {pipeline_mode = #tpu.pipeline_mode<synchronous>, transform_indices = @transform_1, window_bounds = array<i64: 16, 256>}, {pipeline_mode = #tpu.pipeline_mode<synchronous>, transform_indices = @transform_2, window_bounds = array<i64: 16, 16>}, {pipeline_mode = #tpu.pipeline_mode<synchronous>, transform_indices = @transform_3, window_bounds = array<i64: 768, 256>}, {transform_indices = @transform_4, window_bounds = array<i64: 1, 1, 256>}, {transform_indices = @transform_5, window_bounds = array<i64: 1, 1, 256>}, {transform_indices = @transform_6, window_bounds = array<i64: 1, 256, 768>}, {transform_indices = @transform_7, window_bounds = array<i64: 1, 1, 768>}, {transform_indices = @transform_8, window_bounds = array<i64: 1, 256, 256>}, {transform_indices = @transform_9, window_bounds = array<i64: 1, 1, 256>}, {transform_indices = @transform_10, window_bounds = array<i64: 1, 1, 256>}, {transform_indices = @transform_11, window_bounds = array<i64: 1, 1, 256>}, {transform_indices = @transform_12, window_bounds = array<i64: 1, 256, 512>}, {transform_indices = @transform_13, window_bounds = array<i64: 1, 1, 512>}, {transform_indices = @transform_14, window_bounds = array<i64: 1, 512, 256>}, {transform_indices = @transform_15, window_bounds = array<i64: 1, 1, 256>}, {pipeline_mode = #tpu.pipeline_mode<synchronous>, transform_indices = @transform_16, window_bounds = array<i64: 1, 256>}, {pipeline_mode = #tpu.pipeline_mode<synchronous>, transform_indices = @transform_17, window_bounds = array<i64: 1, 256>}, {pipeline_mode = #tpu.pipeline_mode<synchronous>, transform_indices = @transform_18, window_bounds = array<i64: 16, 256>}]} {
    %c0_i32 = arith.constant 0 : i32
    %0 = arith.cmpi eq, %arg0, %c0_i32 : i32
    %1 = arith.extui %0 : i1 to i32
    %c0_i32_0 = arith.constant 0 : i32
    %2 = arith.cmpi ne, %1, %c0_i32_0 : i32
    scf.if %2 {
      %c0_82 = arith.constant 0 : index
      %c0_83 = arith.constant 0 : index
      %184 = vector.load %arg1[%c0_82, %c0_83] : memref<16x768xbf16, #tpu.memory_space<vmem>>, vector<16x768xbf16>
      %c0_84 = arith.constant 0 : index
      %c0_85 = arith.constant 0 : index
      %185 = vector.load %arg4[%c0_84, %c0_85] : memref<768x256xbf16, #tpu.memory_space<vmem>>, vector<768x256xbf16>
      %cst_86 = arith.constant dense<0.000000e+00> : vector<16x256xf32>
      %186 = tpu.matmul %184, %185, %cst_86 {dimension_numbers = #tpu.dot_dimension_numbers<[1], [0], [0], [1], [0, 0, 1, 1], [], []>} : vector<16x768xbf16>, vector<768x256xbf16>, vector<16x256xf32> -> vector<16x256xf32>
      %c0_87 = arith.constant 0 : index
      %c0_88 = arith.constant 0 : index
      %187 = vector.load %arg2[%c0_87, %c0_88] : memref<16x256xf32, #tpu.memory_space<vmem>>, vector<16x256xf32>
      %188 = arith.addf %186, %187 : vector<16x256xf32>
      %c0_89 = arith.constant 0 : index
      %c0_90 = arith.constant 0 : index
      %189 = vector.load %arg20[%c0_89, %c0_90] : memref<16x256xf32, #tpu.memory_space<vmem>>, vector<16x256xf32>
      tpu.vector_store %arg20[%c0_89, %c0_90], %188 {strides = array<i32>} : memref<16x256xf32, #tpu.memory_space<vmem>>, vector<16x256xf32>,
    } else {
    }
    %c0 = arith.constant 0 : index
    %c0_1 = arith.constant 0 : index
    %3 = vector.load %arg20[%c0, %c0_1] : memref<16x256xf32, #tpu.memory_space<vmem>>, vector<16x256xf32>
    %c0_2 = arith.constant 0 : index
    %c0_3 = arith.constant 0 : index
    %4 = vector.load %arg3[%c0_2, %c0_3] : memref<16x16xf32, #tpu.memory_space<vmem>>, vector<16x16xf32>
    %c0_4 = arith.constant 0 : index
    %c0_5 = arith.constant 0 : index
    %c0_6 = arith.constant 0 : index
    %5 = vector.load %arg5[%c0_4, %c0_5, %c0_6] : memref<1x1x256xf32, #tpu.memory_space<vmem>>, vector<1x1x256xf32>
    %6 = vector.shape_cast %5 : vector<1x1x256xf32> to vector<1x256xf32>
    %c0_7 = arith.constant 0 : index
    %c0_8 = arith.constant 0 : index
    %c0_9 = arith.constant 0 : index
    %7 = vector.load %arg6[%c0_7, %c0_8, %c0_9] : memref<1x1x256xf32, #tpu.memory_space<vmem>>, vector<1x1x256xf32>
    %8 = vector.shape_cast %7 : vector<1x1x256xf32> to vector<1x256xf32>
    %cst = arith.constant dense<0.000000e+00> : vector<16xf32>
    %9 = vector.multi_reduction <add>, %3, %cst [1] : vector<16x256xf32> to vector<16xf32>
    %10 = vector.shape_cast %9 : vector<16xf32> to vector<16x1xf32>
    %cst_10 = arith.constant 2.560000e+02 : f32
    %11 = vector.broadcast %cst_10 : f32 to vector<16x1xf32>
    %12 = arith.divf %10, %11 : vector<16x1xf32>
    %13 = vector.broadcast %12 : vector<16x1xf32> to vector<16x256xf32>
    %14 = arith.subf %3, %13 : vector<16x256xf32>
    %15 = arith.mulf %14, %14 : vector<16x256xf32>
    %cst_11 = arith.constant dense<0.000000e+00> : vector<16xf32>
    %16 = vector.multi_reduction <add>, %15, %cst_11 [1] : vector<16x256xf32> to vector<16xf32>
    %17 = vector.shape_cast %16 : vector<16xf32> to vector<16x1xf32>
    %cst_12 = arith.constant 2.560000e+02 : f32
    %18 = vector.broadcast %cst_12 : f32 to vector<16x1xf32>
    %19 = arith.divf %17, %18 : vector<16x1xf32>
    %20 = vector.broadcast %12 : vector<16x1xf32> to vector<16x256xf32>
    %21 = arith.subf %3, %20 : vector<16x256xf32>
    %cst_13 = arith.constant 9.99999997E-7 : f32
    %22 = vector.broadcast %cst_13 : f32 to vector<16x1xf32>
    %23 = arith.addf %19, %22 : vector<16x1xf32>
    %24 = math.rsqrt %23 : vector<16x1xf32>
    %25 = vector.broadcast %24 : vector<16x1xf32> to vector<16x256xf32>
    %26 = arith.mulf %21, %25 : vector<16x256xf32>
    %27 = vector.broadcast %6 : vector<1x256xf32> to vector<16x256xf32>
    %28 = arith.mulf %26, %27 : vector<16x256xf32>
    %29 = vector.broadcast %8 : vector<1x256xf32> to vector<16x256xf32>
    %30 = arith.addf %28, %29 : vector<16x256xf32>
    %31 = arith.truncf %30 : vector<16x256xf32> to vector<16x256xbf16>
    %c0_14 = arith.constant 0 : index
    %c0_15 = arith.constant 0 : index
    %c0_16 = arith.constant 0 : index
    %32 = vector.load %arg7[%c0_14, %c0_15, %c0_16] : memref<1x256x768xbf16, #tpu.memory_space<vmem>>, vector<1x256x768xbf16>
    %33 = vector.shape_cast %32 : vector<1x256x768xbf16> to vector<256x768xbf16>
    %cst_17 = arith.constant dense<0.000000e+00> : vector<16x768xf32>
    %34 = tpu.matmul %31, %33, %cst_17 {dimension_numbers = #tpu.dot_dimension_numbers<[1], [0], [0], [1], [0, 0, 1, 1], [], []>} : vector<16x256xbf16>, vector<256x768xbf16>, vector<16x768xf32> -> vector<16x768xf32>
    %c0_18 = arith.constant 0 : index
    %c0_19 = arith.constant 0 : index
    %c0_20 = arith.constant 0 : index
    %35 = vector.load %arg8[%c0_18, %c0_19, %c0_20] : memref<1x1x768xf32, #tpu.memory_space<vmem>>, vector<1x1x768xf32>
    %36 = vector.shape_cast %35 : vector<1x1x768xf32> to vector<1x768xf32>
    %37 = vector.broadcast %36 : vector<1x768xf32> to vector<16x768xf32>
    %38 = arith.addf %34, %37 : vector<16x768xf32>
    %39 = vector.extract_strided_slice %38 {offsets = [0, 0], sizes = [16, 64], strides = [1, 1]} : vector<16x768xf32> to vector<16x64xf32>
    %40 = arith.truncf %39 : vector<16x64xf32> to vector<16x64xbf16>
    %41 = vector.extract_strided_slice %38 {offsets = [0, 256], sizes = [16, 64], strides = [1, 1]} : vector<16x768xf32> to vector<16x64xf32>
    %42 = arith.truncf %41 : vector<16x64xf32> to vector<16x64xbf16>
    %43 = vector.extract_strided_slice %38 {offsets = [0, 512], sizes = [16, 64], strides = [1, 1]} : vector<16x768xf32> to vector<16x64xf32>
    %44 = arith.truncf %43 : vector<16x64xf32> to vector<16x64xbf16>
    %cst_21 = arith.constant dense<0.000000e+00> : vector<16x16xf32>
    %45 = tpu.matmul %40, %42, %cst_21 {dimension_numbers = #tpu.dot_dimension_numbers<[1], [1], [0], [0], [0, 0, 1, 0], [], []>} : vector<16x64xbf16>, vector<16x64xbf16>, vector<16x16xf32> -> vector<16x16xf32>
    %46 = arith.addf %45, %4 : vector<16x16xf32>
    %cst_22 = arith.constant dense<0xFF800000> : vector<16xf32>
    %47 = vector.multi_reduction <maximumf>, %46, %cst_22 [1] : vector<16x16xf32> to vector<16xf32>
    %48 = vector.shape_cast %47 : vector<16xf32> to vector<16x1xf32>
    %49 = vector.broadcast %48 : vector<16x1xf32> to vector<16x16xf32>
    %50 = arith.subf %46, %49 : vector<16x16xf32>
    %51 = math.exp %50 : vector<16x16xf32>
    %cst_23 = arith.constant dense<0.000000e+00> : vector<16xf32>
    %52 = vector.multi_reduction <add>, %51, %cst_23 [1] : vector<16x16xf32> to vector<16xf32>
    %53 = vector.shape_cast %52 : vector<16xf32> to vector<16x1xf32>
    %54 = vector.broadcast %53 : vector<16x1xf32> to vector<16x16xf32>
    %55 = arith.divf %51, %54 : vector<16x16xf32>
    %56 = arith.truncf %55 : vector<16x16xf32> to vector<16x16xbf16>
    %cst_24 = arith.constant dense<0.000000e+00> : vector<16x64xf32>
    %57 = tpu.matmul %56, %44, %cst_24 {dimension_numbers = #tpu.dot_dimension_numbers<[1], [0], [0], [1], [0, 0, 1, 1], [], []>} : vector<16x16xbf16>, vector<16x64xbf16>, vector<16x64xf32> -> vector<16x64xf32>
    %c0_25 = arith.constant 0 : index
    %c0_26 = arith.constant 0 : index
    %58 = vector.load %arg21[%c0_25, %c0_26] : memref<16x256xf32, #tpu.memory_space<vmem>>, vector<16x64xf32>
    tpu.vector_store %arg21[%c0_25, %c0_26], %57 {strides = array<i32>} : memref<16x256xf32, #tpu.memory_space<vmem>>, vector<16x64xf32>,
    %59 = vector.extract_strided_slice %38 {offsets = [0, 64], sizes = [16, 64], strides = [1, 1]} : vector<16x768xf32> to vector<16x64xf32>
    %60 = arith.truncf %59 : vector<16x64xf32> to vector<16x64xbf16>
    %61 = vector.extract_strided_slice %38 {offsets = [0, 320], sizes = [16, 64], strides = [1, 1]} : vector<16x768xf32> to vector<16x64xf32>
    %62 = arith.truncf %61 : vector<16x64xf32> to vector<16x64xbf16>
    %63 = vector.extract_strided_slice %38 {offsets = [0, 576], sizes = [16, 64], strides = [1, 1]} : vector<16x768xf32> to vector<16x64xf32>
    %64 = arith.truncf %63 : vector<16x64xf32> to vector<16x64xbf16>
    %cst_27 = arith.constant dense<0.000000e+00> : vector<16x16xf32>
    %65 = tpu.matmul %60, %62, %cst_27 {dimension_numbers = #tpu.dot_dimension_numbers<[1], [1], [0], [0], [0, 0, 1, 0], [], []>} : vector<16x64xbf16>, vector<16x64xbf16>, vector<16x16xf32> -> vector<16x16xf32>
    %66 = arith.addf %65, %4 : vector<16x16xf32>
    %cst_28 = arith.constant dense<0xFF800000> : vector<16xf32>
    %67 = vector.multi_reduction <maximumf>, %66, %cst_28 [1] : vector<16x16xf32> to vector<16xf32>
    %68 = vector.shape_cast %67 : vector<16xf32> to vector<16x1xf32>
    %69 = vector.broadcast %68 : vector<16x1xf32> to vector<16x16xf32>
    %70 = arith.subf %66, %69 : vector<16x16xf32>
    %71 = math.exp %70 : vector<16x16xf32>
    %cst_29 = arith.constant dense<0.000000e+00> : vector<16xf32>
    %72 = vector.multi_reduction <add>, %71, %cst_29 [1] : vector<16x16xf32> to vector<16xf32>
    %73 = vector.shape_cast %72 : vector<16xf32> to vector<16x1xf32>
    %74 = vector.broadcast %73 : vector<16x1xf32> to vector<16x16xf32>
    %75 = arith.divf %71, %74 : vector<16x16xf32>
    %76 = arith.truncf %75 : vector<16x16xf32> to vector<16x16xbf16>
    %cst_30 = arith.constant dense<0.000000e+00> : vector<16x64xf32>
    %77 = tpu.matmul %76, %64, %cst_30 {dimension_numbers = #tpu.dot_dimension_numbers<[1], [0], [0], [1], [0, 0, 1, 1], [], []>} : vector<16x16xbf16>, vector<16x64xbf16>, vector<16x64xf32> -> vector<16x64xf32>
    %c0_31 = arith.constant 0 : index
    %c64 = arith.constant 64 : index
    %78 = vector.load %arg21[%c0_31, %c64] : memref<16x256xf32, #tpu.memory_space<vmem>>, vector<16x64xf32>
    tpu.vector_store %arg21[%c0_31, %c64], %77 {strides = array<i32>} : memref<16x256xf32, #tpu.memory_space<vmem>>, vector<16x64xf32>,
    %79 = vector.extract_strided_slice %38 {offsets = [0, 128], sizes = [16, 64], strides = [1, 1]} : vector<16x768xf32> to vector<16x64xf32>
    %80 = arith.truncf %79 : vector<16x64xf32> to vector<16x64xbf16>
    %81 = vector.extract_strided_slice %38 {offsets = [0, 384], sizes = [16, 64], strides = [1, 1]} : vector<16x768xf32> to vector<16x64xf32>
    %82 = arith.truncf %81 : vector<16x64xf32> to vector<16x64xbf16>
    %83 = vector.extract_strided_slice %38 {offsets = [0, 640], sizes = [16, 64], strides = [1, 1]} : vector<16x768xf32> to vector<16x64xf32>
    %84 = arith.truncf %83 : vector<16x64xf32> to vector<16x64xbf16>
    %cst_32 = arith.constant dense<0.000000e+00> : vector<16x16xf32>
    %85 = tpu.matmul %80, %82, %cst_32 {dimension_numbers = #tpu.dot_dimension_numbers<[1], [1], [0], [0], [0, 0, 1, 0], [], []>} : vector<16x64xbf16>, vector<16x64xbf16>, vector<16x16xf32> -> vector<16x16xf32>
    %86 = arith.addf %85, %4 : vector<16x16xf32>
    %cst_33 = arith.constant dense<0xFF800000> : vector<16xf32>
    %87 = vector.multi_reduction <maximumf>, %86, %cst_33 [1] : vector<16x16xf32> to vector<16xf32>
    %88 = vector.shape_cast %87 : vector<16xf32> to vector<16x1xf32>
    %89 = vector.broadcast %88 : vector<16x1xf32> to vector<16x16xf32>
    %90 = arith.subf %86, %89 : vector<16x16xf32>
    %91 = math.exp %90 : vector<16x16xf32>
    %cst_34 = arith.constant dense<0.000000e+00> : vector<16xf32>
    %92 = vector.multi_reduction <add>, %91, %cst_34 [1] : vector<16x16xf32> to vector<16xf32>
    %93 = vector.shape_cast %92 : vector<16xf32> to vector<16x1xf32>
    %94 = vector.broadcast %93 : vector<16x1xf32> to vector<16x16xf32>
    %95 = arith.divf %91, %94 : vector<16x16xf32>
    %96 = arith.truncf %95 : vector<16x16xf32> to vector<16x16xbf16>
    %cst_35 = arith.constant dense<0.000000e+00> : vector<16x64xf32>
    %97 = tpu.matmul %96, %84, %cst_35 {dimension_numbers = #tpu.dot_dimension_numbers<[1], [0], [0], [1], [0, 0, 1, 1], [], []>} : vector<16x16xbf16>, vector<16x64xbf16>, vector<16x64xf32> -> vector<16x64xf32>
    %c0_36 = arith.constant 0 : index
    %c128 = arith.constant 128 : index
    %98 = vector.load %arg21[%c0_36, %c128] : memref<16x256xf32, #tpu.memory_space<vmem>>, vector<16x64xf32>
    tpu.vector_store %arg21[%c0_36, %c128], %97 {strides = array<i32>} : memref<16x256xf32, #tpu.memory_space<vmem>>, vector<16x64xf32>,
    %99 = vector.extract_strided_slice %38 {offsets = [0, 192], sizes = [16, 64], strides = [1, 1]} : vector<16x768xf32> to vector<16x64xf32>
    %100 = arith.truncf %99 : vector<16x64xf32> to vector<16x64xbf16>
    %101 = vector.extract_strided_slice %38 {offsets = [0, 448], sizes = [16, 64], strides = [1, 1]} : vector<16x768xf32> to vector<16x64xf32>
    %102 = arith.truncf %101 : vector<16x64xf32> to vector<16x64xbf16>
    %103 = vector.extract_strided_slice %38 {offsets = [0, 704], sizes = [16, 64], strides = [1, 1]} : vector<16x768xf32> to vector<16x64xf32>
    %104 = arith.truncf %103 : vector<16x64xf32> to vector<16x64xbf16>
    %cst_37 = arith.constant dense<0.000000e+00> : vector<16x16xf32>
    %105 = tpu.matmul %100, %102, %cst_37 {dimension_numbers = #tpu.dot_dimension_numbers<[1], [1], [0], [0], [0, 0, 1, 0], [], []>} : vector<16x64xbf16>, vector<16x64xbf16>, vector<16x16xf32> -> vector<16x16xf32>
    %106 = arith.addf %105, %4 : vector<16x16xf32>
    %cst_38 = arith.constant dense<0xFF800000> : vector<16xf32>
    %107 = vector.multi_reduction <maximumf>, %106, %cst_38 [1] : vector<16x16xf32> to vector<16xf32>
    %108 = vector.shape_cast %107 : vector<16xf32> to vector<16x1xf32>
    %109 = vector.broadcast %108 : vector<16x1xf32> to vector<16x16xf32>
    %110 = arith.subf %106, %109 : vector<16x16xf32>
    %111 = math.exp %110 : vector<16x16xf32>
    %cst_39 = arith.constant dense<0.000000e+00> : vector<16xf32>
    %112 = vector.multi_reduction <add>, %111, %cst_39 [1] : vector<16x16xf32> to vector<16xf32>
    %113 = vector.shape_cast %112 : vector<16xf32> to vector<16x1xf32>
    %114 = vector.broadcast %113 : vector<16x1xf32> to vector<16x16xf32>
    %115 = arith.divf %111, %114 : vector<16x16xf32>
    %116 = arith.truncf %115 : vector<16x16xf32> to vector<16x16xbf16>
    %cst_40 = arith.constant dense<0.000000e+00> : vector<16x64xf32>
    %117 = tpu.matmul %116, %104, %cst_40 {dimension_numbers = #tpu.dot_dimension_numbers<[1], [0], [0], [1], [0, 0, 1, 1], [], []>} : vector<16x16xbf16>, vector<16x64xbf16>, vector<16x64xf32> -> vector<16x64xf32>
    %c0_41 = arith.constant 0 : index
    %c192 = arith.constant 192 : index
    %118 = vector.load %arg21[%c0_41, %c192] : memref<16x256xf32, #tpu.memory_space<vmem>>, vector<16x64xf32>
    tpu.vector_store %arg21[%c0_41, %c192], %117 {strides = array<i32>} : memref<16x256xf32, #tpu.memory_space<vmem>>, vector<16x64xf32>,
    %c0_42 = arith.constant 0 : index
    %c0_43 = arith.constant 0 : index
    %119 = vector.load %arg21[%c0_42, %c0_43] : memref<16x256xf32, #tpu.memory_space<vmem>>, vector<16x256xf32>
    %120 = arith.truncf %119 : vector<16x256xf32> to vector<16x256xbf16>
    %c0_44 = arith.constant 0 : index
    %c0_45 = arith.constant 0 : index
    %c0_46 = arith.constant 0 : index
    %121 = vector.load %arg9[%c0_44, %c0_45, %c0_46] : memref<1x256x256xbf16, #tpu.memory_space<vmem>>, vector<1x256x256xbf16>
    %122 = vector.shape_cast %121 : vector<1x256x256xbf16> to vector<256x256xbf16>
    %cst_47 = arith.constant dense<0.000000e+00> : vector<16x256xf32>
    %123 = tpu.matmul %120, %122, %cst_47 {dimension_numbers = #tpu.dot_dimension_numbers<[1], [0], [0], [1], [0, 0, 1, 1], [], []>} : vector<16x256xbf16>, vector<256x256xbf16>, vector<16x256xf32> -> vector<16x256xf32>
    %124 = arith.addf %3, %123 : vector<16x256xf32>
    %c0_48 = arith.constant 0 : index
    %c0_49 = arith.constant 0 : index
    %c0_50 = arith.constant 0 : index
    %125 = vector.load %arg10[%c0_48, %c0_49, %c0_50] : memref<1x1x256xf32, #tpu.memory_space<vmem>>, vector<1x1x256xf32>
    %126 = vector.shape_cast %125 : vector<1x1x256xf32> to vector<1x256xf32>
    %127 = vector.broadcast %126 : vector<1x256xf32> to vector<16x256xf32>
    %128 = arith.addf %124, %127 : vector<16x256xf32>
    %c0_51 = arith.constant 0 : index
    %c0_52 = arith.constant 0 : index
    %c0_53 = arith.constant 0 : index
    %129 = vector.load %arg11[%c0_51, %c0_52, %c0_53] : memref<1x1x256xf32, #tpu.memory_space<vmem>>, vector<1x1x256xf32>
    %130 = vector.shape_cast %129 : vector<1x1x256xf32> to vector<1x256xf32>
    %c0_54 = arith.constant 0 : index
    %c0_55 = arith.constant 0 : index
    %c0_56 = arith.constant 0 : index
    %131 = vector.load %arg12[%c0_54, %c0_55, %c0_56] : memref<1x1x256xf32, #tpu.memory_space<vmem>>, vector<1x1x256xf32>
    %132 = vector.shape_cast %131 : vector<1x1x256xf32> to vector<1x256xf32>
    %cst_57 = arith.constant dense<0.000000e+00> : vector<16xf32>
    %133 = vector.multi_reduction <add>, %128, %cst_57 [1] : vector<16x256xf32> to vector<16xf32>
    %134 = vector.shape_cast %133 : vector<16xf32> to vector<16x1xf32>
    %cst_58 = arith.constant 2.560000e+02 : f32
    %135 = vector.broadcast %cst_58 : f32 to vector<16x1xf32>
    %136 = arith.divf %134, %135 : vector<16x1xf32>
    %137 = vector.broadcast %136 : vector<16x1xf32> to vector<16x256xf32>
    %138 = arith.subf %128, %137 : vector<16x256xf32>
    %139 = arith.mulf %138, %138 : vector<16x256xf32>
    %cst_59 = arith.constant dense<0.000000e+00> : vector<16xf32>
    %140 = vector.multi_reduction <add>, %139, %cst_59 [1] : vector<16x256xf32> to vector<16xf32>
    %141 = vector.shape_cast %140 : vector<16xf32> to vector<16x1xf32>
    %cst_60 = arith.constant 2.560000e+02 : f32
    %142 = vector.broadcast %cst_60 : f32 to vector<16x1xf32>
    %143 = arith.divf %141, %142 : vector<16x1xf32>
    %144 = vector.broadcast %136 : vector<16x1xf32> to vector<16x256xf32>
    %145 = arith.subf %128, %144 : vector<16x256xf32>
    %cst_61 = arith.constant 9.99999997E-7 : f32
    %146 = vector.broadcast %cst_61 : f32 to vector<16x1xf32>
    %147 = arith.addf %143, %146 : vector<16x1xf32>
    %148 = math.rsqrt %147 : vector<16x1xf32>
    %149 = vector.broadcast %148 : vector<16x1xf32> to vector<16x256xf32>
    %150 = arith.mulf %145, %149 : vector<16x256xf32>
    %151 = vector.broadcast %130 : vector<1x256xf32> to vector<16x256xf32>
    %152 = arith.mulf %150, %151 : vector<16x256xf32>
    %153 = vector.broadcast %132 : vector<1x256xf32> to vector<16x256xf32>
    %154 = arith.addf %152, %153 : vector<16x256xf32>
    %155 = arith.truncf %154 : vector<16x256xf32> to vector<16x256xbf16>
    %c0_62 = arith.constant 0 : index
    %c0_63 = arith.constant 0 : index
    %c0_64 = arith.constant 0 : index
    %156 = vector.load %arg13[%c0_62, %c0_63, %c0_64] : memref<1x256x512xbf16, #tpu.memory_space<vmem>>, vector<1x256x512xbf16>
    %157 = vector.shape_cast %156 : vector<1x256x512xbf16> to vector<256x512xbf16>
    %cst_65 = arith.constant dense<0.000000e+00> : vector<16x512xf32>
    %158 = tpu.matmul %155, %157, %cst_65 {dimension_numbers = #tpu.dot_dimension_numbers<[1], [0], [0], [1], [0, 0, 1, 1], [], []>} : vector<16x256xbf16>, vector<256x512xbf16>, vector<16x512xf32> -> vector<16x512xf32>
    %c0_66 = arith.constant 0 : index
    %c0_67 = arith.constant 0 : index
    %c0_68 = arith.constant 0 : index
    %159 = vector.load %arg14[%c0_66, %c0_67, %c0_68] : memref<1x1x512xf32, #tpu.memory_space<vmem>>, vector<1x1x512xf32>
    %160 = vector.shape_cast %159 : vector<1x1x512xf32> to vector<1x512xf32>
    %161 = vector.broadcast %160 : vector<1x512xf32> to vector<16x512xf32>
    %162 = arith.addf %158, %161 : vector<16x512xf32>
    %cst_69 = arith.constant 5.000000e-01 : f32
    %163 = vector.broadcast %cst_69 : f32 to vector<16x512xf32>
    %164 = arith.mulf %163, %162 : vector<16x512xf32>
    %cst_70 = arith.constant 0.707106769 : f32
    %165 = vector.broadcast %cst_70 : f32 to vector<16x512xf32>
    %166 = arith.mulf %162, %165 : vector<16x512xf32>
    %167 = math.erf %166 : vector<16x512xf32>
    %cst_71 = arith.constant 1.000000e+00 : f32
    %168 = vector.broadcast %cst_71 : f32 to vector<16x512xf32>
    %169 = arith.addf %168, %167 : vector<16x512xf32>
    %170 = arith.mulf %164, %169 : vector<16x512xf32>
    %171 = arith.truncf %170 : vector<16x512xf32> to vector<16x512xbf16>
    %c0_72 = arith.constant 0 : index
    %c0_73 = arith.constant 0 : index
    %c0_74 = arith.constant 0 : index
    %172 = vector.load %arg15[%c0_72, %c0_73, %c0_74] : memref<1x512x256xbf16, #tpu.memory_space<vmem>>, vector<1x512x256xbf16>
    %173 = vector.shape_cast %172 : vector<1x512x256xbf16> to vector<512x256xbf16>
    %cst_75 = arith.constant dense<0.000000e+00> : vector<16x256xf32>
    %174 = tpu.matmul %171, %173, %cst_75 {dimension_numbers = #tpu.dot_dimension_numbers<[1], [0], [0], [1], [0, 0, 1, 1], [], []>} : vector<16x512xbf16>, vector<512x256xbf16>, vector<16x256xf32> -> vector<16x256xf32>
    %175 = arith.addf %128, %174 : vector<16x256xf32>
    %c0_76 = arith.constant 0 : index
    %c0_77 = arith.constant 0 : index
    %c0_78 = arith.constant 0 : index
    %176 = vector.load %arg16[%c0_76, %c0_77, %c0_78] : memref<1x1x256xf32, #tpu.memory_space<vmem>>, vector<1x1x256xf32>
    %177 = vector.shape_cast %176 : vector<1x1x256xf32> to vector<1x256xf32>
    %178 = vector.broadcast %177 : vector<1x256xf32> to vector<16x256xf32>
    %179 = arith.addf %175, %178 : vector<16x256xf32>
    %c0_79 = arith.constant 0 : index
    %c0_80 = arith.constant 0 : index
    %180 = vector.load %arg20[%c0_79, %c0_80] : memref<16x256xf32, #tpu.memory_space<vmem>>, vector<16x256xf32>
    tpu.vector_store %arg20[%c0_79, %c0_80], %179 {strides = array<i32>} : memref<16x256xf32, #tpu.memory_space<vmem>>, vector<16x256xf32>,
    %c1_i32 = arith.constant 1 : i32
    %181 = arith.cmpi eq, %arg0, %c1_i32 : i32
    %182 = arith.extui %181 : i1 to i32
    %c0_i32_81 = arith.constant 0 : i32
    %183 = arith.cmpi ne, %182, %c0_i32_81 : i32
    scf.if %183 {
      %c0_82 = arith.constant 0 : index
      %c0_83 = arith.constant 0 : index
      %184 = vector.load %arg17[%c0_82, %c0_83] : memref<1x256xf32, #tpu.memory_space<vmem>>, vector<1x256xf32>
      %c0_84 = arith.constant 0 : index
      %c0_85 = arith.constant 0 : index
      %185 = vector.load %arg18[%c0_84, %c0_85] : memref<1x256xf32, #tpu.memory_space<vmem>>, vector<1x256xf32>
      %cst_86 = arith.constant dense<0.000000e+00> : vector<16xf32>
      %186 = vector.multi_reduction <add>, %179, %cst_86 [1] : vector<16x256xf32> to vector<16xf32>
      %187 = vector.shape_cast %186 : vector<16xf32> to vector<16x1xf32>
      %cst_87 = arith.constant 2.560000e+02 : f32
      %188 = vector.broadcast %cst_87 : f32 to vector<16x1xf32>
      %189 = arith.divf %187, %188 : vector<16x1xf32>
      %190 = vector.broadcast %189 : vector<16x1xf32> to vector<16x256xf32>
      %191 = arith.subf %179, %190 : vector<16x256xf32>
      %192 = arith.mulf %191, %191 : vector<16x256xf32>
      %cst_88 = arith.constant dense<0.000000e+00> : vector<16xf32>
      %193 = vector.multi_reduction <add>, %192, %cst_88 [1] : vector<16x256xf32> to vector<16xf32>
      %194 = vector.shape_cast %193 : vector<16xf32> to vector<16x1xf32>
      %cst_89 = arith.constant 2.560000e+02 : f32
      %195 = vector.broadcast %cst_89 : f32 to vector<16x1xf32>
      %196 = arith.divf %194, %195 : vector<16x1xf32>
      %197 = vector.broadcast %189 : vector<16x1xf32> to vector<16x256xf32>
      %198 = arith.subf %179, %197 : vector<16x256xf32>
      %cst_90 = arith.constant 9.99999997E-7 : f32
      %199 = vector.broadcast %cst_90 : f32 to vector<16x1xf32>
      %200 = arith.addf %196, %199 : vector<16x1xf32>
      %201 = math.rsqrt %200 : vector<16x1xf32>
      %202 = vector.broadcast %201 : vector<16x1xf32> to vector<16x256xf32>
      %203 = arith.mulf %198, %202 : vector<16x256xf32>
      %204 = vector.broadcast %184 : vector<1x256xf32> to vector<16x256xf32>
      %205 = arith.mulf %203, %204 : vector<16x256xf32>
      %206 = vector.broadcast %185 : vector<1x256xf32> to vector<16x256xf32>
      %207 = arith.addf %205, %206 : vector<16x256xf32>
      %c0_91 = arith.constant 0 : index
      %c0_92 = arith.constant 0 : index
      %208 = vector.load %arg19[%c0_91, %c0_92] : memref<16x256xf32, #tpu.memory_space<vmem>>, vector<16x256xf32>
      tpu.vector_store %arg19[%c0_91, %c0_92], %207 {strides = array<i32>} : memref<16x256xf32, #tpu.memory_space<vmem>>, vector<16x256xf32>,
    } else {
    }
    return
  }
  func.func @transform_0(%arg0: i32) -> (i32, i32) {
    %c0_i32 = arith.constant 0 : i32
    %c0_i32_0 = arith.constant 0 : i32
    %c0_i32_1 = arith.constant 0 : i32
    return %c0_i32, %c0_i32_0 : i32, i32
  }
  func.func @transform_1(%arg0: i32) -> (i32, i32) {
    %c0_i32 = arith.constant 0 : i32
    %c0_i32_0 = arith.constant 0 : i32
    %c0_i32_1 = arith.constant 0 : i32
    return %c0_i32, %c0_i32_0 : i32, i32
  }
  func.func @transform_2(%arg0: i32) -> (i32, i32) {
    %c0_i32 = arith.constant 0 : i32
    %c0_i32_0 = arith.constant 0 : i32
    %c0_i32_1 = arith.constant 0 : i32
    return %c0_i32, %c0_i32_0 : i32, i32
  }
  func.func @transform_3(%arg0: i32) -> (i32, i32) {
    %c0_i32 = arith.constant 0 : i32
    %c0_i32_0 = arith.constant 0 : i32
    %c0_i32_1 = arith.constant 0 : i32
    return %c0_i32, %c0_i32_0 : i32, i32
  }
  func.func @transform_4(%arg0: i32) -> (i32, i32, i32) {
    %c0_i32 = arith.constant 0 : i32
    %c0_i32_0 = arith.constant 0 : i32
    %c0_i32_1 = arith.constant 0 : i32
    return %arg0, %c0_i32, %c0_i32_0 : i32, i32, i32
  }
  func.func @transform_5(%arg0: i32) -> (i32, i32, i32) {
    %c0_i32 = arith.constant 0 : i32
    %c0_i32_0 = arith.constant 0 : i32
    %c0_i32_1 = arith.constant 0 : i32
    return %arg0, %c0_i32, %c0_i32_0 : i32, i32, i32
  }
  func.func @transform_6(%arg0: i32) -> (i32, i32, i32) {
    %c0_i32 = arith.constant 0 : i32
    %c0_i32_0 = arith.constant 0 : i32
    %c0_i32_1 = arith.constant 0 : i32
    return %arg0, %c0_i32, %c0_i32_0 : i32, i32, i32
  }
  func.func @transform_7(%arg0: i32) -> (i32, i32, i32) {
    %c0_i32 = arith.constant 0 : i32
    %c0_i32_0 = arith.constant 0 : i32
    %c0_i32_1 = arith.constant 0 : i32
    return %arg0, %c0_i32, %c0_i32_0 : i32, i32, i32
  }
  func.func @transform_8(%arg0: i32) -> (i32, i32, i32) {
    %c0_i32 = arith.constant 0 : i32
    %c0_i32_0 = arith.constant 0 : i32
    %c0_i32_1 = arith.constant 0 : i32
    return %arg0, %c0_i32, %c0_i32_0 : i32, i32, i32
  }
  func.func @transform_9(%arg0: i32) -> (i32, i32, i32) {
    %c0_i32 = arith.constant 0 : i32
    %c0_i32_0 = arith.constant 0 : i32
    %c0_i32_1 = arith.constant 0 : i32
    return %arg0, %c0_i32, %c0_i32_0 : i32, i32, i32
  }
  func.func @transform_10(%arg0: i32) -> (i32, i32, i32) {
    %c0_i32 = arith.constant 0 : i32
    %c0_i32_0 = arith.constant 0 : i32
    %c0_i32_1 = arith.constant 0 : i32
    return %arg0, %c0_i32, %c0_i32_0 : i32, i32, i32
  }
  func.func @transform_11(%arg0: i32) -> (i32, i32, i32) {
    %c0_i32 = arith.constant 0 : i32
    %c0_i32_0 = arith.constant 0 : i32
    %c0_i32_1 = arith.constant 0 : i32
    return %arg0, %c0_i32, %c0_i32_0 : i32, i32, i32
  }
  func.func @transform_12(%arg0: i32) -> (i32, i32, i32) {
    %c0_i32 = arith.constant 0 : i32
    %c0_i32_0 = arith.constant 0 : i32
    %c0_i32_1 = arith.constant 0 : i32
    return %arg0, %c0_i32, %c0_i32_0 : i32, i32, i32
  }
  func.func @transform_13(%arg0: i32) -> (i32, i32, i32) {
    %c0_i32 = arith.constant 0 : i32
    %c0_i32_0 = arith.constant 0 : i32
    %c0_i32_1 = arith.constant 0 : i32
    return %arg0, %c0_i32, %c0_i32_0 : i32, i32, i32
  }
  func.func @transform_14(%arg0: i32) -> (i32, i32, i32) {
    %c0_i32 = arith.constant 0 : i32
    %c0_i32_0 = arith.constant 0 : i32
    %c0_i32_1 = arith.constant 0 : i32
    return %arg0, %c0_i32, %c0_i32_0 : i32, i32, i32
  }
  func.func @transform_15(%arg0: i32) -> (i32, i32, i32) {
    %c0_i32 = arith.constant 0 : i32
    %c0_i32_0 = arith.constant 0 : i32
    %c0_i32_1 = arith.constant 0 : i32
    return %arg0, %c0_i32, %c0_i32_0 : i32, i32, i32
  }
  func.func @transform_16(%arg0: i32) -> (i32, i32) {
    %c0_i32 = arith.constant 0 : i32
    %c0_i32_0 = arith.constant 0 : i32
    %c0_i32_1 = arith.constant 0 : i32
    return %c0_i32, %c0_i32_0 : i32, i32
  }
  func.func @transform_17(%arg0: i32) -> (i32, i32) {
    %c0_i32 = arith.constant 0 : i32
    %c0_i32_0 = arith.constant 0 : i32
    %c0_i32_1 = arith.constant 0 : i32
    return %c0_i32, %c0_i32_0 : i32, i32
  }
  func.func @transform_18(%arg0: i32) -> (i32, i32) {
    %c0_i32 = arith.constant 0 : i32
    %c0_i32_0 = arith.constant 0 : i32
    %c0_i32_1 = arith.constant 0 : i32
    return %c0_i32, %c0_i32_0 : i32, i32
  }
}

</mosaic_0001>

<llo_original>
// kernel: vit_forward.1
$region0: #{vit_forward.1}
  #allocation0 [shape = 'u32[]', space=smem, size = 0x4, offset = 0x4, fixed_abs, tag = 'smem constant byte address 0x4 - core index']
  #allocation1 [shape = 'u32[72,128]{1,0:T(1,128)}', space=vmem, size = 0x9000, scoped, tag = 'internal scratch']
  #allocation2 [shape = 'f32[16,256]{1,0:T(8,128)}', space=vmem, size = 0x4000, scoped, tag = 'scratch operand']
  #allocation3 [shape = 'f32[16,256]{1,0:T(8,128)}', space=vmem, size = 0x4000, scoped, tag = 'scratch operand']
  %s0 = inlined_call_operand.vmem [shape: bf16[16,768], index: 0, kind: input, shape index: {}]
  %s1 = inlined_call_operand.vmem [shape: f32[16,256], index: 1, kind: input, shape index: {}]
  %s2 = inlined_call_operand.vmem [shape: f32[16,16], index: 2, kind: input, shape index: {}]
  %s3 = inlined_call_operand.hbm [shape: bf16[768,256], index: 3, kind: input, shape index: {}]
  %s4 = inlined_call_operand.vmem [shape: f32[2,1,256], index: 4, kind: input, shape index: {}]
  %s5 = inlined_call_operand.vmem [shape: f32[2,1,256], index: 5, kind: input, shape index: {}]
  %s6 = inlined_call_operand.hbm [shape: bf16[2,256,768], index: 6, kind: input, shape index: {}]
  %s7 = inlined_call_operand.vmem [shape: f32[2,1,768], index: 7, kind: input, shape index: {}]
  %s8 = inlined_call_operand.hbm [shape: bf16[2,256,256], index: 8, kind: input, shape index: {}]
  %s9 = inlined_call_operand.vmem [shape: f32[2,1,256], index: 9, kind: input, shape index: {}]
  %s10 = inlined_call_operand.vmem [shape: f32[2,1,256], index: 10, kind: input, shape index: {}]
  %s11 = inlined_call_operand.vmem [shape: f32[2,1,256], index: 11, kind: input, shape index: {}]
  %s12 = inlined_call_operand.vmem [shape: bf16[2,256,512], index: 12, kind: input, shape index: {}]
  %s13 = inlined_call_operand.vmem [shape: f32[2,1,512], index: 13, kind: input, shape index: {}]
  %s14 = inlined_call_operand.hbm [shape: bf16[2,512,256], index: 14, kind: input, shape index: {}]
  %s15 = inlined_call_operand.vmem [shape: f32[2,1,256], index: 15, kind: input, shape index: {}]
  %s16 = inlined_call_operand.vmem [shape: f32[1,256], index: 16, kind: input, shape index: {}]
  %s17 = inlined_call_operand.vmem [shape: f32[1,256], index: 17, kind: input, shape index: {}]
  %s18 = inlined_call_operand.vmem [shape: f32[16,256], index: 18, kind: output, shape index: {}]
  %s19 = sld [smem:[#allocation0]]
  $region129: #{vit_forward.1} parent=0
    _
  %s21 = ssub.s32 1, %s19
  %s22 = scalar_select 0, %s21, %s19
  $region1: #{vit_forward.1} parent=0
    #allocation4 [shape = 'u8[393216]{0}', space=vmem, size = 0x60000, scoped, tag = 'input window, operand 3, single buffered']
    #allocation5 [shape = 's32[2]{0}', space=sflag, size = 0x8, scoped, tag = 'scoped memory for vit_forward.1']
    #allocation6 [shape = 'u8[786432]{0}', space=vmem, size = 0xc0000, scoped, tag = 'input window, operand 6']
    #allocation7 [shape = 's32[2]{0}', space=sflag, size = 0x8, scoped, tag = 'scoped memory for vit_forward.1']
    #allocation8 [shape = 'u8[262144]{0}', space=vmem, size = 0x40000, scoped, tag = 'input window, operand 8']
    #allocation9 [shape = 'u8[524288]{0}', space=vmem, size = 0x80000, scoped, tag = 'input window, operand 14']
    #allocation10 [shape = 's32[2]{0}', space=sflag, size = 0x8, scoped, tag = 'scoped memory for vit_forward.1']
    %23 = vsyncpa [#allocation5], 0
    %24 = vsyncpa [#allocation7], 0
    %s25 = scalar_lea.sflag [#allocation7], 1
    %26 = vsyncpa %s25, 0
    %27 = vsyncpa [#allocation10], 0
    %s28 = scalar_lea.sflag [#allocation10], 1
    %29 = vsyncpa %s28, 0
    loop: start=0, step=1, limit=4
    $region2: #{vit_forward.1} parent=1 // loop_pre_header
      _
    $region3: #{vit_forward.1} parent=1 // loop_header
      %s31 = sphi 0, %s35
      %p32 = scmp.ge.s32.totalorder %s31, 4
      %s39 = sphi 0, %s39
      %s41 = sphi 0, %s39
      %s42 = sphi 0, %s41
      %s56 = sphi 0, %s42
      %s60 = sphi 0, %s60
      %s62 = sphi 0, %s60
      %s63 = sphi 0, %s62
      %s77 = sphi 0, %s63
      %s81 = sphi 0, %s81
      %s83 = sphi 0, %s81
      %s84 = sphi 0, %s83
      %s98 = sphi 0, %s84
      %s102 = sphi 0, %s102
      %s104 = sphi 0, %s102
      %s105 = sphi 0, %s104
      %s119 = sphi 0, %s105
      %s125 = sphi 0, %s127
      %s128 = sphi 0, %s125
      %s129 = sphi 0, %s128
      %s145 = sphi 0, %s129
      %s151 = sphi 0, %s153
      %s154 = sphi 0, %s151
      %s155 = sphi 0, %s154
      %s171 = sphi 0, %s155
      %s177 = sphi 0, %s179
      %s180 = sphi 0, %s177
      %s181 = sphi 0, %s180
      %s197 = sphi 0, %s181
      %s203 = sphi 0, %s205
      %s206 = sphi 0, %s203
      %s207 = sphi 0, %s206
      %s223 = sphi 0, %s207
      %s229 = sphi 0, %s231
      %s232 = sphi 0, %s229
      %s233 = sphi 0, %s232
      %s249 = sphi 0, %s233
      %s255 = sphi 0, %s257
      %s258 = sphi 0, %s255
      %s259 = sphi 0, %s258
      %s275 = sphi 0, %s259
      %s281 = sphi 0, %s283
      %s284 = sphi 0, %s281
      %s285 = sphi 0, %s284
      %s301 = sphi 0, %s285
      %s307 = sphi 0, %s309
      %s310 = sphi 0, %s307
      %s311 = sphi 0, %s310
      %s327 = sphi 0, %s311
      %s333 = sphi 0, %s335
      %s336 = sphi 0, %s333
      %s337 = sphi 0, %s336
      %s353 = sphi 0, %s337
      %s359 = sphi 0, %s361
      %s362 = sphi 0, %s359
      %s363 = sphi 0, %s362
      %s379 = sphi 0, %s363
      %s385 = sphi 0, %s387
      %s388 = sphi 0, %s385
      %s389 = sphi 0, %s388
      %s405 = sphi 0, %s389
      %s411 = sphi 0, %s413
      %s414 = sphi 0, %s411
      %s415 = sphi 0, %s414
      %s431 = sphi 0, %s415
      %s435 = sphi 0, %s435
      %s437 = sphi 0, %s435
      %s438 = sphi 0, %s437
      %s452 = sphi 0, %s438
      %s456 = sphi 0, %s456
      %s458 = sphi 0, %s456
      %s459 = sphi 0, %s458
      %s473 = sphi 0, %s459
      %s477 = sphi 0, %s477
      %s479 = sphi 0, %s477
      %s480 = sphi 0, %s479
      %s494 = sphi 0, %s480
    $region4: #{vit_forward.1} parent=1 // loop_header_branch
      %34 = sbr.rel (%p32) target = $region8
    $region5: #{vit_forward.1} parent=1 // loop_body
      %s36 = ssub.s32 %s31, 1
      %s37 = ssub.s32 %s31, 2
      %s38 = sadd.s32 %s31, 1
      %s40 = sadd.s32 %s39, 1
      %p43 = scmp.eq.s32.totalorder %s31, 1
      %p44 = scmp.ne.s32.totalorder %s39, %s41
      %p45 = scmp.eq.s32.totalorder %s31, 0
      %p46 = por %p44, %p45
      %p47 = scmp.ne.s32.totalorder %s39, %s41
      %p48 = scmp.eq.s32.totalorder %s36, 1
      %p49 = por %p47, %p48
      %p50 = scmp.ne.s32.totalorder %s41, %s42
      %p51 = scmp.eq.s32.totalorder %s36, 0
      %p52 = por %p50, %p51
      %p53 = scmp.ne.s32.totalorder %s41, %s42
      %p54 = scmp.eq.s32.totalorder %s37, 1
      %p55 = por %p53, %p54
      %p57 = scmp.ne.s32.totalorder %s42, %s56
      %p58 = scmp.eq.s32.totalorder %s37, 0
      %p59 = por %p57, %p58
      %s61 = sadd.s32 %s60, 1
      %p64 = scmp.eq.s32.totalorder %s31, 1
      %p65 = scmp.ne.s32.totalorder %s60, %s62
      %p66 = scmp.eq.s32.totalorder %s31, 0
      %p67 = por %p65, %p66
      %p68 = scmp.ne.s32.totalorder %s60, %s62
      %p69 = scmp.eq.s32.totalorder %s36, 1
      %p70 = por %p68, %p69
      %p71 = scmp.ne.s32.totalorder %s62, %s63
      %p72 = scmp.eq.s32.totalorder %s36, 0
      %p73 = por %p71, %p72
      %p74 = scmp.ne.s32.totalorder %s62, %s63
      %p75 = scmp.eq.s32.totalorder %s37, 1
      %p76 = por %p74, %p75
      %p78 = scmp.ne.s32.totalorder %s63, %s77
      %p79 = scmp.eq.s32.totalorder %s37, 0
      %p80 = por %p78, %p79
      %s82 = sadd.s32 %s81, 1
      %p85 = scmp.eq.s32.totalorder %s31, 1
      %p86 = scmp.ne.s32.totalorder %s81, %s83
      %p87 = scmp.eq.s32.totalorder %s31, 0
      %p88 = por %p86, %p87
      %p89 = scmp.ne.s32.totalorder %s81, %s83
      %p90 = scmp.eq.s32.totalorder %s36, 1
      %p91 = por %p89, %p90
      %p92 = scmp.ne.s32.totalorder %s83, %s84
      %p93 = scmp.eq.s32.totalorder %s36, 0
      %p94 = por %p92, %p93
      %p95 = scmp.ne.s32.totalorder %s83, %s84
      %p96 = scmp.eq.s32.totalorder %s37, 1
      %p97 = por %p95, %p96
      %p99 = scmp.ne.s32.totalorder %s84, %s98
      %p100 = scmp.eq.s32.totalorder %s37, 0
      %p101 = por %p99, %p100
      %s103 = sadd.s32 %s102, 1
      %p106 = scmp.eq.s32.totalorder %s31, 1
      %p107 = scmp.ne.s32.totalorder %s102, %s104
      %p108 = scmp.eq.s32.totalorder %s31, 0
      %p109 = por %p107, %p108
      %p110 = scmp.ne.s32.totalorder %s102, %s104
      %p111 = scmp.eq.s32.totalorder %s36, 1
      %p112 = por %p110, %p111
      %p113 = scmp.ne.s32.totalorder %s104, %s105
      %p114 = scmp.eq.s32.totalorder %s36, 0
      %p115 = por %p113, %p114
      %p116 = scmp.ne.s32.totalorder %s104, %s105
      %p117 = scmp.eq.s32.totalorder %s37, 1
      %p118 = por %p116, %p117
      %p120 = scmp.ne.s32.totalorder %s105, %s119
      %p121 = scmp.eq.s32.totalorder %s37, 0
      %p122 = por %p120, %p121
      %s123 = ssub.s32 %s31, %s38
      %p124 = scmp.eq.s32.totalorder %s123, 0
      %s126 = sadd.s32 %s125, 1
      %s127 = scalar_select %p124, %s125, %s126
      %p130 = pneg %p124
      %p131 = scmp.eq.s32.totalorder %s31, 1
      %p132 = por %p130, %p131
      %p133 = scmp.ne.s32.totalorder %s125, %s128
      %p134 = scmp.eq.s32.totalorder %s31, 0
      %p135 = por %p133, %p134
      %p136 = scmp.ne.s32.totalorder %s125, %s128
      %p137 = scmp.eq.s32.totalorder %s36, 1
      %p138 = por %p136, %p137
      %p139 = scmp.ne.s32.totalorder %s128, %s129
      %p140 = scmp.eq.s32.totalorder %s36, 0
      %p141 = por %p139, %p140
      %p142 = scmp.ne.s32.totalorder %s128, %s129
      %p143 = scmp.eq.s32.totalorder %s37, 1
      %p144 = por %p142, %p143
      %p146 = scmp.ne.s32.totalorder %s129, %s145
      %p147 = scmp.eq.s32.totalorder %s37, 0
      %p148 = por %p146, %p147
      %s149 = ssub.s32 %s31, %s38
      %p150 = scmp.eq.s32.totalorder %s149, 0
      %s152 = sadd.s32 %s151, 1
      %s153 = scalar_select %p150, %s151, %s152
      %p156 = pneg %p150
      %p157 = scmp.eq.s32.totalorder %s31, 1
      %p158 = por %p156, %p157
      %p159 = scmp.ne.s32.totalorder %s151, %s154
      %p160 = scmp.eq.s32.totalorder %s31, 0
      %p161 = por %p159, %p160
      %p162 = scmp.ne.s32.totalorder %s151, %s154
      %p163 = scmp.eq.s32.totalorder %s36, 1
      %p164 = por %p162, %p163
      %p165 = scmp.ne.s32.totalorder %s154, %s155
      %p166 = scmp.eq.s32.totalorder %s36, 0
      %p167 = por %p165, %p166
      %p168 = scmp.ne.s32.totalorder %s154, %s155
      %p169 = scmp.eq.s32.totalorder %s37, 1
      %p170 = por %p168, %p169
      %p172 = scmp.ne.s32.totalorder %s155, %s171
      %p173 = scmp.eq.s32.totalorder %s37, 0
      %p174 = por %p172, %p173
      %s175 = ssub.s32 %s31, %s38
      %p176 = scmp.eq.s32.totalorder %s175, 0
      %s178 = sadd.s32 %s177, 1
      %s179 = scalar_select %p176, %s177, %s178
      %p182 = pneg %p176
      %p183 = scmp.eq.s32.totalorder %s31, 1
      %p184 = por %p182, %p183
      %p185 = scmp.ne.s32.totalorder %s177, %s180
      %p186 = scmp.eq.s32.totalorder %s31, 0
      %p187 = por %p185, %p186
      %p188 = scmp.ne.s32.totalorder %s177, %s180
      %p189 = scmp.eq.s32.totalorder %s36, 1
      %p190 = por %p188, %p189
      %p191 = scmp.ne.s32.totalorder %s180, %s181
      %p192 = scmp.eq.s32.totalorder %s36, 0
      %p193 = por %p191, %p192
      %p194 = scmp.ne.s32.totalorder %s180, %s181
      %p195 = scmp.eq.s32.totalorder %s37, 1
      %p196 = por %p194, %p195
      %p198 = scmp.ne.s32.totalorder %s181, %s197
      %p199 = scmp.eq.s32.totalorder %s37, 0
      %p200 = por %p198, %p199
      %s201 = ssub.s32 %s31, %s38
      %p202 = scmp.eq.s32.totalorder %s201, 0
      %s204 = sadd.s32 %s203, 1
      %s205 = scalar_select %p202, %s203, %s204
      %p208 = pneg %p202
      %p209 = scmp.eq.s32.totalorder %s31, 1
      %p210 = por %p208, %p209
      %p211 = scmp.ne.s32.totalorder %s203, %s206
      %p212 = scmp.eq.s32.totalorder %s31, 0
      %p213 = por %p211, %p212
      %p214 = scmp.ne.s32.totalorder %s203, %s206
      %p215 = scmp.eq.s32.totalorder %s36, 1
      %p216 = por %p214, %p215
      %p217 = scmp.ne.s32.totalorder %s206, %s207
      %p218 = scmp.eq.s32.totalorder %s36, 0
      %p219 = por %p217, %p218
      %p220 = scmp.ne.s32.totalorder %s206, %s207
      %p221 = scmp.eq.s32.totalorder %s37, 1
      %p222 = por %p220, %p221
      %p224 = scmp.ne.s32.totalorder %s207, %s223
      %p225 = scmp.eq.s32.totalorder %s37, 0
      %p226 = por %p224, %p225
      %s227 = ssub.s32 %s31, %s38
      %p228 = scmp.eq.s32.totalorder %s227, 0
      %s230 = sadd.s32 %s229, 1
      %s231 = scalar_select %p228, %s229, %s230
      %p234 = pneg %p228
      %p235 = scmp.eq.s32.totalorder %s31, 1
      %p236 = por %p234, %p235
      %p237 = scmp.ne.s32.totalorder %s229, %s232
      %p238 = scmp.eq.s32.totalorder %s31, 0
      %p239 = por %p237, %p238
      %p240 = scmp.ne.s32.totalorder %s229, %s232
      %p241 = scmp.eq.s32.totalorder %s36, 1
      %p242 = por %p240, %p241
      %p243 = scmp.ne.s32.totalorder %s232, %s233
      %p244 = scmp.eq.s32.totalorder %s36, 0
      %p245 = por %p243, %p244
      %p246 = scmp.ne.s32.totalorder %s232, %s233
      %p247 = scmp.eq.s32.totalorder %s37, 1
      %p248 = por %p246, %p247
      %p250 = scmp.ne.s32.totalorder %s233, %s249
      %p251 = scmp.eq.s32.totalorder %s37, 0
      %p252 = por %p250, %p251
      %s253 = ssub.s32 %s31, %s38
      %p254 = scmp.eq.s32.totalorder %s253, 0
      %s256 = sadd.s32 %s255, 1
      %s257 = scalar_select %p254, %s255, %s256
      %p260 = pneg %p254
      %p261 = scmp.eq.s32.totalorder %s31, 1
      %p262 = por %p260, %p261
      %p263 = scmp.ne.s32.totalorder %s255, %s258
      %p264 = scmp.eq.s32.totalorder %s31, 0
      %p265 = por %p263, %p264
      %p266 = scmp.ne.s32.totalorder %s255, %s258
      %p267 = scmp.eq.s32.totalorder %s36, 1
      %p268 = por %p266, %p267
      %p269 = scmp.ne.s32.totalorder %s258, %s259
      %p270 = scmp.eq.s32.totalorder %s36, 0
      %p271 = por %p269, %p270
      %p272 = scmp.ne.s32.totalorder %s258, %s259
      %p273 = scmp.eq.s32.totalorder %s37, 1
      %p274 = por %p272, %p273
      %p276 = scmp.ne.s32.totalorder %s259, %s275
      %p277 = scmp.eq.s32.totalorder %s37, 0
      %p278 = por %p276, %p277
      %s279 = ssub.s32 %s31, %s38
      %p280 = scmp.eq.s32.totalorder %s279, 0
      %s282 = sadd.s32 %s281, 1
      %s283 = scalar_select %p280, %s281, %s282
      %p286 = pneg %p280
      %p287 = scmp.eq.s32.totalorder %s31, 1
      %p288 = por %p286, %p287
      %p289 = scmp.ne.s32.totalorder %s281, %s284
      %p290 = scmp.eq.s32.totalorder %s31, 0
      %p291 = por %p289, %p290
      %p292 = scmp.ne.s32.totalorder %s281, %s284
      %p293 = scmp.eq.s32.totalorder %s36, 1
      %p294 = por %p292, %p293
      %p295 = scmp.ne.s32.totalorder %s284, %s285
      %p296 = scmp.eq.s32.totalorder %s36, 0
      %p297 = por %p295, %p296
      %p298 = scmp.ne.s32.totalorder %s284, %s285
      %p299 = scmp.eq.s32.totalorder %s37, 1
      %p300 = por %p298, %p299
      %p302 = scmp.ne.s32.totalorder %s285, %s301
      %p303 = scmp.eq.s32.totalorder %s37, 0
      %p304 = por %p302, %p303
      %s305 = ssub.s32 %s31, %s38
      %p306 = scmp.eq.s32.totalorder %s305, 0
      %s308 = sadd.s32 %s307, 1
      %s309 = scalar_select %p306, %s307, %s308
      %p312 = pneg %p306
      %p313 = scmp.eq.s32.totalorder %s31, 1
      %p314 = por %p312, %p313
      %p315 = scmp.ne.s32.totalorder %s307, %s310
      %p316 = scmp.eq.s32.totalorder %s31, 0
      %p317 = por %p315, %p316
      %p318 = scmp.ne.s32.totalorder %s307, %s310
      %p319 = scmp.eq.s32.totalorder %s36, 1
      %p320 = por %p318, %p319
      %p321 = scmp.ne.s32.totalorder %s310, %s311
      %p322 = scmp.eq.s32.totalorder %s36, 0
      %p323 = por %p321, %p322
      %p324 = scmp.ne.s32.totalorder %s310, %s311
      %p325 = scmp.eq.s32.totalorder %s37, 1
      %p326 = por %p324, %p325
      %p328 = scmp.ne.s32.totalorder %s311, %s327
      %p329 = scmp.eq.s32.totalorder %s37, 0
      %p330 = por %p328, %p329
      %s331 = ssub.s32 %s31, %s38
      %p332 = scmp.eq.s32.totalorder %s331, 0
      %s334 = sadd.s32 %s333, 1
      %s335 = scalar_select %p332, %s333, %s334
      %p338 = pneg %p332
      %p339 = scmp.eq.s32.totalorder %s31, 1
      %p340 = por %p338, %p339
      %p341 = scmp.ne.s32.totalorder %s333, %s336
      %p342 = scmp.eq.s32.totalorder %s31, 0
      %p343 = por %p341, %p342
      %p344 = scmp.ne.s32.totalorder %s333, %s336
      %p345 = scmp.eq.s32.totalorder %s36, 1
      %p346 = por %p344, %p345
      %p347 = scmp.ne.s32.totalorder %s336, %s337
      %p348 = scmp.eq.s32.totalorder %s36, 0
      %p349 = por %p347, %p348
      %p350 = scmp.ne.s32.totalorder %s336, %s337
      %p351 = scmp.eq.s32.totalorder %s37, 1
      %p352 = por %p350, %p351
      %p354 = scmp.ne.s32.totalorder %s337, %s353
      %p355 = scmp.eq.s32.totalorder %s37, 0
      %p356 = por %p354, %p355
      %s357 = ssub.s32 %s31, %s38
      %p358 = scmp.eq.s32.totalorder %s357, 0
      %s360 = sadd.s32 %s359, 1
      %s361 = scalar_select %p358, %s359, %s360
      %p364 = pneg %p358
      %p365 = scmp.eq.s32.totalorder %s31, 1
      %p366 = por %p364, %p365
      %p367 = scmp.ne.s32.totalorder %s359, %s362
      %p368 = scmp.eq.s32.totalorder %s31, 0
      %p369 = por %p367, %p368
      %p370 = scmp.ne.s32.totalorder %s359, %s362
      %p371 = scmp.eq.s32.totalorder %s36, 1
      %p372 = por %p370, %p371
      %p373 = scmp.ne.s32.totalorder %s362, %s363
      %p374 = scmp.eq.s32.totalorder %s36, 0
      %p375 = por %p373, %p374
      %p376 = scmp.ne.s32.totalorder %s362, %s363
      %p377 = scmp.eq.s32.totalorder %s37, 1
      %p378 = por %p376, %p377
      %p380 = scmp.ne.s32.totalorder %s363, %s379
      %p381 = scmp.eq.s32.totalorder %s37, 0
      %p382 = por %p380, %p381
      %s383 = ssub.s32 %s31, %s38
      %p384 = scmp.eq.s32.totalorder %s383, 0
      %s386 = sadd.s32 %s385, 1
      %s387 = scalar_select %p384, %s385, %s386
      %p390 = pneg %p384
      %p391 = scmp.eq.s32.totalorder %s31, 1
      %p392 = por %p390, %p391
      %p393 = scmp.ne.s32.totalorder %s385, %s388
      %p394 = scmp.eq.s32.totalorder %s31, 0
      %p395 = por %p393, %p394
      %p396 = scmp.ne.s32.totalorder %s385, %s388
      %p397 = scmp.eq.s32.totalorder %s36, 1
      %p398 = por %p396, %p397
      %p399 = scmp.ne.s32.totalorder %s388, %s389
      %p400 = scmp.eq.s32.totalorder %s36, 0
      %p401 = por %p399, %p400
      %p402 = scmp.ne.s32.totalorder %s388, %s389
      %p403 = scmp.eq.s32.totalorder %s37, 1
      %p404 = por %p402, %p403
      %p406 = scmp.ne.s32.totalorder %s389, %s405
      %p407 = scmp.eq.s32.totalorder %s37, 0
      %p408 = por %p406, %p407
      %s409 = ssub.s32 %s31, %s38
      %p410 = scmp.eq.s32.totalorder %s409, 0
      %s412 = sadd.s32 %s411, 1
      %s413 = scalar_select %p410, %s411, %s412
      %p416 = pneg %p410
      %p417 = scmp.eq.s32.totalorder %s31, 1
      %p418 = por %p416, %p417
      %p419 = scmp.ne.s32.totalorder %s411, %s414
      %p420 = scmp.eq.s32.totalorder %s31, 0
      %p421 = por %p419, %p420
      %p422 = scmp.ne.s32.totalorder %s411, %s414
      %p423 = scmp.eq.s32.totalorder %s36, 1
      %p424 = por %p422, %p423
      %p425 = scmp.ne.s32.totalorder %s414, %s415
      %p426 = scmp.eq.s32.totalorder %s36, 0
      %p427 = por %p425, %p426
      %p428 = scmp.ne.s32.totalorder %s414, %s415
      %p429 = scmp.eq.s32.totalorder %s37, 1
      %p430 = por %p428, %p429
      %p432 = scmp.ne.s32.totalorder %s415, %s431
      %p433 = scmp.eq.s32.totalorder %s37, 0
      %p434 = por %p432, %p433
      %s436 = sadd.s32 %s435, 1
      %p439 = scmp.eq.s32.totalorder %s31, 1
      %p440 = scmp.ne.s32.totalorder %s435, %s437
      %p441 = scmp.eq.s32.totalorder %s31, 0
      %p442 = por %p440, %p441
      %p443 = scmp.ne.s32.totalorder %s435, %s437
      %p444 = scmp.eq.s32.totalorder %s36, 1
      %p445 = por %p443, %p444
      %p446 = scmp.ne.s32.totalorder %s437, %s438
      %p447 = scmp.eq.s32.totalorder %s36, 0
      %p448 = por %p446, %p447
      %p449 = scmp.ne.s32.totalorder %s437, %s438
      %p450 = scmp.eq.s32.totalorder %s37, 1
      %p451 = por %p449, %p450
      %p453 = scmp.ne.s32.totalorder %s438, %s452
      %p454 = scmp.eq.s32.totalorder %s37, 0
      %p455 = por %p453, %p454
      %s457 = sadd.s32 %s456, 1
      %p460 = scmp.eq.s32.totalorder %s31, 1
      %p461 = scmp.ne.s32.totalorder %s456, %s458
      %p462 = scmp.eq.s32.totalorder %s31, 0
      %p463 = por %p461, %p462
      %p464 = scmp.ne.s32.totalorder %s456, %s458
      %p465 = scmp.eq.s32.totalorder %s36, 1
      %p466 = por %p464, %p465
      %p467 = scmp.ne.s32.totalorder %s458, %s459
      %p468 = scmp.eq.s32.totalorder %s36, 0
      %p469 = por %p467, %p468
      %p470 = scmp.ne.s32.totalorder %s458, %s459
      %p471 = scmp.eq.s32.totalorder %s37, 1
      %p472 = por %p470, %p471
      %p474 = scmp.ne.s32.totalorder %s459, %s473
      %p475 = scmp.eq.s32.totalorder %s37, 0
      %p476 = por %p474, %p475
      %s478 = sadd.s32 %s477, 1
      %p481 = scmp.eq.s32.totalorder %s31, 1
      %p482 = scmp.ne.s32.totalorder %s477, %s479
      %p483 = scmp.eq.s32.totalorder %s31, 0
      %p484 = por %p482, %p483
      %p485 = scmp.ne.s32.totalorder %s477, %s479
      %p486 = scmp.eq.s32.totalorder %s36, 1
      %p487 = por %p485, %p486
      %p488 = scmp.ne.s32.totalorder %s479, %s480
      %p489 = scmp.eq.s32.totalorder %s36, 0
      %p490 = por %p488, %p489
      %p491 = scmp.ne.s32.totalorder %s479, %s480
      %p492 = scmp.eq.s32.totalorder %s37, 1
      %p493 = por %p491, %p492
      %p495 = scmp.ne.s32.totalorder %s480, %s494
      %p496 = scmp.eq.s32.totalorder %s37, 0
      %p497 = por %p495, %p496
      %p498 = scmp.le.s32.totalorder 1, %s31
      %p499 = scmp.lt.s32.totalorder %s31, 3
      %p500 = pnand %p498, %p499
      %p501 = pneg %p500
      // Predicated region
      $region9: #{vit_forward.1} parent=5 // pred_check
        _
      $region10: #{vit_forward.1} parent=5 // pred_check_branch
        %503 = sbr.rel (%p500) target = $region12
      $region11: #{vit_forward.1} parent=5 // pred_region
        %s504 = ssub.s32 %s31, 1
        // Predicated region
        $region13: #{vit_forward.1} parent=11 // pred_check
          %p505 = pneg %p52
        $region14: #{vit_forward.1} parent=11 // pred_check_branch
          %507 = sbr.rel (%p505) target = $region16
        $region15: #{vit_forward.1} parent=11 // pred_region
          _
        $region16: #{vit_forward.1} parent=11 // pred_fallthru
          _
        // Predicated region
        $region17: #{vit_forward.1} parent=11 // pred_check
          %p508 = pneg %p73
        $region18: #{vit_forward.1} parent=11 // pred_check_branch
          %510 = sbr.rel (%p508) target = $region20
        $region19: #{vit_forward.1} parent=11 // pred_region
          _
        $region20: #{vit_forward.1} parent=11 // pred_fallthru
          _
        // Predicated region
        $region21: #{vit_forward.1} parent=11 // pred_check
          %p511 = pneg %p94
        $region22: #{vit_forward.1} parent=11 // pred_check_branch
          %513 = sbr.rel (%p511) target = $region24
        $region23: #{vit_forward.1} parent=11 // pred_region
          _
        $region24: #{vit_forward.1} parent=11 // pred_fallthru
          _
        // Predicated region
        $region25: #{vit_forward.1} parent=11 // pred_check
          %p514 = pneg %p115
        $region26: #{vit_forward.1} parent=11 // pred_check_branch
          %516 = sbr.rel (%p514) target = $region28
        $region27: #{vit_forward.1} parent=11 // pred_region
          %518 = vsyncadd [#allocation5], 0
          %s519 = sshll.u32 %s3, 4
          %s520 = int_to_ptr.hbm [resolvable:$true] %s519
          %s521 = sshll.u32 [#allocation4], 4
          %s522 = int_to_ptr.vmem [resolvable:$true] %s521
          %527 = dma.hbm_to_vmem [thread:$0]  %s520, 12288, %s522, [#allocation5], 128, 128, 8
        $region28: #{vit_forward.1} parent=11 // pred_fallthru
          _
        // Predicated region
        $region29: #{vit_forward.1} parent=11 // pred_check
          %p528 = pneg %p448
        $region30: #{vit_forward.1} parent=11 // pred_check_branch
          %530 = sbr.rel (%p528) target = $region32
        $region31: #{vit_forward.1} parent=11 // pred_region
          _
        $region32: #{vit_forward.1} parent=11 // pred_fallthru
          _
        // Predicated region
        $region33: #{vit_forward.1} parent=11 // pred_check
          %p531 = pneg %p469
        $region34: #{vit_forward.1} parent=11 // pred_check_branch
          %533 = sbr.rel (%p531) target = $region36
        $region35: #{vit_forward.1} parent=11 // pred_region
          _
        $region36: #{vit_forward.1} parent=11 // pred_fallthru
          _
      $region12: #{vit_forward.1} parent=5 // pred_fallthru
        _
      %p534 = scmp.lt.s32.totalorder %s31, 2
      // Predicated region
      $region37: #{vit_forward.1} parent=5 // pred_check
        %p535 = pneg %p534
      $region38: #{vit_forward.1} parent=5 // pred_check_branch
        %537 = sbr.rel (%p535) target = $region40
      $region39: #{vit_forward.1} parent=5 // pred_region
        // Predicated region
        $region41: #{vit_forward.1} parent=39 // pred_check
          %p538 = pneg %p135
        $region42: #{vit_forward.1} parent=39 // pred_check_branch
          %540 = sbr.rel (%p538) target = $region44
        $region43: #{vit_forward.1} parent=39 // pred_region
          %p541 = scmp.lt.s32.totalorder %s31, 1
          %s542 = scalar_select %p541, %s31, 1
          %s543 = smul.addr %s542, 2
          %s544 = scalar_lea.vmem %s4, %s543
        $region44: #{vit_forward.1} parent=39 // pred_fallthru
          _
        // Predicated region
        $region45: #{vit_forward.1} parent=39 // pred_check
          %p545 = pneg %p161
        $region46: #{vit_forward.1} parent=39 // pred_check_branch
          %547 = sbr.rel (%p545) target = $region48
        $region47: #{vit_forward.1} parent=39 // pred_region
          %p548 = scmp.lt.s32.totalorder %s31, 1
          %s549 = scalar_select %p548, %s31, 1
          %s550 = smul.addr %s549, 2
          %s551 = scalar_lea.vmem %s5, %s550
        $region48: #{vit_forward.1} parent=39 // pred_fallthru
          _
        // Predicated region
        $region49: #{vit_forward.1} parent=39 // pred_check
          %p552 = pneg %p187
        $region50: #{vit_forward.1} parent=39 // pred_check_branch
          %554 = sbr.rel (%p552) target = $region52
        $region51: #{vit_forward.1} parent=39 // pred_region
          %s555 = sand.u32 %s31, 1
          %s556 = scalar_lea.sflag [#allocation7], %s555
          %s557 = sand.u32 %s177, 1
          %s558 = smul.addr %s557, 768
          %s559 = scalar_lea.vmem [#allocation6], %s558
          %561 = vsyncadd %s556, 0
          %s562 = smul.addr %s31, 192
          %s563 = smul.addr %s562, 4
          %s564 = scalar_lea.hbm %s6, %s563
          %s565 = sshll.u32 %s564, 4
          %s566 = int_to_ptr.hbm [resolvable:$true] %s565
          %s567 = sshll.u32 %s559, 4
          %s568 = int_to_ptr.vmem [resolvable:$true] %s567
          %573 = dma.hbm_to_vmem [thread:$0]  %s566, 12288, %s568, %s556, 384, 384, 24
        $region52: #{vit_forward.1} parent=39 // pred_fallthru
          _
        // Predicated region
        $region53: #{vit_forward.1} parent=39 // pred_check
          %p574 = pneg %p213
        $region54: #{vit_forward.1} parent=39 // pred_check_branch
          %576 = sbr.rel (%p574) target = $region56
        $region55: #{vit_forward.1} parent=39 // pred_region
          %p577 = scmp.lt.s32.totalorder %s31, 1
          %s578 = scalar_select %p577, %s31, 1
          %s579 = smul.addr %s578, 6
          %s580 = scalar_lea.vmem %s7, %s579
        $region56: #{vit_forward.1} parent=39 // pred_fallthru
          _
        // Predicated region
        $region57: #{vit_forward.1} parent=39 // pred_check
          %p581 = pneg %p239
        $region58: #{vit_forward.1} parent=39 // pred_check_branch
          %583 = sbr.rel (%p581) target = $region60
        $region59: #{vit_forward.1} parent=39 // pred_region
          %s584 = sand.u32 %s31, 1
          %s585 = scalar_lea.sflag [#allocation7], %s584
          %s586 = sand.u32 %s229, 1
          %s587 = smul.addr %s586, 256
          %s588 = scalar_lea.vmem [#allocation8], %s587
          %590 = vsyncadd %s585, 0
          %s591 = smul.addr %s31, 64
          %s592 = smul.addr %s591, 4
          %s593 = scalar_lea.hbm %s8, %s592
          %s594 = sshll.u32 %s593, 4
          %s595 = int_to_ptr.hbm [resolvable:$true] %s594
          %s596 = sshll.u32 %s588, 4
          %s597 = int_to_ptr.vmem [resolvable:$true] %s596
          %602 = dma.hbm_to_vmem [thread:$0]  %s595, 4096, %s597, %s585, 128, 128, 8
        $region60: #{vit_forward.1} parent=39 // pred_fallthru
          _
        // Predicated region
        $region61: #{vit_forward.1} parent=39 // pred_check
          %p603 = pneg %p265
        $region62: #{vit_forward.1} parent=39 // pred_check_branch
          %605 = sbr.rel (%p603) target = $region64
        $region63: #{vit_forward.1} parent=39 // pred_region
          %p606 = scmp.lt.s32.totalorder %s31, 1
          %s607 = scalar_select %p606, %s31, 1
          %s608 = smul.addr %s607, 2
          %s609 = scalar_lea.vmem %s9, %s608
        $region64: #{vit_forward.1} parent=39 // pred_fallthru
          _
        // Predicated region
        $region65: #{vit_forward.1} parent=39 // pred_check
          %p610 = pneg %p291
        $region66: #{vit_forward.1} parent=39 // pred_check_branch
          %612 = sbr.rel (%p610) target = $region68
        $region67: #{vit_forward.1} parent=39 // pred_region
          %p613 = scmp.lt.s32.totalorder %s31, 1
          %s614 = scalar_select %p613, %s31, 1
          %s615 = smul.addr %s614, 2
          %s616 = scalar_lea.vmem %s10, %s615
        $region68: #{vit_forward.1} parent=39 // pred_fallthru
          _
        // Predicated region
        $region69: #{vit_forward.1} parent=39 // pred_check
          %p617 = pneg %p317
        $region70: #{vit_forward.1} parent=39 // pred_check_branch
          %619 = sbr.rel (%p617) target = $region72
        $region71: #{vit_forward.1} parent=39 // pred_region
          %p620 = scmp.lt.s32.totalorder %s31, 1
          %s621 = scalar_select %p620, %s31, 1
          %s622 = smul.addr %s621, 2
          %s623 = scalar_lea.vmem %s11, %s622
        $region72: #{vit_forward.1} parent=39 // pred_fallthru
          _
        // Predicated region
        $region73: #{vit_forward.1} parent=39 // pred_check
          %p624 = pneg %p343
        $region74: #{vit_forward.1} parent=39 // pred_check_branch
          %626 = sbr.rel (%p624) target = $region76
        $region75: #{vit_forward.1} parent=39 // pred_region
          %p627 = scmp.lt.s32.totalorder %s31, 1
          %s628 = scalar_select %p627, %s31, 1
          %s629 = smul.addr %s628, 128
          %s630 = smul.addr %s629, 4
          %s631 = scalar_lea.vmem %s12, %s630
        $region76: #{vit_forward.1} parent=39 // pred_fallthru
          _
        // Predicated region
        $region77: #{vit_forward.1} parent=39 // pred_check
          %p632 = pneg %p369
        $region78: #{vit_forward.1} parent=39 // pred_check_branch
          %634 = sbr.rel (%p632) target = $region80
        $region79: #{vit_forward.1} parent=39 // pred_region
          %p635 = scmp.lt.s32.totalorder %s31, 1
          %s636 = scalar_select %p635, %s31, 1
          %s637 = smul.addr %s636, 4
          %s638 = scalar_lea.vmem %s13, %s637
        $region80: #{vit_forward.1} parent=39 // pred_fallthru
          _
        // Predicated region
        $region81: #{vit_forward.1} parent=39 // pred_check
          %p639 = pneg %p395
        $region82: #{vit_forward.1} parent=39 // pred_check_branch
          %641 = sbr.rel (%p639) target = $region84
        $region83: #{vit_forward.1} parent=39 // pred_region
          %s642 = sand.u32 %s385, 1
          %s643 = scalar_lea.sflag [#allocation10], %s642
          %s644 = sand.u32 %s385, 1
          %s645 = smul.addr %s644, 512
          %s646 = scalar_lea.vmem [#allocation9], %s645
          %648 = vsyncadd %s643, 0
          %s649 = smul.addr %s31, 128
          %s650 = smul.addr %s649, 4
          %s651 = scalar_lea.hbm %s14, %s650
          %s652 = sshll.u32 %s651, 4
          %s653 = int_to_ptr.hbm [resolvable:$true] %s652
          %s654 = sshll.u32 %s646, 4
          %s655 = int_to_ptr.vmem [resolvable:$true] %s654
          %660 = dma.hbm_to_vmem [thread:$0]  %s653, 8192, %s655, %s643, 128, 128, 8
        $region84: #{vit_forward.1} parent=39 // pred_fallthru
          _
        // Predicated region
        $region85: #{vit_forward.1} parent=39 // pred_check
          %p661 = pneg %p421
        $region86: #{vit_forward.1} parent=39 // pred_check_branch
          %663 = sbr.rel (%p661) target = $region88
        $region87: #{vit_forward.1} parent=39 // pred_region
          %p664 = scmp.lt.s32.totalorder %s31, 1
          %s665 = scalar_select %p664, %s31, 1
          %s666 = smul.addr %s665, 2
          %s667 = scalar_lea.vmem %s15, %s666
        $region88: #{vit_forward.1} parent=39 // pred_fallthru
          _
      $region40: #{vit_forward.1} parent=5 // pred_fallthru
        _
      %p668 = scmp.le.s32.totalorder 1, %s31
      %p669 = scmp.lt.s32.totalorder %s31, 3
      %p670 = pnand %p668, %p669
      %p671 = pneg %p670
      // Predicated region
      $region89: #{vit_forward.1} parent=5 // pred_check
        _
      $region90: #{vit_forward.1} parent=5 // pred_check_branch
        %673 = sbr.rel (%p670) target = $region92
      $region91: #{vit_forward.1} parent=5 // pred_region
        %s674 = ssub.s32 %s31, 1
        // Predicated region
        $region93: #{vit_forward.1} parent=91 // pred_check
          %p675 = pneg %p115
        $region94: #{vit_forward.1} parent=91 // pred_check_branch
          %677 = sbr.rel (%p675) target = $region96
        $region95: #{vit_forward.1} parent=91 // pred_region
          %679 = dma.done [#allocation5], 12288
        $region96: #{vit_forward.1} parent=91 // pred_fallthru
          _
        %s680 = sand.u32 %s36, 1
        %s681 = scalar_lea.sflag [#allocation7], %s680
        %s682 = sand.u32 %s180, 1
        %s683 = smul.addr %s682, 768
        %s684 = scalar_lea.vmem [#allocation6], %s683
        // Predicated region
        $region97: #{vit_forward.1} parent=91 // pred_check
          %p685 = pneg %p193
        $region98: #{vit_forward.1} parent=91 // pred_check_branch
          %687 = sbr.rel (%p685) target = $region100
        $region99: #{vit_forward.1} parent=91 // pred_region
          %689 = dma.done %s681, 12288
        $region100: #{vit_forward.1} parent=91 // pred_fallthru
          _
        %s690 = sand.u32 %s36, 1
        %s691 = scalar_lea.sflag [#allocation7], %s690
        %s692 = sand.u32 %s232, 1
        %s693 = smul.addr %s692, 256
        %s694 = scalar_lea.vmem [#allocation8], %s693
        // Predicated region
        $region101: #{vit_forward.1} parent=91 // pred_check
          %p695 = pneg %p245
        $region102: #{vit_forward.1} parent=91 // pred_check_branch
          %697 = sbr.rel (%p695) target = $region104
        $region103: #{vit_forward.1} parent=91 // pred_region
          %699 = dma.done %s691, 4096
        $region104: #{vit_forward.1} parent=91 // pred_fallthru
          _
        %s700 = sand.u32 %s388, 1
        %s701 = scalar_lea.sflag [#allocation10], %s700
        %s702 = sand.u32 %s388, 1
        %s703 = smul.addr %s702, 512
        %s704 = scalar_lea.vmem [#allocation9], %s703
        // Predicated region
        $region105: #{vit_forward.1} parent=91 // pred_check
          %p705 = pneg %p401
        $region106: #{vit_forward.1} parent=91 // pred_check_branch
          %707 = sbr.rel (%p705) target = $region108
        $region107: #{vit_forward.1} parent=91 // pred_region
          %709 = dma.done %s701, 8192
        $region108: #{vit_forward.1} parent=91 // pred_fallthru
          _
        %p710 = pneg %p52
        %p711 = pneg %p49
        %p712 = pneg %p73
        %p713 = pneg %p70
        %p714 = pneg %p94
        %p715 = pneg %p91
        %p716 = pneg %p115
        %p717 = pneg %p112
        %p718 = scmp.lt.s32.totalorder %s36, 1
        %s719 = scalar_select %p718, %s36, 1
        %s720 = smul.addr %s719, 2
        %s721 = scalar_lea.vmem %s4, %s720
        %p722 = pneg %p141
        %p723 = pneg %p138
        %p724 = scmp.lt.s32.totalorder %s36, 1
        %s725 = scalar_select %p724, %s36, 1
        %s726 = smul.addr %s725, 2
        %s727 = scalar_lea.vmem %s5, %s726
        %p728 = pneg %p167
        %p729 = pneg %p164
        %s730 = sand.u32 %s36, 1
        %s731 = scalar_lea.sflag [#allocation7], %s730
        %s732 = sand.u32 %s180, 1
        %s733 = smul.addr %s732, 768
        %s734 = scalar_lea.vmem [#allocation6], %s733
        %p735 = pneg %p193
        %p736 = pneg %p190
        %p737 = scmp.lt.s32.totalorder %s36, 1
        %s738 = scalar_select %p737, %s36, 1
        %s739 = smul.addr %s738, 6
        %s740 = scalar_lea.vmem %s7, %s739
        %p741 = pneg %p219
        %p742 = pneg %p216
        %s743 = sand.u32 %s36, 1
        %s744 = scalar_lea.sflag [#allocation7], %s743
        %s745 = sand.u32 %s232, 1
        %s746 = smul.addr %s745, 256
        %s747 = scalar_lea.vmem [#allocation8], %s746
        %p748 = pneg %p245
        %p749 = pneg %p242
        %p750 = scmp.lt.s32.totalorder %s36, 1
        %s751 = scalar_select %p750, %s36, 1
        %s752 = smul.addr %s751, 2
        %s753 = scalar_lea.vmem %s9, %s752
        %p754 = pneg %p271
        %p755 = pneg %p268
        %p756 = scmp.lt.s32.totalorder %s36, 1
        %s757 = scalar_select %p756, %s36, 1
        %s758 = smul.addr %s757, 2
        %s759 = scalar_lea.vmem %s10, %s758
        %p760 = pneg %p297
        %p761 = pneg %p294
        %p762 = scmp.lt.s32.totalorder %s36, 1
        %s763 = scalar_select %p762, %s36, 1
        %s764 = smul.addr %s763, 2
        %s765 = scalar_lea.vmem %s11, %s764
        %p766 = pneg %p323
        %p767 = pneg %p320
        %p768 = scmp.lt.s32.totalorder %s36, 1
        %s769 = scalar_select %p768, %s36, 1
        %s770 = smul.addr %s769, 128
        %s771 = smul.addr %s770, 4
        %s772 = scalar_lea.vmem %s12, %s771
        %p773 = pneg %p349
        %p774 = pneg %p346
        %p775 = scmp.lt.s32.totalorder %s36, 1
        %s776 = scalar_select %p775, %s36, 1
        %s777 = smul.addr %s776, 4
        %s778 = scalar_lea.vmem %s13, %s777
        %p779 = pneg %p375
        %p780 = pneg %p372
        %s781 = sand.u32 %s388, 1
        %s782 = scalar_lea.sflag [#allocation10], %s781
        %s783 = sand.u32 %s388, 1
        %s784 = smul.addr %s783, 512
        %s785 = scalar_lea.vmem [#allocation9], %s784
        %p786 = pneg %p401
        %p787 = pneg %p398
        %p788 = scmp.lt.s32.totalorder %s36, 1
        %s789 = scalar_select %p788, %s36, 1
        %s790 = smul.addr %s789, 2
        %s791 = scalar_lea.vmem %s15, %s790
        %p792 = pneg %p427
        %p793 = pneg %p424
        %p794 = pneg %p448
        %p795 = pneg %p445
        %p796 = pneg %p469
        %p797 = pneg %p466
        %p798 = pneg %p490
        %p799 = pneg %p487
        %p800 = scmp.lt.s32.totalorder %s36, 1
        %s801 = scalar_select %p800, %s36, 1
        %s802 = smul.addr %s801, 2
        %s803 = scalar_lea.vmem %s4, %s802
        %p804 = scmp.lt.s32.totalorder %s36, 1
        %s805 = scalar_select %p804, %s36, 1
        %s806 = smul.addr %s805, 2
        %s807 = scalar_lea.vmem %s5, %s806
        %p808 = scmp.lt.s32.totalorder %s36, 1
        %s809 = scalar_select %p808, %s36, 1
        %s810 = smul.addr %s809, 6
        %s811 = scalar_lea.vmem %s7, %s810
        %p812 = scmp.lt.s32.totalorder %s36, 1
        %s813 = scalar_select %p812, %s36, 1
        %s814 = smul.addr %s813, 2
        %s815 = scalar_lea.vmem %s9, %s814
        %p816 = scmp.lt.s32.totalorder %s36, 1
        %s817 = scalar_select %p816, %s36, 1
        %s818 = smul.addr %s817, 2
        %s819 = scalar_lea.vmem %s10, %s818
        %p820 = scmp.lt.s32.totalorder %s36, 1
        %s821 = scalar_select %p820, %s36, 1
        %s822 = smul.addr %s821, 2
        %s823 = scalar_lea.vmem %s11, %s822
        %p824 = scmp.lt.s32.totalorder %s36, 1
        %s825 = scalar_select %p824, %s36, 1
        %s826 = smul.addr %s825, 128
        %s827 = smul.addr %s826, 4
        %s828 = scalar_lea.vmem %s12, %s827
        %p829 = scmp.lt.s32.totalorder %s36, 1
        %s830 = scalar_select %p829, %s36, 1
        %s831 = smul.addr %s830, 4
        %s832 = scalar_lea.vmem %s13, %s831
        %p833 = scmp.lt.s32.totalorder %s36, 1
        %s834 = scalar_select %p833, %s36, 1
        %s835 = smul.addr %s834, 2
        %s836 = scalar_lea.vmem %s15, %s835
        %p838 = scmp.eq.s32.totalorder %s36, 0
        // Predicated region
        $region109: #{vit_forward.1} parent=91 // pred_check
          %p839 = pneg %p838
        $region110: #{vit_forward.1} parent=91 // pred_check_branch
          %841 = sbr.rel (%p839) target = $region112
        $region111: #{vit_forward.1} parent=91 // pred_region
          %v842 = vld [vmem:[%s0] sm:$0xff]
          %v843 = vld [vmem:[%s0 + $0x8] sm:$0xff]
          %v844 = vld [vmem:[%s0 + $0x10] sm:$0xff]
          %v845 = vld [vmem:[%s0 + $0x18] sm:$0xff]
          %v846 = vld [vmem:[%s0 + $0x20] sm:$0xff]
          %v847 = vld [vmem:[%s0 + $0x28] sm:$0xff]
          %v848 = vld [vmem:[#allocation4] sm:$0xff]
          %v849 = vld [vmem:[#allocation4 + $0x8] sm:$0xff]
          %v850 = vld [vmem:[#allocation4 + $0x10] sm:$0xff]
          %v851 = vld [vmem:[#allocation4 + $0x18] sm:$0xff]
          %v852 = vld [vmem:[#allocation4 + $0x20] sm:$0xff]
          %v853 = vld [vmem:[#allocation4 + $0x28] sm:$0xff]
          %v854 = vld [vmem:[#allocation4 + $0x30] sm:$0xff]
          %v855 = vld [vmem:[#allocation4 + $0x38] sm:$0xff]
          %v856 = vld [vmem:[#allocation4 + $0x40] sm:$0xff]
          %v857 = vld [vmem:[#allocation4 + $0x48] sm:$0xff]
          %v858 = vld [vmem:[#allocation4 + $0x50] sm:$0xff]
          %v859 = vld [vmem:[#allocation4 + $0x58] sm:$0xff]
          %v860 = vld [vmem:[#allocation4 + $0x60] sm:$0xff]
          %v861 = vld [vmem:[#allocation4 + $0x68] sm:$0xff]
          %v862 = vld [vmem:[#allocation4 + $0x70] sm:$0xff]
          %v863 = vld [vmem:[#allocation4 + $0x78] sm:$0xff]
          %v864 = vld [vmem:[#allocation4 + $0x80] sm:$0xff]
          %v865 = vld [vmem:[#allocation4 + $0x88] sm:$0xff]
          %v866 = vld [vmem:[#allocation4 + $0x90] sm:$0xff]
          %v867 = vld [vmem:[#allocation4 + $0x98] sm:$0xff]
          %v868 = vld [vmem:[#allocation4 + $0xa0] sm:$0xff]
          %v869 = vld [vmem:[#allocation4 + $0xa8] sm:$0xff]
          %v870 = vld [vmem:[#allocation4 + $0xb0] sm:$0xff]
          %v871 = vld [vmem:[#allocation4 + $0xb8] sm:$0xff]
          %v872 = vld [vmem:[#allocation4 + $0xc0] sm:$0xff]
          %v873 = vld [vmem:[#allocation4 + $0xc8] sm:$0xff]
          %v874 = vld [vmem:[#allocation4 + $0xd0] sm:$0xff]
          %v875 = vld [vmem:[#allocation4 + $0xd8] sm:$0xff]
          %v876 = vld [vmem:[#allocation4 + $0xe0] sm:$0xff]
          %v877 = vld [vmem:[#allocation4 + $0xe8] sm:$0xff]
          %v878 = vld [vmem:[#allocation4 + $0xf0] sm:$0xff]
          %v879 = vld [vmem:[#allocation4 + $0xf8] sm:$0xff]
          %v880 = vld [vmem:[#allocation4 + $0x100] sm:$0xff]
          %v881 = vld [vmem:[#allocation4 + $0x108] sm:$0xff]
          %v882 = vld [vmem:[#allocation4 + $0x110] sm:$0xff]
          %v883 = vld [vmem:[#allocation4 + $0x118] sm:$0xff]
          %v884 = vld [vmem:[#allocation4 + $0x120] sm:$0xff]
          %v885 = vld [vmem:[#allocation4 + $0x128] sm:$0xff]
          %v886 = vld [vmem:[#allocation4 + $0x130] sm:$0xff]
          %v887 = vld [vmem:[#allocation4 + $0x138] sm:$0xff]
          %v888 = vld [vmem:[#allocation4 + $0x140] sm:$0xff]
          %v889 = vld [vmem:[#allocation4 + $0x148] sm:$0xff]
          %v890 = vld [vmem:[#allocation4 + $0x150] sm:$0xff]
          %v891 = vld [vmem:[#allocation4 + $0x158] sm:$0xff]
          %v892 = vld [vmem:[#allocation4 + $0x160] sm:$0xff]
          %v893 = vld [vmem:[#allocation4 + $0x168] sm:$0xff]
          %v894 = vld [vmem:[#allocation4 + $0x170] sm:$0xff]
          %v895 = vld [vmem:[#allocation4 + $0x178] sm:$0xff]
          %v896 = vld [vmem:[#allocation4 + $0x180] sm:$0xff]
          %v897 = vld [vmem:[#allocation4 + $0x188] sm:$0xff]
          %v898 = vld [vmem:[#allocation4 + $0x190] sm:$0xff]
          %v899 = vld [vmem:[#allocation4 + $0x198] sm:$0xff]
          %v900 = vld [vmem:[#allocation4 + $0x1a0] sm:$0xff]
          %v901 = vld [vmem:[#allocation4 + $0x1a8] sm:$0xff]
          %v902 = vld [vmem:[#allocation4 + $0x1b0] sm:$0xff]
          %v903 = vld [vmem:[#allocation4 + $0x1b8] sm:$0xff]
          %v904 = vld [vmem:[#allocation4 + $0x1c0] sm:$0xff]
          %v905 = vld [vmem:[#allocation4 + $0x1c8] sm:$0xff]
          %v906 = vld [vmem:[#allocation4 + $0x1d0] sm:$0xff]
          %v907 = vld [vmem:[#allocation4 + $0x1d8] sm:$0xff]
          %v908 = vld [vmem:[#allocation4 + $0x1e0] sm:$0xff]
          %v909 = vld [vmem:[#allocation4 + $0x1e8] sm:$0xff]
          %v910 = vld [vmem:[#allocation4 + $0x1f0] sm:$0xff]
          %v911 = vld [vmem:[#allocation4 + $0x1f8] sm:$0xff]
          %v912 = vld [vmem:[#allocation4 + $0x200] sm:$0xff]
          %v913 = vld [vmem:[#allocation4 + $0x208] sm:$0xff]
          %v914 = vld [vmem:[#allocation4 + $0x210] sm:$0xff]
          %v915 = vld [vmem:[#allocation4 + $0x218] sm:$0xff]
          %v916 = vld [vmem:[#allocation4 + $0x220] sm:$0xff]
          %v917 = vld [vmem:[#allocation4 + $0x228] sm:$0xff]
          %v918 = vld [vmem:[#allocation4 + $0x230] sm:$0xff]
          %v919 = vld [vmem:[#allocation4 + $0x238] sm:$0xff]
          %v920 = vld [vmem:[#allocation4 + $0x240] sm:$0xff]
          %v921 = vld [vmem:[#allocation4 + $0x248] sm:$0xff]
          %v922 = vld [vmem:[#allocation4 + $0x250] sm:$0xff]
          %v923 = vld [vmem:[#allocation4 + $0x258] sm:$0xff]
          %v924 = vld [vmem:[#allocation4 + $0x260] sm:$0xff]
          %v925 = vld [vmem:[#allocation4 + $0x268] sm:$0xff]
          %v926 = vld [vmem:[#allocation4 + $0x270] sm:$0xff]
          %v927 = vld [vmem:[#allocation4 + $0x278] sm:$0xff]
          %v928 = vld [vmem:[#allocation4 + $0x280] sm:$0xff]
          %v929 = vld [vmem:[#allocation4 + $0x288] sm:$0xff]
          %v930 = vld [vmem:[#allocation4 + $0x290] sm:$0xff]
          %v931 = vld [vmem:[#allocation4 + $0x298] sm:$0xff]
          %v932 = vld [vmem:[#allocation4 + $0x2a0] sm:$0xff]
          %v933 = vld [vmem:[#allocation4 + $0x2a8] sm:$0xff]
          %v934 = vld [vmem:[#allocation4 + $0x2b0] sm:$0xff]
          %v935 = vld [vmem:[#allocation4 + $0x2b8] sm:$0xff]
          %v936 = vld [vmem:[#allocation4 + $0x2c0] sm:$0xff]
          %v937 = vld [vmem:[#allocation4 + $0x2c8] sm:$0xff]
          %v938 = vld [vmem:[#allocation4 + $0x2d0] sm:$0xff]
          %v939 = vld [vmem:[#allocation4 + $0x2d8] sm:$0xff]
          %v940 = vld [vmem:[#allocation4 + $0x2e0] sm:$0xff]
          %v941 = vld [vmem:[#allocation4 + $0x2e8] sm:$0xff]
          %v942 = vld [vmem:[#allocation4 + $0x2f0] sm:$0xff]
          %v943 = vld [vmem:[#allocation4 + $0x2f8] sm:$0xff]
          %v944 = vld [vmem:[%s1] sm:$0xff]
          %v945 = vld [vmem:[%s1 + $0x8] sm:$0xff]
          %v946 = vld [vmem:[%s1 + $0x10] sm:$0xff]
          %v947 = vld [vmem:[%s1 + $0x18] sm:$0xff]
          %v954 = vunpack.c.l.b16 %v842
          %v955 = vunpack.c.h.b16 %v842
          %v956 = vunpack.c.l.b16 %v843
          %v957 = vunpack.c.h.b16 %v843
          %v958 = vunpack.c.l.b16 %v844
          %v959 = vunpack.c.h.b16 %v844
          %v960 = vunpack.c.l.b16 %v845
          %v961 = vunpack.c.h.b16 %v845
          %v962 = vunpack.c.l.b16 %v846
          %v963 = vunpack.c.h.b16 %v846
          %v964 = vunpack.c.l.b16 %v847
          %v965 = vunpack.c.h.b16 %v847
          %v966 = vpack.c.b16 %v960, %v954
          %v967 = vpack.c.b16 %v961, %v955
          %v968 = vpack.c.b16 %v962, %v956
          %v969 = vpack.c.b16 %v963, %v957
          %v970 = vpack.c.b16 %v964, %v958
          %v971 = vpack.c.b16 %v965, %v959
          %v1074 = vunpack.c.l.b16 %v848
          %v1075 = vunpack.c.h.b16 %v848
          %v1076 = vunpack.c.l.b16 %v849
          %v1077 = vunpack.c.h.b16 %v849
          %v1078 = vunpack.c.l.b16 %v850
          %v1079 = vunpack.c.h.b16 %v850
          %v1080 = vunpack.c.l.b16 %v851
          %v1081 = vunpack.c.h.b16 %v851
          %v1082 = vunpack.c.l.b16 %v852
          %v1083 = vunpack.c.h.b16 %v852
          %v1084 = vunpack.c.l.b16 %v853
          %v1085 = vunpack.c.h.b16 %v853
          %v1086 = vunpack.c.l.b16 %v854
          %v1087 = vunpack.c.h.b16 %v854
          %v1088 = vunpack.c.l.b16 %v855
          %v1089 = vunpack.c.h.b16 %v855
          %v1090 = vunpack.c.l.b16 %v856
          %v1091 = vunpack.c.h.b16 %v856
          %v1092 = vunpack.c.l.b16 %v857
          %v1093 = vunpack.c.h.b16 %v857
          %v1094 = vunpack.c.l.b16 %v858
          %v1095 = vunpack.c.h.b16 %v858
          %v1096 = vunpack.c.l.b16 %v859
          %v1097 = vunpack.c.h.b16 %v859
          %v1098 = vunpack.c.l.b16 %v860
          %v1099 = vunpack.c.h.b16 %v860
          %v1100 = vunpack.c.l.b16 %v861
          %v1101 = vunpack.c.h.b16 %v861
          %v1102 = vunpack.c.l.b16 %v862
          %v1103 = vunpack.c.h.b16 %v862
          %v1104 = vunpack.c.l.b16 %v863
          %v1105 = vunpack.c.h.b16 %v863
          %v1106 = vunpack.c.l.b16 %v864
          %v1107 = vunpack.c.h.b16 %v864
          %v1108 = vunpack.c.l.b16 %v865
          %v1109 = vunpack.c.h.b16 %v865
          %v1110 = vunpack.c.l.b16 %v866
          %v1111 = vunpack.c.h.b16 %v866
          %v1112 = vunpack.c.l.b16 %v867
          %v1113 = vunpack.c.h.b16 %v867
          %v1114 = vunpack.c.l.b16 %v868
          %v1115 = vunpack.c.h.b16 %v868
          %v1116 = vunpack.c.l.b16 %v869
          %v1117 = vunpack.c.h.b16 %v869
          %v1118 = vunpack.c.l.b16 %v870
          %v1119 = vunpack.c.h.b16 %v870
          %v1120 = vunpack.c.l.b16 %v871
          %v1121 = vunpack.c.h.b16 %v871
          %v1122 = vunpack.c.l.b16 %v872
          %v1123 = vunpack.c.h.b16 %v872
          %v1124 = vunpack.c.l.b16 %v873
          %v1125 = vunpack.c.h.b16 %v873
          %v1126 = vunpack.c.l.b16 %v874
          %v1127 = vunpack.c.h.b16 %v874
          %v1128 = vunpack.c.l.b16 %v875
          %v1129 = vunpack.c.h.b16 %v875
          %v1130 = vunpack.c.l.b16 %v876
          %v1131 = vunpack.c.h.b16 %v876
          %v1132 = vunpack.c.l.b16 %v877
          %v1133 = vunpack.c.h.b16 %v877
          %v1134 = vunpack.c.l.b16 %v878
          %v1135 = vunpack.c.h.b16 %v878
          %v1136 = vunpack.c.l.b16 %v879
          %v1137 = vunpack.c.h.b16 %v879
          %v1138 = vunpack.c.l.b16 %v880
          %v1139 = vunpack.c.h.b16 %v880
          %v1140 = vunpack.c.l.b16 %v881
          %v1141 = vunpack.c.h.b16 %v881
          %v1142 = vunpack.c.l.b16 %v882
          %v1143 = vunpack.c.h.b16 %v882
          %v1144 = vunpack.c.l.b16 %v883
          %v1145 = vunpack.c.h.b16 %v883
          %v1146 = vunpack.c.l.b16 %v884
          %v1147 = vunpack.c.h.b16 %v884
          %v1148 = vunpack.c.l.b16 %v885
          %v1149 = vunpack.c.h.b16 %v885
          %v1150 = vunpack.c.l.b16 %v886
          %v1151 = vunpack.c.h.b16 %v886
          %v1152 = vunpack.c.l.b16 %v887
          %v1153 = vunpack.c.h.b16 %v887
          %v1154 = vunpack.c.l.b16 %v888
          %v1155 = vunpack.c.h.b16 %v888
          %v1156 = vunpack.c.l.b16 %v889
          %v1157 = vunpack.c.h.b16 %v889
          %v1158 = vunpack.c.l.b16 %v890
          %v1159 = vunpack.c.h.b16 %v890
          %v1160 = vunpack.c.l.b16 %v891
          %v1161 = vunpack.c.h.b16 %v891
          %v1162 = vunpack.c.l.b16 %v892
          %v1163 = vunpack.c.h.b16 %v892
          %v1164 = vunpack.c.l.b16 %v893
          %v1165 = vunpack.c.h.b16 %v893
          %v1166 = vunpack.c.l.b16 %v894
          %v1167 = vunpack.c.h.b16 %v894
          %v1168 = vunpack.c.l.b16 %v895
          %v1169 = vunpack.c.h.b16 %v895
          %v1170 = vunpack.c.l.b16 %v896
          %v1171 = vunpack.c.h.b16 %v896
          %v1172 = vunpack.c.l.b16 %v897
          %v1173 = vunpack.c.h.b16 %v897
          %v1174 = vunpack.c.l.b16 %v898
          %v1175 = vunpack.c.h.b16 %v898
          %v1176 = vunpack.c.l.b16 %v899
          %v1177 = vunpack.c.h.b16 %v899
          %v1178 = vunpack.c.l.b16 %v900
          %v1179 = vunpack.c.h.b16 %v900
          %v1180 = vunpack.c.l.b16 %v901
          %v1181 = vunpack.c.h.b16 %v901
          %v1182 = vunpack.c.l.b16 %v902
          %v1183 = vunpack.c.h.b16 %v902
          %v1184 = vunpack.c.l.b16 %v903
          %v1185 = vunpack.c.h.b16 %v903
          %v1186 = vunpack.c.l.b16 %v904
          %v1187 = vunpack.c.h.b16 %v904
          %v1188 = vunpack.c.l.b16 %v905
          %v1189 = vunpack.c.h.b16 %v905
          %v1190 = vunpack.c.l.b16 %v906
          %v1191 = vunpack.c.h.b16 %v906
          %v1192 = vunpack.c.l.b16 %v907
          %v1193 = vunpack.c.h.b16 %v907
          %v1194 = vunpack.c.l.b16 %v908
          %v1195 = vunpack.c.h.b16 %v908
          %v1196 = vunpack.c.l.b16 %v909
          %v1197 = vunpack.c.h.b16 %v909
          %v1198 = vunpack.c.l.b16 %v910
          %v1199 = vunpack.c.h.b16 %v910
          %v1200 = vunpack.c.l.b16 %v911
          %v1201 = vunpack.c.h.b16 %v911
          %v1202 = vunpack.c.l.b16 %v912
          %v1203 = vunpack.c.h.b16 %v912
          %v1204 = vunpack.c.l.b16 %v913
          %v1205 = vunpack.c.h.b16 %v913
          %v1206 = vunpack.c.l.b16 %v914
          %v1207 = vunpack.c.h.b16 %v914
          %v1208 = vunpack.c.l.b16 %v915
          %v1209 = vunpack.c.h.b16 %v915
          %v1210 = vunpack.c.l.b16 %v916
          %v1211 = vunpack.c.h.b16 %v916
          %v1212 = vunpack.c.l.b16 %v917
          %v1213 = vunpack.c.h.b16 %v917
          %v1214 = vunpack.c.l.b16 %v918
          %v1215 = vunpack.c.h.b16 %v918
          %v1216 = vunpack.c.l.b16 %v919
          %v1217 = vunpack.c.h.b16 %v919
          %v1218 = vunpack.c.l.b16 %v920
          %v1219 = vunpack.c.h.b16 %v920
          %v1220 = vunpack.c.l.b16 %v921
          %v1221 = vunpack.c.h.b16 %v921
          %v1222 = vunpack.c.l.b16 %v922
          %v1223 = vunpack.c.h.b16 %v922
          %v1224 = vunpack.c.l.b16 %v923
          %v1225 = vunpack.c.h.b16 %v923
          %v1226 = vunpack.c.l.b16 %v924
          %v1227 = vunpack.c.h.b16 %v924
          %v1228 = vunpack.c.l.b16 %v925
          %v1229 = vunpack.c.h.b16 %v925
          %v1230 = vunpack.c.l.b16 %v926
          %v1231 = vunpack.c.h.b16 %v926
          %v1232 = vunpack.c.l.b16 %v927
          %v1233 = vunpack.c.h.b16 %v927
          %v1234 = vunpack.c.l.b16 %v928
          %v1235 = vunpack.c.h.b16 %v928
          %v1236 = vunpack.c.l.b16 %v929
          %v1237 = vunpack.c.h.b16 %v929
          %v1238 = vunpack.c.l.b16 %v930
          %v1239 = vunpack.c.h.b16 %v930
          %v1240 = vunpack.c.l.b16 %v931
          %v1241 = vunpack.c.h.b16 %v931
          %v1242 = vunpack.c.l.b16 %v932
          %v1243 = vunpack.c.h.b16 %v932
          %v1244 = vunpack.c.l.b16 %v933
          %v1245 = vunpack.c.h.b16 %v933
          %v1246 = vunpack.c.l.b16 %v934
          %v1247 = vunpack.c.h.b16 %v934
          %v1248 = vunpack.c.l.b16 %v935
          %v1249 = vunpack.c.h.b16 %v935
          %v1250 = vunpack.c.l.b16 %v936
          %v1251 = vunpack.c.h.b16 %v936
          %v1252 = vunpack.c.l.b16 %v937
          %v1253 = vunpack.c.h.b16 %v937
          %v1254 = vunpack.c.l.b16 %v938
          %v1255 = vunpack.c.h.b16 %v938
          %v1256 = vunpack.c.l.b16 %v939
          %v1257 = vunpack.c.h.b16 %v939
          %v1258 = vunpack.c.l.b16 %v940
          %v1259 = vunpack.c.h.b16 %v940
          %v1260 = vunpack.c.l.b16 %v941
          %v1261 = vunpack.c.h.b16 %v941
          %v1262 = vunpack.c.l.b16 %v942
          %v1263 = vunpack.c.h.b16 %v942
          %v1264 = vunpack.c.l.b16 %v943
          %v1265 = vunpack.c.h.b16 %v943
          %v1266 = vpack.c.b16 %v1076, %v1074
          %v1267 = vpack.c.b16 %v1077, %v1075
          %v1268 = vpack.c.b16 %v1080, %v1078
          %v1269 = vpack.c.b16 %v1081, %v1079
          %v1270 = vpack.c.b16 %v1084, %v1082
          %v1271 = vpack.c.b16 %v1085, %v1083
          %v1272 = vpack.c.b16 %v1088, %v1086
          %v1273 = vpack.c.b16 %v1089, %v1087
          %v1274 = vpack.c.b16 %v1092, %v1090
          %v1275 = vpack.c.b16 %v1093, %v1091
          %v1276 = vpack.c.b16 %v1096, %v1094
          %v1277 = vpack.c.b16 %v1097, %v1095
          %v1278 = vpack.c.b16 %v1100, %v1098
          %v1279 = vpack.c.b16 %v1101, %v1099
          %v1280 = vpack.c.b16 %v1104, %v1102
          %v1281 = vpack.c.b16 %v1105, %v1103
          %v1282 = vpack.c.b16 %v1108, %v1106
          %v1283 = vpack.c.b16 %v1109, %v1107
          %v1284 = vpack.c.b16 %v1112, %v1110
          %v1285 = vpack.c.b16 %v1113, %v1111
          %v1286 = vpack.c.b16 %v1116, %v1114
          %v1287 = vpack.c.b16 %v1117, %v1115
          %v1288 = vpack.c.b16 %v1120, %v1118
          %v1289 = vpack.c.b16 %v1121, %v1119
          %v1290 = vpack.c.b16 %v1124, %v1122
          %v1291 = vpack.c.b16 %v1125, %v1123
          %v1292 = vpack.c.b16 %v1128, %v1126
          %v1293 = vpack.c.b16 %v1129, %v1127
          %v1294 = vpack.c.b16 %v1132, %v1130
          %v1295 = vpack.c.b16 %v1133, %v1131
          %v1296 = vpack.c.b16 %v1136, %v1134
          %v1297 = vpack.c.b16 %v1137, %v1135
          %v1298 = vpack.c.b16 %v1140, %v1138
          %v1299 = vpack.c.b16 %v1141, %v1139
          %v1300 = vpack.c.b16 %v1144, %v1142
          %v1301 = vpack.c.b16 %v1145, %v1143
          %v1302 = vpack.c.b16 %v1148, %v1146
          %v1303 = vpack.c.b16 %v1149, %v1147
          %v1304 = vpack.c.b16 %v1152, %v1150
          %v1305 = vpack.c.b16 %v1153, %v1151
          %v1306 = vpack.c.b16 %v1156, %v1154
          %v1307 = vpack.c.b16 %v1157, %v1155
          %v1308 = vpack.c.b16 %v1160, %v1158
          %v1309 = vpack.c.b16 %v1161, %v1159
          %v1310 = vpack.c.b16 %v1164, %v1162
          %v1311 = vpack.c.b16 %v1165, %v1163
          %v1312 = vpack.c.b16 %v1168, %v1166
          %v1313 = vpack.c.b16 %v1169, %v1167
          %v1314 = vpack.c.b16 %v1172, %v1170
          %v1315 = vpack.c.b16 %v1173, %v1171
          %v1316 = vpack.c.b16 %v1176, %v1174
          %v1317 = vpack.c.b16 %v1177, %v1175
          %v1318 = vpack.c.b16 %v1180, %v1178
          %v1319 = vpack.c.b16 %v1181, %v1179
          %v1320 = vpack.c.b16 %v1184, %v1182
          %v1321 = vpack.c.b16 %v1185, %v1183
          %v1322 = vpack.c.b16 %v1188, %v1186
          %v1323 = vpack.c.b16 %v1189, %v1187
          %v1324 = vpack.c.b16 %v1192, %v1190
          %v1325 = vpack.c.b16 %v1193, %v1191
          %v1326 = vpack.c.b16 %v1196, %v1194
          %v1327 = vpack.c.b16 %v1197, %v1195
          %v1328 = vpack.c.b16 %v1200, %v1198
          %v1329 = vpack.c.b16 %v1201, %v1199
          %v1330 = vpack.c.b16 %v1204, %v1202
          %v1331 = vpack.c.b16 %v1205, %v1203
          %v1332 = vpack.c.b16 %v1208, %v1206
          %v1333 = vpack.c.b16 %v1209, %v1207
          %v1334 = vpack.c.b16 %v1212, %v1210
          %v1335 = vpack.c.b16 %v1213, %v1211
          %v1336 = vpack.c.b16 %v1216, %v1214
          %v1337 = vpack.c.b16 %v1217, %v1215
          %v1338 = vpack.c.b16 %v1220, %v1218
          %v1339 = vpack.c.b16 %v1221, %v1219
          %v1340 = vpack.c.b16 %v1224, %v1222
          %v1341 = vpack.c.b16 %v1225, %v1223
          %v1342 = vpack.c.b16 %v1228, %v1226
          %v1343 = vpack.c.b16 %v1229, %v1227
          %v1344 = vpack.c.b16 %v1232, %v1230
          %v1345 = vpack.c.b16 %v1233, %v1231
          %v1346 = vpack.c.b16 %v1236, %v1234
          %v1347 = vpack.c.b16 %v1237, %v1235
          %v1348 = vpack.c.b16 %v1240, %v1238
          %v1349 = vpack.c.b16 %v1241, %v1239
          %v1350 = vpack.c.b16 %v1244, %v1242
          %v1351 = vpack.c.b16 %v1245, %v1243
          %v1352 = vpack.c.b16 %v1248, %v1246
          %v1353 = vpack.c.b16 %v1249, %v1247
          %v1354 = vpack.c.b16 %v1252, %v1250
          %v1355 = vpack.c.b16 %v1253, %v1251
          %v1356 = vpack.c.b16 %v1256, %v1254
          %v1357 = vpack.c.b16 %v1257, %v1255
          %v1358 = vpack.c.b16 %v1260, %v1258
          %v1359 = vpack.c.b16 %v1261, %v1259
          %v1360 = vpack.c.b16 %v1264, %v1262
          %v1361 = vpack.c.b16 %v1265, %v1263
          %1458 = vmatpush.bf16.msra.mxu0 %v1280
          %1459 = vmatpush.bf16.msra.mxu0 %v1278
          %1460 = vmatpush.bf16.msra.mxu0 %v1276
          %1461 = vmatpush.bf16.msra.mxu0 %v1274
          %1462 = vmatpush.bf16.msra.mxu0 %v1272
          %1463 = vmatpush.bf16.msra.mxu0 %v1270
          %1464 = vmatpush.bf16.msra.mxu0 %v1268
          %1465 = vmatpush.bf16.msra.mxu0 %v1266
          %1466 = vmatmul.bf16.gmra.mxu0 %v966
          %v1467 = vpop.f32.mrf.mxu0
          %v1468 = vadd.f32 %v944, %v1467
          %v1469 = vpop.f32.mrf.mxu0
          %v1470 = vadd.f32 %v946, %v1469
          %1471 = vdwg.mxu0
          %1472 = vmatpush.bf16.msra.mxu0 %v1296
          %1473 = vmatpush.bf16.msra.mxu0 %v1294
          %1474 = vmatpush.bf16.msra.mxu0 %v1292
          %1475 = vmatpush.bf16.msra.mxu0 %v1290
          %1476 = vmatpush.bf16.msra.mxu0 %v1288
          %1477 = vmatpush.bf16.msra.mxu0 %v1286
          %1478 = vmatpush.bf16.msra.mxu0 %v1284
          %1479 = vmatpush.bf16.msra.mxu0 %v1282
          %1480 = vmatmul.bf16.gmra.mxu0 %v967
          %v1481 = vpop.f32.mrf.mxu0
          %v1482 = vadd.f32 %v1468, %v1481
          %v1483 = vpop.f32.mrf.mxu0
          %v1484 = vadd.f32 %v1470, %v1483
          %1485 = vdwg.mxu0
          %1486 = vmatpush.bf16.msra.mxu0 %v1312
          %1487 = vmatpush.bf16.msra.mxu0 %v1310
          %1488 = vmatpush.bf16.msra.mxu0 %v1308
          %1489 = vmatpush.bf16.msra.mxu0 %v1306
          %1490 = vmatpush.bf16.msra.mxu0 %v1304
          %1491 = vmatpush.bf16.msra.mxu0 %v1302
          %1492 = vmatpush.bf16.msra.mxu0 %v1300
          %1493 = vmatpush.bf16.msra.mxu0 %v1298
          %1494 = vmatmul.bf16.gmra.mxu0 %v968
          %v1495 = vpop.f32.mrf.mxu0
          %v1496 = vadd.f32 %v1482, %v1495
          %v1497 = vpop.f32.mrf.mxu0
          %v1498 = vadd.f32 %v1484, %v1497
          %1499 = vdwg.mxu0
          %1500 = vmatpush.bf16.msra.mxu0 %v1328
          %1501 = vmatpush.bf16.msra.mxu0 %v1326
          %1502 = vmatpush.bf16.msra.mxu0 %v1324
          %1503 = vmatpush.bf16.msra.mxu0 %v1322
          %1504 = vmatpush.bf16.msra.mxu0 %v1320
          %1505 = vmatpush.bf16.msra.mxu0 %v1318
          %1506 = vmatpush.bf16.msra.mxu0 %v1316
          %1507 = vmatpush.bf16.msra.mxu0 %v1314
          %1508 = vmatmul.bf16.gmra.mxu0 %v969
          %v1509 = vpop.f32.mrf.mxu0
          %v1510 = vadd.f32 %v1496, %v1509
          %v1511 = vpop.f32.mrf.mxu0
          %v1512 = vadd.f32 %v1498, %v1511
          %1513 = vdwg.mxu0
          %1514 = vmatpush.bf16.msra.mxu0 %v1344
          %1515 = vmatpush.bf16.msra.mxu0 %v1342
          %1516 = vmatpush.bf16.msra.mxu0 %v1340
          %1517 = vmatpush.bf16.msra.mxu0 %v1338
          %1518 = vmatpush.bf16.msra.mxu0 %v1336
          %1519 = vmatpush.bf16.msra.mxu0 %v1334
          %1520 = vmatpush.bf16.msra.mxu0 %v1332
          %1521 = vmatpush.bf16.msra.mxu0 %v1330
          %1522 = vmatmul.bf16.gmra.mxu0 %v970
          %v1523 = vpop.f32.mrf.mxu0
          %v1524 = vadd.f32 %v1510, %v1523
          %v1525 = vpop.f32.mrf.mxu0
          %v1526 = vadd.f32 %v1512, %v1525
          %1527 = vdwg.mxu0
          %1528 = vmatpush.bf16.msra.mxu0 %v1360
          %1529 = vmatpush.bf16.msra.mxu0 %v1358
          %1530 = vmatpush.bf16.msra.mxu0 %v1356
          %1531 = vmatpush.bf16.msra.mxu0 %v1354
          %1532 = vmatpush.bf16.msra.mxu0 %v1352
          %1533 = vmatpush.bf16.msra.mxu0 %v1350
          %1534 = vmatpush.bf16.msra.mxu0 %v1348
          %1535 = vmatpush.bf16.msra.mxu0 %v1346
          %1536 = vmatmul.bf16.gmra.mxu0 %v971
          %v1537 = vpop.f32.mrf.mxu0
          %v1538 = vadd.f32 %v1524, %v1537
          %v1539 = vpop.f32.mrf.mxu0
          %v1540 = vadd.f32 %v1526, %v1539
          %1541 = vdwg.mxu0
          %1542 = vmatpush.bf16.msra.mxu0 %v1281
          %1543 = vmatpush.bf16.msra.mxu0 %v1279
          %1544 = vmatpush.bf16.msra.mxu0 %v1277
          %1545 = vmatpush.bf16.msra.mxu0 %v1275
          %1546 = vmatpush.bf16.msra.mxu0 %v1273
          %1547 = vmatpush.bf16.msra.mxu0 %v1271
          %1548 = vmatpush.bf16.msra.mxu0 %v1269
          %1549 = vmatpush.bf16.msra.mxu0 %v1267
          %1550 = vmatmul.bf16.gmra.mxu0 %v966
          %v1551 = vpop.f32.mrf.mxu0
          %v1552 = vadd.f32 %v945, %v1551
          %v1553 = vpop.f32.mrf.mxu0
          %v1554 = vadd.f32 %v947, %v1553
          %1555 = vdwg.mxu0
          %1556 = vmatpush.bf16.msra.mxu0 %v1297
          %1557 = vmatpush.bf16.msra.mxu0 %v1295
          %1558 = vmatpush.bf16.msra.mxu0 %v1293
          %1559 = vmatpush.bf16.msra.mxu0 %v1291
          %1560 = vmatpush.bf16.msra.mxu0 %v1289
          %1561 = vmatpush.bf16.msra.mxu0 %v1287
          %1562 = vmatpush.bf16.msra.mxu0 %v1285
          %1563 = vmatpush.bf16.msra.mxu0 %v1283
          %1564 = vmatmul.bf16.gmra.mxu0 %v967
          %v1565 = vpop.f32.mrf.mxu0
          %v1566 = vadd.f32 %v1552, %v1565
          %v1567 = vpop.f32.mrf.mxu0
          %v1568 = vadd.f32 %v1554, %v1567
          %1569 = vdwg.mxu0
          %1570 = vmatpush.bf16.msra.mxu0 %v1313
          %1571 = vmatpush.bf16.msra.mxu0 %v1311
          %1572 = vmatpush.bf16.msra.mxu0 %v1309
          %1573 = vmatpush.bf16.msra.mxu0 %v1307
          %1574 = vmatpush.bf16.msra.mxu0 %v1305
          %1575 = vmatpush.bf16.msra.mxu0 %v1303
          %1576 = vmatpush.bf16.msra.mxu0 %v1301
          %1577 = vmatpush.bf16.msra.mxu0 %v1299
          %1578 = vmatmul.bf16.gmra.mxu0 %v968
          %v1579 = vpop.f32.mrf.mxu0
          %v1580 = vadd.f32 %v1566, %v1579
          %v1581 = vpop.f32.mrf.mxu0
          %v1582 = vadd.f32 %v1568, %v1581
          %1583 = vdwg.mxu0
          %1584 = vmatpush.bf16.msra.mxu0 %v1329
          %1585 = vmatpush.bf16.msra.mxu0 %v1327
          %1586 = vmatpush.bf16.msra.mxu0 %v1325
          %1587 = vmatpush.bf16.msra.mxu0 %v1323
          %1588 = vmatpush.bf16.msra.mxu0 %v1321
          %1589 = vmatpush.bf16.msra.mxu0 %v1319
          %1590 = vmatpush.bf16.msra.mxu0 %v1317
          %1591 = vmatpush.bf16.msra.mxu0 %v1315
          %1592 = vmatmul.bf16.gmra.mxu0 %v969
          %v1593 = vpop.f32.mrf.mxu0
          %v1594 = vadd.f32 %v1580, %v1593
          %v1595 = vpop.f32.mrf.mxu0
          %v1596 = vadd.f32 %v1582, %v1595
          %1597 = vdwg.mxu0
          %1598 = vmatpush.bf16.msra.mxu0 %v1345
          %1599 = vmatpush.bf16.msra.mxu0 %v1343
          %1600 = vmatpush.bf16.msra.mxu0 %v1341
          %1601 = vmatpush.bf16.msra.mxu0 %v1339
          %1602 = vmatpush.bf16.msra.mxu0 %v1337
          %1603 = vmatpush.bf16.msra.mxu0 %v1335
          %1604 = vmatpush.bf16.msra.mxu0 %v1333
          %1605 = vmatpush.bf16.msra.mxu0 %v1331
          %1606 = vmatmul.bf16.gmra.mxu0 %v970
          %v1607 = vpop.f32.mrf.mxu0
          %v1608 = vadd.f32 %v1594, %v1607
          %v1609 = vpop.f32.mrf.mxu0
          %v1610 = vadd.f32 %v1596, %v1609
          %1611 = vdwg.mxu0
          %1612 = vmatpush.bf16.msra.mxu0 %v1361
          %1613 = vmatpush.bf16.msra.mxu0 %v1359
          %1614 = vmatpush.bf16.msra.mxu0 %v1357
          %1615 = vmatpush.bf16.msra.mxu0 %v1355
          %1616 = vmatpush.bf16.msra.mxu0 %v1353
          %1617 = vmatpush.bf16.msra.mxu0 %v1351
          %1618 = vmatpush.bf16.msra.mxu0 %v1349
          %1619 = vmatpush.bf16.msra.mxu0 %v1347
          %1620 = vmatmul.bf16.gmra.mxu0 %v971
          %v1621 = vpop.f32.mrf.mxu0
          %v1622 = vadd.f32 %v1608, %v1621
          %v1623 = vpop.f32.mrf.mxu0
          %v1624 = vadd.f32 %v1610, %v1623
          %1625 = vdwg.mxu0
          %1626 = vst [vmem:[#allocation2] sm:$0xff] %v1538
          %1627 = vst [vmem:[#allocation2 + $0x8] sm:$0xff] %v1622
          %1628 = vst [vmem:[#allocation2 + $0x10] sm:$0xff] %v1540
          %1629 = vst [vmem:[#allocation2 + $0x18] sm:$0xff] %v1624
        $region112: #{vit_forward.1} parent=91 // pred_fallthru
          _
        %v1630 = vld [vmem:[#allocation2] sm:$0xff]
        %v1631 = vld [vmem:[#allocation2 + $0x8] sm:$0xff]
        %v1632 = vld [vmem:[#allocation2 + $0x10] sm:$0xff]
        %v1633 = vld [vmem:[#allocation2 + $0x18] sm:$0xff]
        %v1634 = vld [vmem:[%s2] sm:$0xff]
        %v1635 = vld [vmem:[%s2 + $0x8] sm:$0xff]
        %v1636 = vld [vmem:[%s803] sm:$0x3]
        %v1637 = vld [vmem:[%s807] sm:$0x3]
        %v1638 = vadd.f32 %v1630, %v1631
        %1639 = vadd.xlane.f32.xlu0 %v1638
        %v1640 = vpop.xlane.xlu0 %1639
        %v1641 = vadd.f32 %v1632, %v1633
        %1642 = vadd.xlane.f32.xlu0 %v1641
        %v1643 = vpop.xlane.xlu0 %1642
        %v1644 = vrcp.pop 256.0
        %v1645 = vmul.f32 256.0, %v1644
        %v1646 = vsub.f32 1.0, %v1645
        %v1647 = vmul.f32 %v1644, %v1646
        %v1648 = vadd.f32 %v1644, %v1647
        %vm1649 = vweird.f32 %v1644
        %v1650 = vsel %vm1649, %v1644, %v1648
        %v1651 = vmul.f32 %v1640, %v1650
        %v1652 = vmul.f32 %v1643, %v1650
        %v1653 = vsub.f32 %v1630, %v1651
        %v1654 = vsub.f32 %v1631, %v1651
        %v1655 = vsub.f32 %v1632, %v1652
        %v1656 = vsub.f32 %v1633, %v1652
        %v1657 = vmul.f32 %v1653, %v1653
        %v1658 = vmul.f32 %v1654, %v1654
        %v1659 = vmul.f32 %v1655, %v1655
        %v1660 = vmul.f32 %v1656, %v1656
        %v1661 = vadd.f32 %v1657, %v1658
        %1662 = vadd.xlane.f32.xlu0 %v1661
        %v1663 = vpop.xlane.xlu0 %1662
        %v1664 = vadd.f32 %v1659, %v1660
        %1665 = vadd.xlane.f32.xlu0 %v1664
        %v1666 = vpop.xlane.xlu0 %1665
        %v1667 = vmul.f32 %v1663, %v1650
        %v1668 = vmul.f32 %v1666, %v1650
        %v1669 = vadd.f32 %v1667, 1e-06
        %v1670 = vadd.f32 %v1668, 1e-06
        %v1671 = vrsqrt.pop %v1669
        %v1672 = vmul.f32 %v1671, %v1669
        %v1673 = vmul.f32 %v1672, %v1671
        %v1674 = vmul.f32 0.5, %v1673
        %v1675 = vsub.f32 1.5, %v1674
        %v1676 = vmul.f32 %v1671, %v1675
        %vm1677 = vweird.f32 %v1669
        %vm1678 = vweird.f32 %v1671
        %vm1679 = vmor %vm1677, %vm1678
        %v1680 = vsel %vm1679, %v1671, %v1676
        %v1681 = vrsqrt.pop %v1670
        %v1682 = vmul.f32 %v1681, %v1670
        %v1683 = vmul.f32 %v1682, %v1681
        %v1684 = vmul.f32 0.5, %v1683
        %v1685 = vsub.f32 1.5, %v1684
        %v1686 = vmul.f32 %v1681, %v1685
        %vm1687 = vweird.f32 %v1670
        %vm1688 = vweird.f32 %v1681
        %vm1689 = vmor %vm1687, %vm1688
        %v1690 = vsel %vm1689, %v1681, %v1686
        %v1691 = vmul.f32 %v1653, %v1680
        %v1692 = vmul.f32 %v1654, %v1680
        %v1693 = vmul.f32 %v1655, %v1690
        %v1694 = vmul.f32 %v1656, %v1690
        %v1696 = vperm.slane %v1636, 0
        %v1697 = vperm.slane %v1636, 1
        %v1700 = vmul.f32 %v1691, %v1696
        %v1701 = vmul.f32 %v1692, %v1697
        %v1702 = vmul.f32 %v1693, %v1696
        %v1703 = vmul.f32 %v1694, %v1697
        %v1705 = vperm.slane %v1637, 0
        %v1706 = vperm.slane %v1637, 1
        %v1709 = vadd.f32 %v1700, %v1705
        %v1710 = vadd.f32 %v1701, %v1706
        %v1711 = vadd.f32 %v1702, %v1705
        %v1712 = vadd.f32 %v1703, %v1706
        %v1713 = vpack.c.bf16 %v1711, %v1709
        %v1714 = vpack.c.bf16 %v1712, %v1710
        %v1715 = vld [vmem:[%s684] sm:$0xff]
        %v1716 = vld [vmem:[%s684 + $0x8] sm:$0xff]
        %v1717 = vld [vmem:[%s684 + $0x10] sm:$0xff]
        %v1718 = vld [vmem:[%s684 + $0x18] sm:$0xff]
        %v1719 = vld [vmem:[%s684 + $0x20] sm:$0xff]
        %v1720 = vld [vmem:[%s684 + $0x28] sm:$0xff]
        %v1721 = vld [vmem:[%s684 + $0x30] sm:$0xff]
        %v1722 = vld [vmem:[%s684 + $0x38] sm:$0xff]
        %v1723 = vld [vmem:[%s684 + $0x40] sm:$0xff]
        %v1724 = vld [vmem:[%s684 + $0x48] sm:$0xff]
        %v1725 = vld [vmem:[%s684 + $0x50] sm:$0xff]
        %v1726 = vld [vmem:[%s684 + $0x58] sm:$0xff]
        %v1727 = vld [vmem:[%s684 + $0x60] sm:$0xff]
        %v1728 = vld [vmem:[%s684 + $0x68] sm:$0xff]
        %v1729 = vld [vmem:[%s684 + $0x70] sm:$0xff]
        %v1730 = vld [vmem:[%s684 + $0x78] sm:$0xff]
        %v1731 = vld [vmem:[%s684 + $0x80] sm:$0xff]
        %v1732 = vld [vmem:[%s684 + $0x88] sm:$0xff]
        %v1733 = vld [vmem:[%s684 + $0x90] sm:$0xff]
        %v1734 = vld [vmem:[%s684 + $0x98] sm:$0xff]
        %v1735 = vld [vmem:[%s684 + $0xa0] sm:$0xff]
        %v1736 = vld [vmem:[%s684 + $0xa8] sm:$0xff]
        %v1737 = vld [vmem:[%s684 + $0xb0] sm:$0xff]
        %v1738 = vld [vmem:[%s684 + $0xb8] sm:$0xff]
        %v1739 = vld [vmem:[%s684 + $0xc0] sm:$0xff]
        %v1740 = vld [vmem:[%s684 + $0xc8] sm:$0xff]
        %v1741 = vld [vmem:[%s684 + $0xd0] sm:$0xff]
        %v1742 = vld [vmem:[%s684 + $0xd8] sm:$0xff]
        %v1743 = vld [vmem:[%s684 + $0xe0] sm:$0xff]
        %v1744 = vld [vmem:[%s684 + $0xe8] sm:$0xff]
        %v1745 = vld [vmem:[%s684 + $0xf0] sm:$0xff]
        %v1746 = vld [vmem:[%s684 + $0xf8] sm:$0xff]
        %v1747 = vld [vmem:[%s684 + $0x100] sm:$0xff]
        %v1748 = vld [vmem:[%s684 + $0x108] sm:$0xff]
        %v1749 = vld [vmem:[%s684 + $0x110] sm:$0xff]
        %v1750 = vld [vmem:[%s684 + $0x118] sm:$0xff]
        %v1751 = vld [vmem:[%s684 + $0x120] sm:$0xff]
        %v1752 = vld [vmem:[%s684 + $0x128] sm:$0xff]
        %v1753 = vld [vmem:[%s684 + $0x130] sm:$0xff]
        %v1754 = vld [vmem:[%s684 + $0x138] sm:$0xff]
        %v1755 = vld [vmem:[%s684 + $0x140] sm:$0xff]
        %v1756 = vld [vmem:[%s684 + $0x148] sm:$0xff]
        %v1757 = vld [vmem:[%s684 + $0x150] sm:$0xff]
        %v1758 = vld [vmem:[%s684 + $0x158] sm:$0xff]
        %v1759 = vld [vmem:[%s684 + $0x160] sm:$0xff]
        %v1760 = vld [vmem:[%s684 + $0x168] sm:$0xff]
        %v1761 = vld [vmem:[%s684 + $0x170] sm:$0xff]
        %v1762 = vld [vmem:[%s684 + $0x178] sm:$0xff]
        %v1763 = vld [vmem:[%s684 + $0x180] sm:$0xff]
        %v1764 = vld [vmem:[%s684 + $0x188] sm:$0xff]
        %v1765 = vld [vmem:[%s684 + $0x190] sm:$0xff]
        %v1766 = vld [vmem:[%s684 + $0x198] sm:$0xff]
        %v1767 = vld [vmem:[%s684 + $0x1a0] sm:$0xff]
        %v1768 = vld [vmem:[%s684 + $0x1a8] sm:$0xff]
        %v1769 = vld [vmem:[%s684 + $0x1b0] sm:$0xff]
        %v1770 = vld [vmem:[%s684 + $0x1b8] sm:$0xff]
        %v1771 = vld [vmem:[%s684 + $0x1c0] sm:$0xff]
        %v1772 = vld [vmem:[%s684 + $0x1c8] sm:$0xff]
        %v1773 = vld [vmem:[%s684 + $0x1d0] sm:$0xff]
        %v1774 = vld [vmem:[%s684 + $0x1d8] sm:$0xff]
        %v1775 = vld [vmem:[%s684 + $0x1e0] sm:$0xff]
        %v1776 = vld [vmem:[%s684 + $0x1e8] sm:$0xff]
        %v1777 = vld [vmem:[%s684 + $0x1f0] sm:$0xff]
        %v1778 = vld [vmem:[%s684 + $0x1f8] sm:$0xff]
        %v1779 = vld [vmem:[%s684 + $0x200] sm:$0xff]
        %v1780 = vld [vmem:[%s684 + $0x208] sm:$0xff]
        %v1781 = vld [vmem:[%s684 + $0x210] sm:$0xff]
        %v1782 = vld [vmem:[%s684 + $0x218] sm:$0xff]
        %v1783 = vld [vmem:[%s684 + $0x220] sm:$0xff]
        %v1784 = vld [vmem:[%s684 + $0x228] sm:$0xff]
        %v1785 = vld [vmem:[%s684 + $0x230] sm:$0xff]
        %v1786 = vld [vmem:[%s684 + $0x238] sm:$0xff]
        %v1787 = vld [vmem:[%s684 + $0x240] sm:$0xff]
        %v1788 = vld [vmem:[%s684 + $0x248] sm:$0xff]
        %v1789 = vld [vmem:[%s684 + $0x250] sm:$0xff]
        %v1790 = vld [vmem:[%s684 + $0x258] sm:$0xff]
        %v1791 = vld [vmem:[%s684 + $0x260] sm:$0xff]
        %v1792 = vld [vmem:[%s684 + $0x268] sm:$0xff]
        %v1793 = vld [vmem:[%s684 + $0x270] sm:$0xff]
        %v1794 = vld [vmem:[%s684 + $0x278] sm:$0xff]
        %v1795 = vld [vmem:[%s684 + $0x280] sm:$0xff]
        %v1796 = vld [vmem:[%s684 + $0x288] sm:$0xff]
        %v1797 = vld [vmem:[%s684 + $0x290] sm:$0xff]
        %v1798 = vld [vmem:[%s684 + $0x298] sm:$0xff]
        %v1799 = vld [vmem:[%s684 + $0x2a0] sm:$0xff]
        %v1800 = vld [vmem:[%s684 + $0x2a8] sm:$0xff]
        %v1801 = vld [vmem:[%s684 + $0x2b0] sm:$0xff]
        %v1802 = vld [vmem:[%s684 + $0x2b8] sm:$0xff]
        %v1803 = vld [vmem:[%s684 + $0x2c0] sm:$0xff]
        %v1804 = vld [vmem:[%s684 + $0x2c8] sm:$0xff]
        %v1805 = vld [vmem:[%s684 + $0x2d0] sm:$0xff]
        %v1806 = vld [vmem:[%s684 + $0x2d8] sm:$0xff]
        %v1807 = vld [vmem:[%s684 + $0x2e0] sm:$0xff]
        %v1808 = vld [vmem:[%s684 + $0x2e8] sm:$0xff]
        %v1809 = vld [vmem:[%s684 + $0x2f0] sm:$0xff]
        %v1810 = vld [vmem:[%s684 + $0x2f8] sm:$0xff]
        %v1811 = vld [vmem:[%s811] sm:$0x3f]
        %v1813 = vperm.slane %v1811, 0
        %v1814 = vperm.slane %v1811, 1
        %v1815 = vperm.slane %v1811, 2
        %v1816 = vperm.slane %v1811, 3
        %v1817 = vperm.slane %v1811, 4
        %v1818 = vperm.slane %v1811, 5
        %v1921 = vunpack.c.l.b16 %v1715
        %v1922 = vunpack.c.h.b16 %v1715
        %v1923 = vunpack.c.l.b16 %v1716
        %v1924 = vunpack.c.h.b16 %v1716
        %v1925 = vunpack.c.l.b16 %v1717
        %v1926 = vunpack.c.h.b16 %v1717
        %v1927 = vunpack.c.l.b16 %v1718
        %v1928 = vunpack.c.h.b16 %v1718
        %v1929 = vunpack.c.l.b16 %v1719
        %v1930 = vunpack.c.h.b16 %v1719
        %v1931 = vunpack.c.l.b16 %v1720
        %v1932 = vunpack.c.h.b16 %v1720
        %v1933 = vunpack.c.l.b16 %v1721
        %v1934 = vunpack.c.h.b16 %v1721
        %v1935 = vunpack.c.l.b16 %v1722
        %v1936 = vunpack.c.h.b16 %v1722
        %v1937 = vunpack.c.l.b16 %v1723
        %v1938 = vunpack.c.h.b16 %v1723
        %v1939 = vunpack.c.l.b16 %v1724
        %v1940 = vunpack.c.h.b16 %v1724
        %v1941 = vunpack.c.l.b16 %v1725
        %v1942 = vunpack.c.h.b16 %v1725
        %v1943 = vunpack.c.l.b16 %v1726
        %v1944 = vunpack.c.h.b16 %v1726
        %v1945 = vunpack.c.l.b16 %v1727
        %v1946 = vunpack.c.h.b16 %v1727
        %v1947 = vunpack.c.l.b16 %v1728
        %v1948 = vunpack.c.h.b16 %v1728
        %v1949 = vunpack.c.l.b16 %v1729
        %v1950 = vunpack.c.h.b16 %v1729
        %v1951 = vunpack.c.l.b16 %v1730
        %v1952 = vunpack.c.h.b16 %v1730
        %v1953 = vunpack.c.l.b16 %v1731
        %v1954 = vunpack.c.h.b16 %v1731
        %v1955 = vunpack.c.l.b16 %v1732
        %v1956 = vunpack.c.h.b16 %v1732
        %v1957 = vunpack.c.l.b16 %v1733
        %v1958 = vunpack.c.h.b16 %v1733
        %v1959 = vunpack.c.l.b16 %v1734
        %v1960 = vunpack.c.h.b16 %v1734
        %v1961 = vunpack.c.l.b16 %v1735
        %v1962 = vunpack.c.h.b16 %v1735
        %v1963 = vunpack.c.l.b16 %v1736
        %v1964 = vunpack.c.h.b16 %v1736
        %v1965 = vunpack.c.l.b16 %v1737
        %v1966 = vunpack.c.h.b16 %v1737
        %v1967 = vunpack.c.l.b16 %v1738
        %v1968 = vunpack.c.h.b16 %v1738
        %v1969 = vunpack.c.l.b16 %v1739
        %v1970 = vunpack.c.h.b16 %v1739
        %v1971 = vunpack.c.l.b16 %v1740
        %v1972 = vunpack.c.h.b16 %v1740
        %v1973 = vunpack.c.l.b16 %v1741
        %v1974 = vunpack.c.h.b16 %v1741
        %v1975 = vunpack.c.l.b16 %v1742
        %v1976 = vunpack.c.h.b16 %v1742
        %v1977 = vunpack.c.l.b16 %v1743
        %v1978 = vunpack.c.h.b16 %v1743
        %v1979 = vunpack.c.l.b16 %v1744
        %v1980 = vunpack.c.h.b16 %v1744
        %v1981 = vunpack.c.l.b16 %v1745
        %v1982 = vunpack.c.h.b16 %v1745
        %v1983 = vunpack.c.l.b16 %v1746
        %v1984 = vunpack.c.h.b16 %v1746
        %v1985 = vunpack.c.l.b16 %v1747
        %v1986 = vunpack.c.h.b16 %v1747
        %v1987 = vunpack.c.l.b16 %v1748
        %v1988 = vunpack.c.h.b16 %v1748
        %v1989 = vunpack.c.l.b16 %v1749
        %v1990 = vunpack.c.h.b16 %v1749
        %v1991 = vunpack.c.l.b16 %v1750
        %v1992 = vunpack.c.h.b16 %v1750
        %v1993 = vunpack.c.l.b16 %v1751
        %v1994 = vunpack.c.h.b16 %v1751
        %v1995 = vunpack.c.l.b16 %v1752
        %v1996 = vunpack.c.h.b16 %v1752
        %v1997 = vunpack.c.l.b16 %v1753
        %v1998 = vunpack.c.h.b16 %v1753
        %v1999 = vunpack.c.l.b16 %v1754
        %v2000 = vunpack.c.h.b16 %v1754
        %v2001 = vunpack.c.l.b16 %v1755
        %v2002 = vunpack.c.h.b16 %v1755
        %v2003 = vunpack.c.l.b16 %v1756
        %v2004 = vunpack.c.h.b16 %v1756
        %v2005 = vunpack.c.l.b16 %v1757
        %v2006 = vunpack.c.h.b16 %v1757
        %v2007 = vunpack.c.l.b16 %v1758
        %v2008 = vunpack.c.h.b16 %v1758
        %v2009 = vunpack.c.l.b16 %v1759
        %v2010 = vunpack.c.h.b16 %v1759
        %v2011 = vunpack.c.l.b16 %v1760
        %v2012 = vunpack.c.h.b16 %v1760
        %v2013 = vunpack.c.l.b16 %v1761
        %v2014 = vunpack.c.h.b16 %v1761
        %v2015 = vunpack.c.l.b16 %v1762
        %v2016 = vunpack.c.h.b16 %v1762
        %v2017 = vunpack.c.l.b16 %v1763
        %v2018 = vunpack.c.h.b16 %v1763
        %v2019 = vunpack.c.l.b16 %v1764
        %v2020 = vunpack.c.h.b16 %v1764
        %v2021 = vunpack.c.l.b16 %v1765
        %v2022 = vunpack.c.h.b16 %v1765
        %v2023 = vunpack.c.l.b16 %v1766
        %v2024 = vunpack.c.h.b16 %v1766
        %v2025 = vunpack.c.l.b16 %v1767
        %v2026 = vunpack.c.h.b16 %v1767
        %v2027 = vunpack.c.l.b16 %v1768
        %v2028 = vunpack.c.h.b16 %v1768
        %v2029 = vunpack.c.l.b16 %v1769
        %v2030 = vunpack.c.h.b16 %v1769
        %v2031 = vunpack.c.l.b16 %v1770
        %v2032 = vunpack.c.h.b16 %v1770
        %v2033 = vunpack.c.l.b16 %v1771
        %v2034 = vunpack.c.h.b16 %v1771
        %v2035 = vunpack.c.l.b16 %v1772
        %v2036 = vunpack.c.h.b16 %v1772
        %v2037 = vunpack.c.l.b16 %v1773
        %v2038 = vunpack.c.h.b16 %v1773
        %v2039 = vunpack.c.l.b16 %v1774
        %v2040 = vunpack.c.h.b16 %v1774
        %v2041 = vunpack.c.l.b16 %v1775
        %v2042 = vunpack.c.h.b16 %v1775
        %v2043 = vunpack.c.l.b16 %v1776
        %v2044 = vunpack.c.h.b16 %v1776
        %v2045 = vunpack.c.l.b16 %v1777
        %v2046 = vunpack.c.h.b16 %v1777
        %v2047 = vunpack.c.l.b16 %v1778
        %v2048 = vunpack.c.h.b16 %v1778
        %v2049 = vunpack.c.l.b16 %v1779
        %v2050 = vunpack.c.h.b16 %v1779
        %v2051 = vunpack.c.l.b16 %v1780
        %v2052 = vunpack.c.h.b16 %v1780
        %v2053 = vunpack.c.l.b16 %v1781
        %v2054 = vunpack.c.h.b16 %v1781
        %v2055 = vunpack.c.l.b16 %v1782
        %v2056 = vunpack.c.h.b16 %v1782
        %v2057 = vunpack.c.l.b16 %v1783
        %v2058 = vunpack.c.h.b16 %v1783
        %v2059 = vunpack.c.l.b16 %v1784
        %v2060 = vunpack.c.h.b16 %v1784
        %v2061 = vunpack.c.l.b16 %v1785
        %v2062 = vunpack.c.h.b16 %v1785
        %v2063 = vunpack.c.l.b16 %v1786
        %v2064 = vunpack.c.h.b16 %v1786
        %v2065 = vunpack.c.l.b16 %v1787
        %v2066 = vunpack.c.h.b16 %v1787
        %v2067 = vunpack.c.l.b16 %v1788
        %v2068 = vunpack.c.h.b16 %v1788
        %v2069 = vunpack.c.l.b16 %v1789
        %v2070 = vunpack.c.h.b16 %v1789
        %v2071 = vunpack.c.l.b16 %v1790
        %v2072 = vunpack.c.h.b16 %v1790
        %v2073 = vunpack.c.l.b16 %v1791
        %v2074 = vunpack.c.h.b16 %v1791
        %v2075 = vunpack.c.l.b16 %v1792
        %v2076 = vunpack.c.h.b16 %v1792
        %v2077 = vunpack.c.l.b16 %v1793
        %v2078 = vunpack.c.h.b16 %v1793
        %v2079 = vunpack.c.l.b16 %v1794
        %v2080 = vunpack.c.h.b16 %v1794
        %v2081 = vunpack.c.l.b16 %v1795
        %v2082 = vunpack.c.h.b16 %v1795
        %v2083 = vunpack.c.l.b16 %v1796
        %v2084 = vunpack.c.h.b16 %v1796
        %v2085 = vunpack.c.l.b16 %v1797
        %v2086 = vunpack.c.h.b16 %v1797
        %v2087 = vunpack.c.l.b16 %v1798
        %v2088 = vunpack.c.h.b16 %v1798
        %v2089 = vunpack.c.l.b16 %v1799
        %v2090 = vunpack.c.h.b16 %v1799
        %v2091 = vunpack.c.l.b16 %v1800
        %v2092 = vunpack.c.h.b16 %v1800
        %v2093 = vunpack.c.l.b16 %v1801
        %v2094 = vunpack.c.h.b16 %v1801
        %v2095 = vunpack.c.l.b16 %v1802
        %v2096 = vunpack.c.h.b16 %v1802
        %v2097 = vunpack.c.l.b16 %v1803
        %v2098 = vunpack.c.h.b16 %v1803
        %v2099 = vunpack.c.l.b16 %v1804
        %v2100 = vunpack.c.h.b16 %v1804
        %v2101 = vunpack.c.l.b16 %v1805
        %v2102 = vunpack.c.h.b16 %v1805
        %v2103 = vunpack.c.l.b16 %v1806
        %v2104 = vunpack.c.h.b16 %v1806
        %v2105 = vunpack.c.l.b16 %v1807
        %v2106 = vunpack.c.h.b16 %v1807
        %v2107 = vunpack.c.l.b16 %v1808
        %v2108 = vunpack.c.h.b16 %v1808
        %v2109 = vunpack.c.l.b16 %v1809
        %v2110 = vunpack.c.h.b16 %v1809
        %v2111 = vunpack.c.l.b16 %v1810
        %v2112 = vunpack.c.h.b16 %v1810
        %v2113 = vpack.c.b16 %v1927, %v1921
        %v2114 = vpack.c.b16 %v1928, %v1922
        %v2115 = vpack.c.b16 %v1929, %v1923
        %v2116 = vpack.c.b16 %v1930, %v1924
        %v2117 = vpack.c.b16 %v1931, %v1925
        %v2118 = vpack.c.b16 %v1932, %v1926
        %v2119 = vpack.c.b16 %v1939, %v1933
        %v2120 = vpack.c.b16 %v1940, %v1934
        %v2121 = vpack.c.b16 %v1941, %v1935
        %v2122 = vpack.c.b16 %v1942, %v1936
        %v2123 = vpack.c.b16 %v1943, %v1937
        %v2124 = vpack.c.b16 %v1944, %v1938
        %v2125 = vpack.c.b16 %v1951, %v1945
        %v2126 = vpack.c.b16 %v1952, %v1946
        %v2127 = vpack.c.b16 %v1953, %v1947
        %v2128 = vpack.c.b16 %v1954, %v1948
        %v2129 = vpack.c.b16 %v1955, %v1949
        %v2130 = vpack.c.b16 %v1956, %v1950
        %v2131 = vpack.c.b16 %v1963, %v1957
        %v2132 = vpack.c.b16 %v1964, %v1958
        %v2133 = vpack.c.b16 %v1965, %v1959
        %v2134 = vpack.c.b16 %v1966, %v1960
        %v2135 = vpack.c.b16 %v1967, %v1961
        %v2136 = vpack.c.b16 %v1968, %v1962
        %v2137 = vpack.c.b16 %v1975, %v1969
        %v2138 = vpack.c.b16 %v1976, %v1970
        %v2139 = vpack.c.b16 %v1977, %v1971
        %v2140 = vpack.c.b16 %v1978, %v1972
        %v2141 = vpack.c.b16 %v1979, %v1973
        %v2142 = vpack.c.b16 %v1980, %v1974
        %v2143 = vpack.c.b16 %v1987, %v1981
        %v2144 = vpack.c.b16 %v1988, %v1982
        %v2145 = vpack.c.b16 %v1989, %v1983
        %v2146 = vpack.c.b16 %v1990, %v1984
        %v2147 = vpack.c.b16 %v1991, %v1985
        %v2148 = vpack.c.b16 %v1992, %v1986
        %v2149 = vpack.c.b16 %v1999, %v1993
        %v2150 = vpack.c.b16 %v2000, %v1994
        %v2151 = vpack.c.b16 %v2001, %v1995
        %v2152 = vpack.c.b16 %v2002, %v1996
        %v2153 = vpack.c.b16 %v2003, %v1997
        %v2154 = vpack.c.b16 %v2004, %v1998
        %v2155 = vpack.c.b16 %v2011, %v2005
        %v2156 = vpack.c.b16 %v2012, %v2006
        %v2157 = vpack.c.b16 %v2013, %v2007
        %v2158 = vpack.c.b16 %v2014, %v2008
        %v2159 = vpack.c.b16 %v2015, %v2009
        %v2160 = vpack.c.b16 %v2016, %v2010
        %v2161 = vpack.c.b16 %v2023, %v2017
        %v2162 = vpack.c.b16 %v2024, %v2018
        %v2163 = vpack.c.b16 %v2025, %v2019
        %v2164 = vpack.c.b16 %v2026, %v2020
        %v2165 = vpack.c.b16 %v2027, %v2021
        %v2166 = vpack.c.b16 %v2028, %v2022
        %v2167 = vpack.c.b16 %v2035, %v2029
        %v2168 = vpack.c.b16 %v2036, %v2030
        %v2169 = vpack.c.b16 %v2037, %v2031
        %v2170 = vpack.c.b16 %v2038, %v2032
        %v2171 = vpack.c.b16 %v2039, %v2033
        %v2172 = vpack.c.b16 %v2040, %v2034
        %v2173 = vpack.c.b16 %v2047, %v2041
        %v2174 = vpack.c.b16 %v2048, %v2042
        %v2175 = vpack.c.b16 %v2049, %v2043
        %v2176 = vpack.c.b16 %v2050, %v2044
        %v2177 = vpack.c.b16 %v2051, %v2045
        %v2178 = vpack.c.b16 %v2052, %v2046
        %v2179 = vpack.c.b16 %v2059, %v2053
        %v2180 = vpack.c.b16 %v2060, %v2054
        %v2181 = vpack.c.b16 %v2061, %v2055
        %v2182 = vpack.c.b16 %v2062, %v2056
        %v2183 = vpack.c.b16 %v2063, %v2057
        %v2184 = vpack.c.b16 %v2064, %v2058
        %v2185 = vpack.c.b16 %v2071, %v2065
        %v2186 = vpack.c.b16 %v2072, %v2066
        %v2187 = vpack.c.b16 %v2073, %v2067
        %v2188 = vpack.c.b16 %v2074, %v2068
        %v2189 = vpack.c.b16 %v2075, %v2069
        %v2190 = vpack.c.b16 %v2076, %v2070
        %v2191 = vpack.c.b16 %v2083, %v2077
        %v2192 = vpack.c.b16 %v2084, %v2078
        %v2193 = vpack.c.b16 %v2085, %v2079
        %v2194 = vpack.c.b16 %v2086, %v2080
        %v2195 = vpack.c.b16 %v2087, %v2081
        %v2196 = vpack.c.b16 %v2088, %v2082
        %v2197 = vpack.c.b16 %v2095, %v2089
        %v2198 = vpack.c.b16 %v2096, %v2090
        %v2199 = vpack.c.b16 %v2097, %v2091
        %v2200 = vpack.c.b16 %v2098, %v2092
        %v2201 = vpack.c.b16 %v2099, %v2093
        %v2202 = vpack.c.b16 %v2100, %v2094
        %v2203 = vpack.c.b16 %v2107, %v2101
        %v2204 = vpack.c.b16 %v2108, %v2102
        %v2205 = vpack.c.b16 %v2109, %v2103
        %v2206 = vpack.c.b16 %v2110, %v2104
        %v2207 = vpack.c.b16 %v2111, %v2105
        %v2208 = vpack.c.b16 %v2112, %v2106
        %2305 = vmatpush.bf16.msra.mxu0 %v2155
        %2306 = vmatpush.bf16.msra.mxu0 %v2149
        %2307 = vmatpush.bf16.msra.mxu0 %v2143
        %2308 = vmatpush.bf16.msra.mxu0 %v2137
        %2309 = vmatpush.bf16.msra.mxu0 %v2131
        %2310 = vmatpush.bf16.msra.mxu0 %v2125
        %2311 = vmatpush.bf16.msra.mxu0 %v2119
        %2312 = vmatpush.bf16.msra.mxu0 %v2113
        %2313 = vmatmul.bf16.gmra.mxu0 %v1713
        %v2314 = vpop.f32.mrf.mxu0
        %v2315 = vadd.f32 %v1813, %v2314
        %v2316 = vpop.f32.mrf.mxu0
        %v2317 = vadd.f32 %v1813, %v2316
        %2318 = vdwg.mxu0
        %2319 = vmatpush.bf16.msra.mxu0 %v2203
        %2320 = vmatpush.bf16.msra.mxu0 %v2197
        %2321 = vmatpush.bf16.msra.mxu0 %v2191
        %2322 = vmatpush.bf16.msra.mxu0 %v2185
        %2323 = vmatpush.bf16.msra.mxu0 %v2179
        %2324 = vmatpush.bf16.msra.mxu0 %v2173
        %2325 = vmatpush.bf16.msra.mxu0 %v2167
        %2326 = vmatpush.bf16.msra.mxu0 %v2161
        %2327 = vmatmul.bf16.gmra.mxu0 %v1714
        %v2328 = vpop.f32.mrf.mxu0
        %v2329 = vadd.f32 %v2315, %v2328
        %v2330 = vpop.f32.mrf.mxu0
        %v2331 = vadd.f32 %v2317, %v2330
        %2332 = vdwg.mxu0
        %2333 = vmatpush.bf16.msra.mxu0 %v2156
        %2334 = vmatpush.bf16.msra.mxu0 %v2150
        %2335 = vmatpush.bf16.msra.mxu0 %v2144
        %2336 = vmatpush.bf16.msra.mxu0 %v2138
        %2337 = vmatpush.bf16.msra.mxu0 %v2132
        %2338 = vmatpush.bf16.msra.mxu0 %v2126
        %2339 = vmatpush.bf16.msra.mxu0 %v2120
        %2340 = vmatpush.bf16.msra.mxu0 %v2114
        %2341 = vmatmul.bf16.gmra.mxu0 %v1713
        %v2342 = vpop.f32.mrf.mxu0
        %v2343 = vadd.f32 %v1814, %v2342
        %v2344 = vpop.f32.mrf.mxu0
        %v2345 = vadd.f32 %v1814, %v2344
        %2346 = vdwg.mxu0
        %2347 = vmatpush.bf16.msra.mxu0 %v2204
        %2348 = vmatpush.bf16.msra.mxu0 %v2198
        %2349 = vmatpush.bf16.msra.mxu0 %v2192
        %2350 = vmatpush.bf16.msra.mxu0 %v2186
        %2351 = vmatpush.bf16.msra.mxu0 %v2180
        %2352 = vmatpush.bf16.msra.mxu0 %v2174
        %2353 = vmatpush.bf16.msra.mxu0 %v2168
        %2354 = vmatpush.bf16.msra.mxu0 %v2162
        %2355 = vmatmul.bf16.gmra.mxu0 %v1714
        %v2356 = vpop.f32.mrf.mxu0
        %v2357 = vadd.f32 %v2343, %v2356
        %v2358 = vpop.f32.mrf.mxu0
        %v2359 = vadd.f32 %v2345, %v2358
        %2360 = vdwg.mxu0
        %2361 = vmatpush.bf16.msra.mxu0 %v2157
        %2362 = vmatpush.bf16.msra.mxu0 %v2151
        %2363 = vmatpush.bf16.msra.mxu0 %v2145
        %2364 = vmatpush.bf16.msra.mxu0 %v2139
        %2365 = vmatpush.bf16.msra.mxu0 %v2133
        %2366 = vmatpush.bf16.msra.mxu0 %v2127
        %2367 = vmatpush.bf16.msra.mxu0 %v2121
        %2368 = vmatpush.bf16.msra.mxu0 %v2115
        %2369 = vmatmul.bf16.gmra.mxu0 %v1713
        %v2370 = vpop.f32.mrf.mxu0
        %v2371 = vadd.f32 %v1815, %v2370
        %v2372 = vpop.f32.mrf.mxu0
        %v2373 = vadd.f32 %v1815, %v2372
        %2374 = vdwg.mxu0
        %2375 = vmatpush.bf16.msra.mxu0 %v2205
        %2376 = vmatpush.bf16.msra.mxu0 %v2199
        %2377 = vmatpush.bf16.msra.mxu0 %v2193
        %2378 = vmatpush.bf16.msra.mxu0 %v2187
        %2379 = vmatpush.bf16.msra.mxu0 %v2181
        %2380 = vmatpush.bf16.msra.mxu0 %v2175
        %2381 = vmatpush.bf16.msra.mxu0 %v2169
        %2382 = vmatpush.bf16.msra.mxu0 %v2163
        %2383 = vmatmul.bf16.gmra.mxu0 %v1714
        %v2384 = vpop.f32.mrf.mxu0
        %v2385 = vadd.f32 %v2371, %v2384
        %v2386 = vpop.f32.mrf.mxu0
        %v2387 = vadd.f32 %v2373, %v2386
        %2388 = vdwg.mxu0
        %2389 = vmatpush.bf16.msra.mxu0 %v2158
        %2390 = vmatpush.bf16.msra.mxu0 %v2152
        %2391 = vmatpush.bf16.msra.mxu0 %v2146
        %2392 = vmatpush.bf16.msra.mxu0 %v2140
        %2393 = vmatpush.bf16.msra.mxu0 %v2134
        %2394 = vmatpush.bf16.msra.mxu0 %v2128
        %2395 = vmatpush.bf16.msra.mxu0 %v2122
        %2396 = vmatpush.bf16.msra.mxu0 %v2116
        %2397 = vmatmul.bf16.gmra.mxu0 %v1713
        %v2398 = vpop.f32.mrf.mxu0
        %v2399 = vadd.f32 %v1816, %v2398
        %v2400 = vpop.f32.mrf.mxu0
        %v2401 = vadd.f32 %v1816, %v2400
        %2402 = vdwg.mxu0
        %2403 = vmatpush.bf16.msra.mxu0 %v2206
        %2404 = vmatpush.bf16.msra.mxu0 %v2200
        %2405 = vmatpush.bf16.msra.mxu0 %v2194
        %2406 = vmatpush.bf16.msra.mxu0 %v2188
        %2407 = vmatpush.bf16.msra.mxu0 %v2182
        %2408 = vmatpush.bf16.msra.mxu0 %v2176
        %2409 = vmatpush.bf16.msra.mxu0 %v2170
        %2410 = vmatpush.bf16.msra.mxu0 %v2164
        %2411 = vmatmul.bf16.gmra.mxu0 %v1714
        %v2412 = vpop.f32.mrf.mxu0
        %v2413 = vadd.f32 %v2399, %v2412
        %v2414 = vpop.f32.mrf.mxu0
        %v2415 = vadd.f32 %v2401, %v2414
        %2416 = vdwg.mxu0
        %2417 = vmatpush.bf16.msra.mxu0 %v2159
        %2418 = vmatpush.bf16.msra.mxu0 %v2153
        %2419 = vmatpush.bf16.msra.mxu0 %v2147
        %2420 = vmatpush.bf16.msra.mxu0 %v2141
        %2421 = vmatpush.bf16.msra.mxu0 %v2135
        %2422 = vmatpush.bf16.msra.mxu0 %v2129
        %2423 = vmatpush.bf16.msra.mxu0 %v2123
        %2424 = vmatpush.bf16.msra.mxu0 %v2117
        %2425 = vmatmul.bf16.gmra.mxu0 %v1713
        %v2426 = vpop.f32.mrf.mxu0
        %v2427 = vadd.f32 %v1817, %v2426
        %v2428 = vpop.f32.mrf.mxu0
        %v2429 = vadd.f32 %v1817, %v2428
        %2430 = vdwg.mxu0
        %2431 = vmatpush.bf16.msra.mxu0 %v2207
        %2432 = vmatpush.bf16.msra.mxu0 %v2201
        %2433 = vmatpush.bf16.msra.mxu0 %v2195
        %2434 = vmatpush.bf16.msra.mxu0 %v2189
        %2435 = vmatpush.bf16.msra.mxu0 %v2183
        %2436 = vmatpush.bf16.msra.mxu0 %v2177
        %2437 = vmatpush.bf16.msra.mxu0 %v2171
        %2438 = vmatpush.bf16.msra.mxu0 %v2165
        %2439 = vmatmul.bf16.gmra.mxu0 %v1714
        %v2440 = vpop.f32.mrf.mxu0
        %v2441 = vadd.f32 %v2427, %v2440
        %v2442 = vpop.f32.mrf.mxu0
        %v2443 = vadd.f32 %v2429, %v2442
        %2444 = vdwg.mxu0
        %2445 = vmatpush.bf16.msra.mxu0 %v2160
        %2446 = vmatpush.bf16.msra.mxu0 %v2154
        %2447 = vmatpush.bf16.msra.mxu0 %v2148
        %2448 = vmatpush.bf16.msra.mxu0 %v2142
        %2449 = vmatpush.bf16.msra.mxu0 %v2136
        %2450 = vmatpush.bf16.msra.mxu0 %v2130
        %2451 = vmatpush.bf16.msra.mxu0 %v2124
        %2452 = vmatpush.bf16.msra.mxu0 %v2118
        %2453 = vmatmul.bf16.gmra.mxu0 %v1713
        %v2454 = vpop.f32.mrf.mxu0
        %v2455 = vadd.f32 %v1818, %v2454
        %v2456 = vpop.f32.mrf.mxu0
        %v2457 = vadd.f32 %v1818, %v2456
        %2458 = vdwg.mxu0
        %2459 = vmatpush.bf16.msra.mxu0 %v2208
        %2460 = vmatpush.bf16.msra.mxu0 %v2202
        %2461 = vmatpush.bf16.msra.mxu0 %v2196
        %2462 = vmatpush.bf16.msra.mxu0 %v2190
        %2463 = vmatpush.bf16.msra.mxu0 %v2184
        %2464 = vmatpush.bf16.msra.mxu0 %v2178
        %2465 = vmatpush.bf16.msra.mxu0 %v2172
        %2466 = vmatpush.bf16.msra.mxu0 %v2166
        %2467 = vmatmul.bf16.gmra.mxu0 %v1714
        %v2468 = vpop.f32.mrf.mxu0
        %v2469 = vadd.f32 %v2455, %v2468
        %v2470 = vpop.f32.mrf.mxu0
        %v2471 = vadd.f32 %v2457, %v2470
        %2472 = vdwg.mxu0
        %v2473 = vpack.c.bf16 %v2331, %v2329
        %v2474 = vpack.c.bf16 %v2387, %v2385
        %v2475 = vpack.c.bf16 %v2443, %v2441
        %vm2476 = vcmask 523264
        %v2478 = vsel %vm2476, %v2473, 0
        %v2481 = vsel %vm2476, %v2474, 0
        %2483 = vmatpush.bf16.xpose.msra.mxu0 0
        %2484 = vmatpush.bf16.xpose.msra.mxu0 0
        %2485 = vmatpush.bf16.xpose.msra.mxu0 0
        %2486 = vmatpush.bf16.xpose.msra.mxu0 0
        %2487 = vmatpush.bf16.xpose.msra.mxu0 0
        %2488 = vmatpush.bf16.xpose.msra.mxu0 0
        %2489 = vmatpush.bf16.xpose.msra.mxu0 0
        %2490 = vmatpush.bf16.xpose.msra.mxu0 %v2481
        %2491 = vmatmul.bf16.gmra.mxu0 %v2478
        %v2492 = vpop.f32.mrf.mxu0
        %v2493 = vadd.f32 %v1634, %v2492
        %v2494 = vpop.f32.mrf.mxu0
        %v2495 = vadd.f32 %v1635, %v2494
        %2496 = vdwg.mxu0
        %vm2497 = vcmask 130048
        %v2498 = vsel %vm2497, %v2493, -inf
        %2499 = vmax.xlane.f32.xlu0 %v2498
        %v2500 = vpop.xlane.xlu0 %2499
        %v2501 = vsel %vm2497, %v2495, -inf
        %2502 = vmax.xlane.f32.xlu0 %v2501
        %v2503 = vpop.xlane.xlu0 %2502
        %v2504 = vsub.f32 %v2493, %v2500
        %v2505 = vsub.f32 %v2495, %v2503
        %v2506 = vmul.f32 %v2504, 1.442695
        %v2507 = vpow.pop %v2506
        %v2508 = vmul.f32 %v2505, 1.442695
        %v2509 = vpow.pop %v2508
        %v2510 = vsel %vm2497, %v2507, 0.0
        %2511 = vadd.xlane.f32.xlu0 %v2510
        %v2512 = vpop.xlane.xlu0 %2511
        %v2513 = vsel %vm2497, %v2509, 0.0
        %2514 = vadd.xlane.f32.xlu0 %v2513
        %v2515 = vpop.xlane.xlu0 %2514
        %v2516 = vrcp.pop %v2512
        %v2517 = vmul.f32 %v2512, %v2516
        %v2518 = vsub.f32 1.0, %v2517
        %v2519 = vmul.f32 %v2516, %v2518
        %v2520 = vadd.f32 %v2516, %v2519
        %vm2521 = vweird.f32 %v2512
        %vm2522 = vweird.f32 %v2516
        %vm2523 = vmor %vm2521, %vm2522
        %v2524 = vsel %vm2523, %v2516, %v2520
        %v2525 = vand.u32 2147483647, %v2512
        %vm2526 = vcmp.eq.f32.partialorder %v2525, 8.507059e+37
        %v2527 = vand.u32 %v2512, 2147483648
        %v2528 = vor.u32 1.1754944e-38, %v2527
        %v2529 = vsel %vm2526, %v2528, %v2524
        %v2530 = vmul.f32 %v2507, %v2529
        %v2531 = vrcp.pop %v2515
        %v2532 = vmul.f32 %v2515, %v2531
        %v2533 = vsub.f32 1.0, %v2532
        %v2534 = vmul.f32 %v2531, %v2533
        %v2535 = vadd.f32 %v2531, %v2534
        %vm2536 = vweird.f32 %v2515
        %vm2537 = vweird.f32 %v2531
        %vm2538 = vmor %vm2536, %vm2537
        %v2539 = vsel %vm2538, %v2531, %v2535
        %v2540 = vand.u32 2147483647, %v2515
        %vm2541 = vcmp.eq.f32.partialorder %v2540, 8.507059e+37
        %v2542 = vand.u32 %v2515, 2147483648
        %v2543 = vor.u32 1.1754944e-38, %v2542
        %v2544 = vsel %vm2541, %v2543, %v2539
        %v2545 = vmul.f32 %v2509, %v2544
        %v2546 = vpack.c.bf16 %v2545, %v2530
        %v2548 = vsel %vm2497, %v2546, 0
        %2550 = vmatpush.bf16.msra.mxu0 0
        %2551 = vmatpush.bf16.msra.mxu0 0
        %2552 = vmatpush.bf16.msra.mxu0 0
        %2553 = vmatpush.bf16.msra.mxu0 0
        %2554 = vmatpush.bf16.msra.mxu0 0
        %2555 = vmatpush.bf16.msra.mxu0 0
        %2556 = vmatpush.bf16.msra.mxu0 0
        %2557 = vmatpush.bf16.msra.mxu0 %v2475
        %2558 = vmatmul.bf16.gmra.mxu0 %v2548
        %v2559 = vpop.f32.mrf.mxu0
        %v2560 = vadd.f32 0.0, %v2559
        %v2561 = vpop.f32.mrf.mxu0
        %v2562 = vadd.f32 0.0, %v2561
        %2563 = vdwg.mxu0
        %2564 = vst.msk [vmem:[#allocation3] sm:$0xff] %vm2476, %v2560
        %2565 = vst.msk [vmem:[#allocation3 + $0x10] sm:$0xff] %vm2476, %v2562
        %2567 = vrot.lane.b32.xlu0 %v2473, 64
        %v2568 = vpop.permute.xlu0 %2567
        %2570 = vrot.lane.b32.xlu0 %v2474, 64
        %v2571 = vpop.permute.xlu0 %2570
        %v2573 = vsel %vm2476, %v2568, 0
        %v2576 = vsel %vm2476, %v2571, 0
        %2578 = vmatpush.bf16.xpose.msra.mxu0 0
        %2579 = vmatpush.bf16.xpose.msra.mxu0 0
        %2580 = vmatpush.bf16.xpose.msra.mxu0 0
        %2581 = vmatpush.bf16.xpose.msra.mxu0 0
        %2582 = vmatpush.bf16.xpose.msra.mxu0 0
        %2583 = vmatpush.bf16.xpose.msra.mxu0 0
        %2584 = vmatpush.bf16.xpose.msra.mxu0 0
        %2585 = vmatpush.bf16.xpose.msra.mxu0 %v2576
        %2586 = vmatmul.bf16.gmra.mxu0 %v2573
        %v2587 = vpop.f32.mrf.mxu0
        %v2588 = vadd.f32 %v1634, %v2587
        %v2589 = vpop.f32.mrf.mxu0
        %v2590 = vadd.f32 %v1635, %v2589
        %2591 = vdwg.mxu0
        %v2592 = vsel %vm2497, %v2588, -inf
        %2593 = vmax.xlane.f32.xlu0 %v2592
        %v2594 = vpop.xlane.xlu0 %2593
        %v2595 = vsel %vm2497, %v2590, -inf
        %2596 = vmax.xlane.f32.xlu0 %v2595
        %v2597 = vpop.xlane.xlu0 %2596
        %v2598 = vsub.f32 %v2588, %v2594
        %v2599 = vsub.f32 %v2590, %v2597
        %v2600 = vmul.f32 %v2598, 1.442695
        %v2601 = vpow.pop %v2600
        %v2602 = vmul.f32 %v2599, 1.442695
        %v2603 = vpow.pop %v2602
        %v2604 = vsel %vm2497, %v2601, 0.0
        %2605 = vadd.xlane.f32.xlu0 %v2604
        %v2606 = vpop.xlane.xlu0 %2605
        %v2607 = vsel %vm2497, %v2603, 0.0
        %2608 = vadd.xlane.f32.xlu0 %v2607
        %v2609 = vpop.xlane.xlu0 %2608
        %v2610 = vrcp.pop %v2606
        %v2611 = vmul.f32 %v2606, %v2610
        %v2612 = vsub.f32 1.0, %v2611
        %v2613 = vmul.f32 %v2610, %v2612
        %v2614 = vadd.f32 %v2610, %v2613
        %vm2615 = vweird.f32 %v2606
        %vm2616 = vweird.f32 %v2610
        %vm2617 = vmor %vm2615, %vm2616
        %v2618 = vsel %vm2617, %v2610, %v2614
        %v2619 = vand.u32 2147483647, %v2606
        %vm2620 = vcmp.eq.f32.partialorder %v2619, 8.507059e+37
        %v2621 = vand.u32 %v2606, 2147483648
        %v2622 = vor.u32 1.1754944e-38, %v2621
        %v2623 = vsel %vm2620, %v2622, %v2618
        %v2624 = vmul.f32 %v2601, %v2623
        %v2625 = vrcp.pop %v2609
        %v2626 = vmul.f32 %v2609, %v2625
        %v2627 = vsub.f32 1.0, %v2626
        %v2628 = vmul.f32 %v2625, %v2627
        %v2629 = vadd.f32 %v2625, %v2628
        %vm2630 = vweird.f32 %v2609
        %vm2631 = vweird.f32 %v2625
        %vm2632 = vmor %vm2630, %vm2631
        %v2633 = vsel %vm2632, %v2625, %v2629
        %v2634 = vand.u32 2147483647, %v2609
        %vm2635 = vcmp.eq.f32.partialorder %v2634, 8.507059e+37
        %v2636 = vand.u32 %v2609, 2147483648
        %v2637 = vor.u32 1.1754944e-38, %v2636
        %v2638 = vsel %vm2635, %v2637, %v2633
        %v2639 = vmul.f32 %v2603, %v2638
        %v2640 = vpack.c.bf16 %v2639, %v2624
        %2642 = vrot.lane.b32.xlu0 %v2475, 64
        %v2643 = vpop.permute.xlu0 %2642
        %v2646 = vsel %vm2497, %v2640, 0
        %2648 = vmatpush.bf16.msra.mxu0 0
        %2649 = vmatpush.bf16.msra.mxu0 0
        %2650 = vmatpush.bf16.msra.mxu0 0
        %2651 = vmatpush.bf16.msra.mxu0 0
        %2652 = vmatpush.bf16.msra.mxu0 0
        %2653 = vmatpush.bf16.msra.mxu0 0
        %2654 = vmatpush.bf16.msra.mxu0 0
        %2655 = vmatpush.bf16.msra.mxu0 %v2643
        %2656 = vmatmul.bf16.gmra.mxu0 %v2646
        %v2657 = vpop.f32.mrf.mxu0
        %v2658 = vadd.f32 0.0, %v2657
        %v2659 = vpop.f32.mrf.mxu0
        %v2660 = vadd.f32 0.0, %v2659
        %2661 = vdwg.mxu0
        %2664 = vrot.lane.b32.xlu0 %v2658, 64
        %v2665 = vpop.permute.xlu0 %2664
        %2666 = vrot.lane.b32.xlu0 %v2660, 64
        %v2667 = vpop.permute.xlu0 %2666
        %vm2670 = vcmask 1048064
        %2671 = vst.msk [vmem:[#allocation3] sm:$0xff] %vm2670, %v2665
        %2672 = vst.msk [vmem:[#allocation3 + $0x10] sm:$0xff] %vm2670, %v2667
        %v2673 = vpack.c.bf16 %v2359, %v2357
        %v2674 = vpack.c.bf16 %v2415, %v2413
        %v2675 = vpack.c.bf16 %v2471, %v2469
        %v2677 = vsel %vm2476, %v2673, 0
        %v2680 = vsel %vm2476, %v2674, 0
        %2682 = vmatpush.bf16.xpose.msra.mxu0 0
        %2683 = vmatpush.bf16.xpose.msra.mxu0 0
        %2684 = vmatpush.bf16.xpose.msra.mxu0 0
        %2685 = vmatpush.bf16.xpose.msra.mxu0 0
        %2686 = vmatpush.bf16.xpose.msra.mxu0 0
        %2687 = vmatpush.bf16.xpose.msra.mxu0 0
        %2688 = vmatpush.bf16.xpose.msra.mxu0 0
        %2689 = vmatpush.bf16.xpose.msra.mxu0 %v2680
        %2690 = vmatmul.bf16.gmra.mxu0 %v2677
        %v2691 = vpop.f32.mrf.mxu0
        %v2692 = vadd.f32 %v1634, %v2691
        %v2693 = vpop.f32.mrf.mxu0
        %v2694 = vadd.f32 %v1635, %v2693
        %2695 = vdwg.mxu0
        %v2696 = vsel %vm2497, %v2692, -inf
        %2697 = vmax.xlane.f32.xlu0 %v2696
        %v2698 = vpop.xlane.xlu0 %2697
        %v2699 = vsel %vm2497, %v2694, -inf
        %2700 = vmax.xlane.f32.xlu0 %v2699
        %v2701 = vpop.xlane.xlu0 %2700
        %v2702 = vsub.f32 %v2692, %v2698
        %v2703 = vsub.f32 %v2694, %v2701
        %v2704 = vmul.f32 %v2702, 1.442695
        %v2705 = vpow.pop %v2704
        %v2706 = vmul.f32 %v2703, 1.442695
        %v2707 = vpow.pop %v2706
        %v2708 = vsel %vm2497, %v2705, 0.0
        %2709 = vadd.xlane.f32.xlu0 %v2708
        %v2710 = vpop.xlane.xlu0 %2709
        %v2711 = vsel %vm2497, %v2707, 0.0
        %2712 = vadd.xlane.f32.xlu0 %v2711
        %v2713 = vpop.xlane.xlu0 %2712
        %v2714 = vrcp.pop %v2710
        %v2715 = vmul.f32 %v2710, %v2714
        %v2716 = vsub.f32 1.0, %v2715
        %v2717 = vmul.f32 %v2714, %v2716
        %v2718 = vadd.f32 %v2714, %v2717
        %vm2719 = vweird.f32 %v2710
        %vm2720 = vweird.f32 %v2714
        %vm2721 = vmor %vm2719, %vm2720
        %v2722 = vsel %vm2721, %v2714, %v2718
        %v2723 = vand.u32 2147483647, %v2710
        %vm2724 = vcmp.eq.f32.partialorder %v2723, 8.507059e+37
        %v2725 = vand.u32 %v2710, 2147483648
        %v2726 = vor.u32 1.1754944e-38, %v2725
        %v2727 = vsel %vm2724, %v2726, %v2722
        %v2728 = vmul.f32 %v2705, %v2727
        %v2729 = vrcp.pop %v2713
        %v2730 = vmul.f32 %v2713, %v2729
        %v2731 = vsub.f32 1.0, %v2730
        %v2732 = vmul.f32 %v2729, %v2731
        %v2733 = vadd.f32 %v2729, %v2732
        %vm2734 = vweird.f32 %v2713
        %vm2735 = vweird.f32 %v2729
        %vm2736 = vmor %vm2734, %vm2735
        %v2737 = vsel %vm2736, %v2729, %v2733
        %v2738 = vand.u32 2147483647, %v2713
        %vm2739 = vcmp.eq.f32.partialorder %v2738, 8.507059e+37
        %v2740 = vand.u32 %v2713, 2147483648
        %v2741 = vor.u32 1.1754944e-38, %v2740
        %v2742 = vsel %vm2739, %v2741, %v2737
        %v2743 = vmul.f32 %v2707, %v2742
        %v2744 = vpack.c.bf16 %v2743, %v2728
        %v2746 = vsel %vm2497, %v2744, 0
        %2748 = vmatpush.bf16.msra.mxu0 0
        %2749 = vmatpush.bf16.msra.mxu0 0
        %2750 = vmatpush.bf16.msra.mxu0 0
        %2751 = vmatpush.bf16.msra.mxu0 0
        %2752 = vmatpush.bf16.msra.mxu0 0
        %2753 = vmatpush.bf16.msra.mxu0 0
        %2754 = vmatpush.bf16.msra.mxu0 0
        %2755 = vmatpush.bf16.msra.mxu0 %v2675
        %2756 = vmatmul.bf16.gmra.mxu0 %v2746
        %v2757 = vpop.f32.mrf.mxu0
        %v2758 = vadd.f32 0.0, %v2757
        %v2759 = vpop.f32.mrf.mxu0
        %v2760 = vadd.f32 0.0, %v2759
        %2761 = vdwg.mxu0
        %2762 = vst.msk [vmem:[#allocation3 + $0x8] sm:$0xff] %vm2476, %v2758
        %2763 = vst.msk [vmem:[#allocation3 + $0x18] sm:$0xff] %vm2476, %v2760
        %2765 = vrot.lane.b32.xlu0 %v2673, 64
        %v2766 = vpop.permute.xlu0 %2765
        %2768 = vrot.lane.b32.xlu0 %v2674, 64
        %v2769 = vpop.permute.xlu0 %2768
        %v2771 = vsel %vm2476, %v2766, 0
        %v2774 = vsel %vm2476, %v2769, 0
        %2776 = vmatpush.bf16.xpose.msra.mxu0 0
        %2777 = vmatpush.bf16.xpose.msra.mxu0 0
        %2778 = vmatpush.bf16.xpose.msra.mxu0 0
        %2779 = vmatpush.bf16.xpose.msra.mxu0 0
        %2780 = vmatpush.bf16.xpose.msra.mxu0 0
        %2781 = vmatpush.bf16.xpose.msra.mxu0 0
        %2782 = vmatpush.bf16.xpose.msra.mxu0 0
        %2783 = vmatpush.bf16.xpose.msra.mxu0 %v2774
        %2784 = vmatmul.bf16.gmra.mxu0 %v2771
        %v2785 = vpop.f32.mrf.mxu0
        %v2786 = vadd.f32 %v1634, %v2785
        %v2787 = vpop.f32.mrf.mxu0
        %v2788 = vadd.f32 %v1635, %v2787
        %2789 = vdwg.mxu0
        %v2790 = vsel %vm2497, %v2786, -inf
        %2791 = vmax.xlane.f32.xlu0 %v2790
        %v2792 = vpop.xlane.xlu0 %2791
        %v2793 = vsel %vm2497, %v2788, -inf
        %2794 = vmax.xlane.f32.xlu0 %v2793
        %v2795 = vpop.xlane.xlu0 %2794
        %v2796 = vsub.f32 %v2786, %v2792
        %v2797 = vsub.f32 %v2788, %v2795
        %v2798 = vmul.f32 %v2796, 1.442695
        %v2799 = vpow.pop %v2798
        %v2800 = vmul.f32 %v2797, 1.442695
        %v2801 = vpow.pop %v2800
        %v2802 = vsel %vm2497, %v2799, 0.0
        %2803 = vadd.xlane.f32.xlu0 %v2802
        %v2804 = vpop.xlane.xlu0 %2803
        %v2805 = vsel %vm2497, %v2801, 0.0
        %2806 = vadd.xlane.f32.xlu0 %v2805
        %v2807 = vpop.xlane.xlu0 %2806
        %v2808 = vrcp.pop %v2804
        %v2809 = vmul.f32 %v2804, %v2808
        %v2810 = vsub.f32 1.0, %v2809
        %v2811 = vmul.f32 %v2808, %v2810
        %v2812 = vadd.f32 %v2808, %v2811
        %vm2813 = vweird.f32 %v2804
        %vm2814 = vweird.f32 %v2808
        %vm2815 = vmor %vm2813, %vm2814
        %v2816 = vsel %vm2815, %v2808, %v2812
        %v2817 = vand.u32 2147483647, %v2804
        %vm2818 = vcmp.eq.f32.partialorder %v2817, 8.507059e+37
        %v2819 = vand.u32 %v2804, 2147483648
        %v2820 = vor.u32 1.1754944e-38, %v2819
        %v2821 = vsel %vm2818, %v2820, %v2816
        %v2822 = vmul.f32 %v2799, %v2821
        %v2823 = vrcp.pop %v2807
        %v2824 = vmul.f32 %v2807, %v2823
        %v2825 = vsub.f32 1.0, %v2824
        %v2826 = vmul.f32 %v2823, %v2825
        %v2827 = vadd.f32 %v2823, %v2826
        %vm2828 = vweird.f32 %v2807
        %vm2829 = vweird.f32 %v2823
        %vm2830 = vmor %vm2828, %vm2829
        %v2831 = vsel %vm2830, %v2823, %v2827
        %v2832 = vand.u32 2147483647, %v2807
        %vm2833 = vcmp.eq.f32.partialorder %v2832, 8.507059e+37
        %v2834 = vand.u32 %v2807, 2147483648
        %v2835 = vor.u32 1.1754944e-38, %v2834
        %v2836 = vsel %vm2833, %v2835, %v2831
        %v2837 = vmul.f32 %v2801, %v2836
        %v2838 = vpack.c.bf16 %v2837, %v2822
        %2840 = vrot.lane.b32.xlu0 %v2675, 64
        %v2841 = vpop.permute.xlu0 %2840
        %v2844 = vsel %vm2497, %v2838, 0
        %2846 = vmatpush.bf16.msra.mxu0 0
        %2847 = vmatpush.bf16.msra.mxu0 0
        %2848 = vmatpush.bf16.msra.mxu0 0
        %2849 = vmatpush.bf16.msra.mxu0 0
        %2850 = vmatpush.bf16.msra.mxu0 0
        %2851 = vmatpush.bf16.msra.mxu0 0
        %2852 = vmatpush.bf16.msra.mxu0 0
        %2853 = vmatpush.bf16.msra.mxu0 %v2841
        %2854 = vmatmul.bf16.gmra.mxu0 %v2844
        %v2855 = vpop.f32.mrf.mxu0
        %v2856 = vadd.f32 0.0, %v2855
        %v2857 = vpop.f32.mrf.mxu0
        %v2858 = vadd.f32 0.0, %v2857
        %2859 = vdwg.mxu0
        %2862 = vrot.lane.b32.xlu0 %v2856, 64
        %v2863 = vpop.permute.xlu0 %2862
        %2864 = vrot.lane.b32.xlu0 %v2858, 64
        %v2865 = vpop.permute.xlu0 %2864
        %2868 = vst.msk [vmem:[#allocation3 + $0x8] sm:$0xff] %vm2670, %v2863
        %2869 = vst.msk [vmem:[#allocation3 + $0x18] sm:$0xff] %vm2670, %v2865
        %v2870 = vld [vmem:[#allocation3] sm:$0xff]
        %v2871 = vld [vmem:[#allocation3 + $0x8] sm:$0xff]
        %v2872 = vld [vmem:[#allocation3 + $0x10] sm:$0xff]
        %v2873 = vld [vmem:[#allocation3 + $0x18] sm:$0xff]
        %v2874 = vpack.c.bf16 %v2872, %v2870
        %v2875 = vpack.c.bf16 %v2873, %v2871
        %v2876 = vld [vmem:[%s694] sm:$0xff]
        %v2877 = vld [vmem:[%s694 + $0x8] sm:$0xff]
        %v2878 = vld [vmem:[%s694 + $0x10] sm:$0xff]
        %v2879 = vld [vmem:[%s694 + $0x18] sm:$0xff]
        %v2880 = vld [vmem:[%s694 + $0x20] sm:$0xff]
        %v2881 = vld [vmem:[%s694 + $0x28] sm:$0xff]
        %v2882 = vld [vmem:[%s694 + $0x30] sm:$0xff]
        %v2883 = vld [vmem:[%s694 + $0x38] sm:$0xff]
        %v2884 = vld [vmem:[%s694 + $0x40] sm:$0xff]
        %v2885 = vld [vmem:[%s694 + $0x48] sm:$0xff]
        %v2886 = vld [vmem:[%s694 + $0x50] sm:$0xff]
        %v2887 = vld [vmem:[%s694 + $0x58] sm:$0xff]
        %v2888 = vld [vmem:[%s694 + $0x60] sm:$0xff]
        %v2889 = vld [vmem:[%s694 + $0x68] sm:$0xff]
        %v2890 = vld [vmem:[%s694 + $0x70] sm:$0xff]
        %v2891 = vld [vmem:[%s694 + $0x78] sm:$0xff]
        %v2892 = vld [vmem:[%s694 + $0x80] sm:$0xff]
        %v2893 = vld [vmem:[%s694 + $0x88] sm:$0xff]
        %v2894 = vld [vmem:[%s694 + $0x90] sm:$0xff]
        %v2895 = vld [vmem:[%s694 + $0x98] sm:$0xff]
        %v2896 = vld [vmem:[%s694 + $0xa0] sm:$0xff]
        %v2897 = vld [vmem:[%s694 + $0xa8] sm:$0xff]
        %v2898 = vld [vmem:[%s694 + $0xb0] sm:$0xff]
        %v2899 = vld [vmem:[%s694 + $0xb8] sm:$0xff]
        %v2900 = vld [vmem:[%s694 + $0xc0] sm:$0xff]
        %v2901 = vld [vmem:[%s694 + $0xc8] sm:$0xff]
        %v2902 = vld [vmem:[%s694 + $0xd0] sm:$0xff]
        %v2903 = vld [vmem:[%s694 + $0xd8] sm:$0xff]
        %v2904 = vld [vmem:[%s694 + $0xe0] sm:$0xff]
        %v2905 = vld [vmem:[%s694 + $0xe8] sm:$0xff]
        %v2906 = vld [vmem:[%s694 + $0xf0] sm:$0xff]
        %v2907 = vld [vmem:[%s694 + $0xf8] sm:$0xff]
        %v2940 = vunpack.c.l.b16 %v2876
        %v2941 = vunpack.c.h.b16 %v2876
        %v2942 = vunpack.c.l.b16 %v2877
        %v2943 = vunpack.c.h.b16 %v2877
        %v2944 = vunpack.c.l.b16 %v2878
        %v2945 = vunpack.c.h.b16 %v2878
        %v2946 = vunpack.c.l.b16 %v2879
        %v2947 = vunpack.c.h.b16 %v2879
        %v2948 = vunpack.c.l.b16 %v2880
        %v2949 = vunpack.c.h.b16 %v2880
        %v2950 = vunpack.c.l.b16 %v2881
        %v2951 = vunpack.c.h.b16 %v2881
        %v2952 = vunpack.c.l.b16 %v2882
        %v2953 = vunpack.c.h.b16 %v2882
        %v2954 = vunpack.c.l.b16 %v2883
        %v2955 = vunpack.c.h.b16 %v2883
        %v2956 = vunpack.c.l.b16 %v2884
        %v2957 = vunpack.c.h.b16 %v2884
        %v2958 = vunpack.c.l.b16 %v2885
        %v2959 = vunpack.c.h.b16 %v2885
        %v2960 = vunpack.c.l.b16 %v2886
        %v2961 = vunpack.c.h.b16 %v2886
        %v2962 = vunpack.c.l.b16 %v2887
        %v2963 = vunpack.c.h.b16 %v2887
        %v2964 = vunpack.c.l.b16 %v2888
        %v2965 = vunpack.c.h.b16 %v2888
        %v2966 = vunpack.c.l.b16 %v2889
        %v2967 = vunpack.c.h.b16 %v2889
        %v2968 = vunpack.c.l.b16 %v2890
        %v2969 = vunpack.c.h.b16 %v2890
        %v2970 = vunpack.c.l.b16 %v2891
        %v2971 = vunpack.c.h.b16 %v2891
        %v2972 = vunpack.c.l.b16 %v2892
        %v2973 = vunpack.c.h.b16 %v2892
        %v2974 = vunpack.c.l.b16 %v2893
        %v2975 = vunpack.c.h.b16 %v2893
        %v2976 = vunpack.c.l.b16 %v2894
        %v2977 = vunpack.c.h.b16 %v2894
        %v2978 = vunpack.c.l.b16 %v2895
        %v2979 = vunpack.c.h.b16 %v2895
        %v2980 = vunpack.c.l.b16 %v2896
        %v2981 = vunpack.c.h.b16 %v2896
        %v2982 = vunpack.c.l.b16 %v2897
        %v2983 = vunpack.c.h.b16 %v2897
        %v2984 = vunpack.c.l.b16 %v2898
        %v2985 = vunpack.c.h.b16 %v2898
        %v2986 = vunpack.c.l.b16 %v2899
        %v2987 = vunpack.c.h.b16 %v2899
        %v2988 = vunpack.c.l.b16 %v2900
        %v2989 = vunpack.c.h.b16 %v2900
        %v2990 = vunpack.c.l.b16 %v2901
        %v2991 = vunpack.c.h.b16 %v2901
        %v2992 = vunpack.c.l.b16 %v2902
        %v2993 = vunpack.c.h.b16 %v2902
        %v2994 = vunpack.c.l.b16 %v2903
        %v2995 = vunpack.c.h.b16 %v2903
        %v2996 = vunpack.c.l.b16 %v2904
        %v2997 = vunpack.c.h.b16 %v2904
        %v2998 = vunpack.c.l.b16 %v2905
        %v2999 = vunpack.c.h.b16 %v2905
        %v3000 = vunpack.c.l.b16 %v2906
        %v3001 = vunpack.c.h.b16 %v2906
        %v3002 = vunpack.c.l.b16 %v2907
        %v3003 = vunpack.c.h.b16 %v2907
        %v3004 = vpack.c.b16 %v2942, %v2940
        %v3005 = vpack.c.b16 %v2943, %v2941
        %v3006 = vpack.c.b16 %v2946, %v2944
        %v3007 = vpack.c.b16 %v2947, %v2945
        %v3008 = vpack.c.b16 %v2950, %v2948
        %v3009 = vpack.c.b16 %v2951, %v2949
        %v3010 = vpack.c.b16 %v2954, %v2952
        %v3011 = vpack.c.b16 %v2955, %v2953
        %v3012 = vpack.c.b16 %v2958, %v2956
        %v3013 = vpack.c.b16 %v2959, %v2957
        %v3014 = vpack.c.b16 %v2962, %v2960
        %v3015 = vpack.c.b16 %v2963, %v2961
        %v3016 = vpack.c.b16 %v2966, %v2964
        %v3017 = vpack.c.b16 %v2967, %v2965
        %v3018 = vpack.c.b16 %v2970, %v2968
        %v3019 = vpack.c.b16 %v2971, %v2969
        %v3020 = vpack.c.b16 %v2974, %v2972
        %v3021 = vpack.c.b16 %v2975, %v2973
        %v3022 = vpack.c.b16 %v2978, %v2976
        %v3023 = vpack.c.b16 %v2979, %v2977
        %v3024 = vpack.c.b16 %v2982, %v2980
        %v3025 = vpack.c.b16 %v2983, %v2981
        %v3026 = vpack.c.b16 %v2986, %v2984
        %v3027 = vpack.c.b16 %v2987, %v2985
        %v3028 = vpack.c.b16 %v2990, %v2988
        %v3029 = vpack.c.b16 %v2991, %v2989
        %v3030 = vpack.c.b16 %v2994, %v2992
        %v3031 = vpack.c.b16 %v2995, %v2993
        %v3032 = vpack.c.b16 %v2998, %v2996
        %v3033 = vpack.c.b16 %v2999, %v2997
        %v3034 = vpack.c.b16 %v3002, %v3000
        %v3035 = vpack.c.b16 %v3003, %v3001
        %3068 = vmatpush.bf16.msra.mxu0 %v3018
        %3069 = vmatpush.bf16.msra.mxu0 %v3016
        %3070 = vmatpush.bf16.msra.mxu0 %v3014
        %3071 = vmatpush.bf16.msra.mxu0 %v3012
        %3072 = vmatpush.bf16.msra.mxu0 %v3010
        %3073 = vmatpush.bf16.msra.mxu0 %v3008
        %3074 = vmatpush.bf16.msra.mxu0 %v3006
        %3075 = vmatpush.bf16.msra.mxu0 %v3004
        %3076 = vmatmul.bf16.gmra.mxu0 %v2874
        %v3077 = vpop.f32.mrf.mxu0
        %v3078 = vadd.f32 0.0, %v3077
        %v3079 = vpop.f32.mrf.mxu0
        %v3080 = vadd.f32 0.0, %v3079
        %3081 = vdwg.mxu0
        %3082 = vmatpush.bf16.msra.mxu0 %v3034
        %3083 = vmatpush.bf16.msra.mxu0 %v3032
        %3084 = vmatpush.bf16.msra.mxu0 %v3030
        %3085 = vmatpush.bf16.msra.mxu0 %v3028
        %3086 = vmatpush.bf16.msra.mxu0 %v3026
        %3087 = vmatpush.bf16.msra.mxu0 %v3024
        %3088 = vmatpush.bf16.msra.mxu0 %v3022
        %3089 = vmatpush.bf16.msra.mxu0 %v3020
        %3090 = vmatmul.bf16.gmra.mxu0 %v2875
        %v3091 = vpop.f32.mrf.mxu0
        %v3092 = vadd.f32 %v3078, %v3091
        %v3093 = vpop.f32.mrf.mxu0
        %v3094 = vadd.f32 %v3080, %v3093
        %3095 = vdwg.mxu0
        %3096 = vmatpush.bf16.msra.mxu0 %v3019
        %3097 = vmatpush.bf16.msra.mxu0 %v3017
        %3098 = vmatpush.bf16.msra.mxu0 %v3015
        %3099 = vmatpush.bf16.msra.mxu0 %v3013
        %3100 = vmatpush.bf16.msra.mxu0 %v3011
        %3101 = vmatpush.bf16.msra.mxu0 %v3009
        %3102 = vmatpush.bf16.msra.mxu0 %v3007
        %3103 = vmatpush.bf16.msra.mxu0 %v3005
        %3104 = vmatmul.bf16.gmra.mxu0 %v2874
        %v3105 = vpop.f32.mrf.mxu0
        %v3106 = vadd.f32 0.0, %v3105
        %v3107 = vpop.f32.mrf.mxu0
        %v3108 = vadd.f32 0.0, %v3107
        %3109 = vdwg.mxu0
        %3110 = vmatpush.bf16.msra.mxu0 %v3035
        %3111 = vmatpush.bf16.msra.mxu0 %v3033
        %3112 = vmatpush.bf16.msra.mxu0 %v3031
        %3113 = vmatpush.bf16.msra.mxu0 %v3029
        %3114 = vmatpush.bf16.msra.mxu0 %v3027
        %3115 = vmatpush.bf16.msra.mxu0 %v3025
        %3116 = vmatpush.bf16.msra.mxu0 %v3023
        %3117 = vmatpush.bf16.msra.mxu0 %v3021
        %3118 = vmatmul.bf16.gmra.mxu0 %v2875
        %v3119 = vpop.f32.mrf.mxu0
        %v3120 = vadd.f32 %v3106, %v3119
        %v3121 = vpop.f32.mrf.mxu0
        %v3122 = vadd.f32 %v3108, %v3121
        %3123 = vdwg.mxu0
        %v3124 = vadd.f32 %v1630, %v3092
        %v3125 = vadd.f32 %v1631, %v3120
        %v3126 = vadd.f32 %v1632, %v3094
        %v3127 = vadd.f32 %v1633, %v3122
        %v3128 = vld [vmem:[%s815] sm:$0x3]
        %v3130 = vperm.slane %v3128, 0
        %v3131 = vperm.slane %v3128, 1
        %v3134 = vadd.f32 %v3124, %v3130
        %v3135 = vadd.f32 %v3125, %v3131
        %v3136 = vadd.f32 %v3126, %v3130
        %v3137 = vadd.f32 %v3127, %v3131
        %v3138 = vld [vmem:[%s819] sm:$0x3]
        %v3139 = vld [vmem:[%s823] sm:$0x3]
        %v3140 = vadd.f32 %v3134, %v3135
        %3141 = vadd.xlane.f32.xlu0 %v3140
        %v3142 = vpop.xlane.xlu0 %3141
        %v3143 = vadd.f32 %v3136, %v3137
        %3144 = vadd.xlane.f32.xlu0 %v3143
        %v3145 = vpop.xlane.xlu0 %3144
        %v3146 = vmul.f32 %v3142, %v1650
        %v3147 = vmul.f32 %v3145, %v1650
        %v3148 = vsub.f32 %v3134, %v3146
        %v3149 = vsub.f32 %v3135, %v3146
        %v3150 = vsub.f32 %v3136, %v3147
        %v3151 = vsub.f32 %v3137, %v3147
        %v3152 = vmul.f32 %v3148, %v3148
        %v3153 = vmul.f32 %v3149, %v3149
        %v3154 = vmul.f32 %v3150, %v3150
        %v3155 = vmul.f32 %v3151, %v3151
        %v3156 = vadd.f32 %v3152, %v3153
        %3157 = vadd.xlane.f32.xlu0 %v3156
        %v3158 = vpop.xlane.xlu0 %3157
        %v3159 = vadd.f32 %v3154, %v3155
        %3160 = vadd.xlane.f32.xlu0 %v3159
        %v3161 = vpop.xlane.xlu0 %3160
        %v3162 = vmul.f32 %v3158, %v1650
        %v3163 = vmul.f32 %v3161, %v1650
        %v3164 = vadd.f32 %v3162, 1e-06
        %v3165 = vadd.f32 %v3163, 1e-06
        %v3166 = vrsqrt.pop %v3164
        %v3167 = vmul.f32 %v3166, %v3164
        %v3168 = vmul.f32 %v3167, %v3166
        %v3169 = vmul.f32 0.5, %v3168
        %v3170 = vsub.f32 1.5, %v3169
        %v3171 = vmul.f32 %v3166, %v3170
        %vm3172 = vweird.f32 %v3164
        %vm3173 = vweird.f32 %v3166
        %vm3174 = vmor %vm3172, %vm3173
        %v3175 = vsel %vm3174, %v3166, %v3171
        %v3176 = vrsqrt.pop %v3165
        %v3177 = vmul.f32 %v3176, %v3165
        %v3178 = vmul.f32 %v3177, %v3176
        %v3179 = vmul.f32 0.5, %v3178
        %v3180 = vsub.f32 1.5, %v3179
        %v3181 = vmul.f32 %v3176, %v3180
        %vm3182 = vweird.f32 %v3165
        %vm3183 = vweird.f32 %v3176
        %vm3184 = vmor %vm3182, %vm3183
        %v3185 = vsel %vm3184, %v3176, %v3181
        %v3186 = vmul.f32 %v3148, %v3175
        %v3187 = vmul.f32 %v3149, %v3175
        %v3188 = vmul.f32 %v3150, %v3185
        %v3189 = vmul.f32 %v3151, %v3185
        %v3191 = vperm.slane %v3138, 0
        %v3192 = vperm.slane %v3138, 1
        %v3195 = vmul.f32 %v3186, %v3191
        %v3196 = vmul.f32 %v3187, %v3192
        %v3197 = vmul.f32 %v3188, %v3191
        %v3198 = vmul.f32 %v3189, %v3192
        %v3200 = vperm.slane %v3139, 0
        %v3201 = vperm.slane %v3139, 1
        %v3204 = vadd.f32 %v3195, %v3200
        %v3205 = vadd.f32 %v3196, %v3201
        %v3206 = vadd.f32 %v3197, %v3200
        %v3207 = vadd.f32 %v3198, %v3201
        %v3208 = vpack.c.bf16 %v3206, %v3204
        %v3209 = vpack.c.bf16 %v3207, %v3205
        %v3210 = vld [vmem:[%s828] sm:$0xff]
        %v3211 = vld [vmem:[%s828 + $0x8] sm:$0xff]
        %v3212 = vld [vmem:[%s828 + $0x10] sm:$0xff]
        %v3213 = vld [vmem:[%s828 + $0x18] sm:$0xff]
        %v3214 = vld [vmem:[%s828 + $0x20] sm:$0xff]
        %v3215 = vld [vmem:[%s828 + $0x28] sm:$0xff]
        %v3216 = vld [vmem:[%s828 + $0x30] sm:$0xff]
        %v3217 = vld [vmem:[%s828 + $0x38] sm:$0xff]
        %v3218 = vld [vmem:[%s828 + $0x40] sm:$0xff]
        %v3219 = vld [vmem:[%s828 + $0x48] sm:$0xff]
        %v3220 = vld [vmem:[%s828 + $0x50] sm:$0xff]
        %v3221 = vld [vmem:[%s828 + $0x58] sm:$0xff]
        %v3222 = vld [vmem:[%s828 + $0x60] sm:$0xff]
        %v3223 = vld [vmem:[%s828 + $0x68] sm:$0xff]
        %v3224 = vld [vmem:[%s828 + $0x70] sm:$0xff]
        %v3225 = vld [vmem:[%s828 + $0x78] sm:$0xff]
        %v3226 = vld [vmem:[%s828 + $0x80] sm:$0xff]
        %v3227 = vld [vmem:[%s828 + $0x88] sm:$0xff]
        %v3228 = vld [vmem:[%s828 + $0x90] sm:$0xff]
        %v3229 = vld [vmem:[%s828 + $0x98] sm:$0xff]
        %v3230 = vld [vmem:[%s828 + $0xa0] sm:$0xff]
        %v3231 = vld [vmem:[%s828 + $0xa8] sm:$0xff]
        %v3232 = vld [vmem:[%s828 + $0xb0] sm:$0xff]
        %v3233 = vld [vmem:[%s828 + $0xb8] sm:$0xff]
        %v3234 = vld [vmem:[%s828 + $0xc0] sm:$0xff]
        %v3235 = vld [vmem:[%s828 + $0xc8] sm:$0xff]
        %v3236 = vld [vmem:[%s828 + $0xd0] sm:$0xff]
        %v3237 = vld [vmem:[%s828 + $0xd8] sm:$0xff]
        %v3238 = vld [vmem:[%s828 + $0xe0] sm:$0xff]
        %v3239 = vld [vmem:[%s828 + $0xe8] sm:$0xff]
        %v3240 = vld [vmem:[%s828 + $0xf0] sm:$0xff]
        %v3241 = vld [vmem:[%s828 + $0xf8] sm:$0xff]
        %v3242 = vld [vmem:[%s828 + $0x100] sm:$0xff]
        %v3243 = vld [vmem:[%s828 + $0x108] sm:$0xff]
        %v3244 = vld [vmem:[%s828 + $0x110] sm:$0xff]
        %v3245 = vld [vmem:[%s828 + $0x118] sm:$0xff]
        %v3246 = vld [vmem:[%s828 + $0x120] sm:$0xff]
        %v3247 = vld [vmem:[%s828 + $0x128] sm:$0xff]
        %v3248 = vld [vmem:[%s828 + $0x130] sm:$0xff]
        %v3249 = vld [vmem:[%s828 + $0x138] sm:$0xff]
        %v3250 = vld [vmem:[%s828 + $0x140] sm:$0xff]
        %v3251 = vld [vmem:[%s828 + $0x148] sm:$0xff]
        %v3252 = vld [vmem:[%s828 + $0x150] sm:$0xff]
        %v3253 = vld [vmem:[%s828 + $0x158] sm:$0xff]
        %v3254 = vld [vmem:[%s828 + $0x160] sm:$0xff]
        %v3255 = vld [vmem:[%s828 + $0x168] sm:$0xff]
        %v3256 = vld [vmem:[%s828 + $0x170] sm:$0xff]
        %v3257 = vld [vmem:[%s828 + $0x178] sm:$0xff]
        %v3258 = vld [vmem:[%s828 + $0x180] sm:$0xff]
        %v3259 = vld [vmem:[%s828 + $0x188] sm:$0xff]
        %v3260 = vld [vmem:[%s828 + $0x190] sm:$0xff]
        %v3261 = vld [vmem:[%s828 + $0x198] sm:$0xff]
        %v3262 = vld [vmem:[%s828 + $0x1a0] sm:$0xff]
        %v3263 = vld [vmem:[%s828 + $0x1a8] sm:$0xff]
        %v3264 = vld [vmem:[%s828 + $0x1b0] sm:$0xff]
        %v3265 = vld [vmem:[%s828 + $0x1b8] sm:$0xff]
        %v3266 = vld [vmem:[%s828 + $0x1c0] sm:$0xff]
        %v3267 = vld [vmem:[%s828 + $0x1c8] sm:$0xff]
        %v3268 = vld [vmem:[%s828 + $0x1d0] sm:$0xff]
        %v3269 = vld [vmem:[%s828 + $0x1d8] sm:$0xff]
        %v3270 = vld [vmem:[%s828 + $0x1e0] sm:$0xff]
        %v3271 = vld [vmem:[%s828 + $0x1e8] sm:$0xff]
        %v3272 = vld [vmem:[%s828 + $0x1f0] sm:$0xff]
        %v3273 = vld [vmem:[%s828 + $0x1f8] sm:$0xff]
        %v3274 = vld [vmem:[%s832] sm:$0xf]
        %v3276 = vperm.slane %v3274, 0
        %v3277 = vperm.slane %v3274, 1
        %v3278 = vperm.slane %v3274, 2
        %v3279 = vperm.slane %v3274, 3
        %v3348 = vunpack.c.l.b16 %v3210
        %v3349 = vunpack.c.h.b16 %v3210
        %v3350 = vunpack.c.l.b16 %v3211
        %v3351 = vunpack.c.h.b16 %v3211
        %v3352 = vunpack.c.l.b16 %v3212
        %v3353 = vunpack.c.h.b16 %v3212
        %v3354 = vunpack.c.l.b16 %v3213
        %v3355 = vunpack.c.h.b16 %v3213
        %v3356 = vunpack.c.l.b16 %v3214
        %v3357 = vunpack.c.h.b16 %v3214
        %v3358 = vunpack.c.l.b16 %v3215
        %v3359 = vunpack.c.h.b16 %v3215
        %v3360 = vunpack.c.l.b16 %v3216
        %v3361 = vunpack.c.h.b16 %v3216
        %v3362 = vunpack.c.l.b16 %v3217
        %v3363 = vunpack.c.h.b16 %v3217
        %v3364 = vunpack.c.l.b16 %v3218
        %v3365 = vunpack.c.h.b16 %v3218
        %v3366 = vunpack.c.l.b16 %v3219
        %v3367 = vunpack.c.h.b16 %v3219
        %v3368 = vunpack.c.l.b16 %v3220
        %v3369 = vunpack.c.h.b16 %v3220
        %v3370 = vunpack.c.l.b16 %v3221
        %v3371 = vunpack.c.h.b16 %v3221
        %v3372 = vunpack.c.l.b16 %v3222
        %v3373 = vunpack.c.h.b16 %v3222
        %v3374 = vunpack.c.l.b16 %v3223
        %v3375 = vunpack.c.h.b16 %v3223
        %v3376 = vunpack.c.l.b16 %v3224
        %v3377 = vunpack.c.h.b16 %v3224
        %v3378 = vunpack.c.l.b16 %v3225
        %v3379 = vunpack.c.h.b16 %v3225
        %v3380 = vunpack.c.l.b16 %v3226
        %v3381 = vunpack.c.h.b16 %v3226
        %v3382 = vunpack.c.l.b16 %v3227
        %v3383 = vunpack.c.h.b16 %v3227
        %v3384 = vunpack.c.l.b16 %v3228
        %v3385 = vunpack.c.h.b16 %v3228
        %v3386 = vunpack.c.l.b16 %v3229
        %v3387 = vunpack.c.h.b16 %v3229
        %v3388 = vunpack.c.l.b16 %v3230
        %v3389 = vunpack.c.h.b16 %v3230
        %v3390 = vunpack.c.l.b16 %v3231
        %v3391 = vunpack.c.h.b16 %v3231
        %v3392 = vunpack.c.l.b16 %v3232
        %v3393 = vunpack.c.h.b16 %v3232
        %v3394 = vunpack.c.l.b16 %v3233
        %v3395 = vunpack.c.h.b16 %v3233
        %v3396 = vunpack.c.l.b16 %v3234
        %v3397 = vunpack.c.h.b16 %v3234
        %v3398 = vunpack.c.l.b16 %v3235
        %v3399 = vunpack.c.h.b16 %v3235
        %v3400 = vunpack.c.l.b16 %v3236
        %v3401 = vunpack.c.h.b16 %v3236
        %v3402 = vunpack.c.l.b16 %v3237
        %v3403 = vunpack.c.h.b16 %v3237
        %v3404 = vunpack.c.l.b16 %v3238
        %v3405 = vunpack.c.h.b16 %v3238
        %v3406 = vunpack.c.l.b16 %v3239
        %v3407 = vunpack.c.h.b16 %v3239
        %v3408 = vunpack.c.l.b16 %v3240
        %v3409 = vunpack.c.h.b16 %v3240
        %v3410 = vunpack.c.l.b16 %v3241
        %v3411 = vunpack.c.h.b16 %v3241
        %v3412 = vunpack.c.l.b16 %v3242
        %v3413 = vunpack.c.h.b16 %v3242
        %v3414 = vunpack.c.l.b16 %v3243
        %v3415 = vunpack.c.h.b16 %v3243
        %v3416 = vunpack.c.l.b16 %v3244
        %v3417 = vunpack.c.h.b16 %v3244
        %v3418 = vunpack.c.l.b16 %v3245
        %v3419 = vunpack.c.h.b16 %v3245
        %v3420 = vunpack.c.l.b16 %v3246
        %v3421 = vunpack.c.h.b16 %v3246
        %v3422 = vunpack.c.l.b16 %v3247
        %v3423 = vunpack.c.h.b16 %v3247
        %v3424 = vunpack.c.l.b16 %v3248
        %v3425 = vunpack.c.h.b16 %v3248
        %v3426 = vunpack.c.l.b16 %v3249
        %v3427 = vunpack.c.h.b16 %v3249
        %v3428 = vunpack.c.l.b16 %v3250
        %v3429 = vunpack.c.h.b16 %v3250
        %v3430 = vunpack.c.l.b16 %v3251
        %v3431 = vunpack.c.h.b16 %v3251
        %v3432 = vunpack.c.l.b16 %v3252
        %v3433 = vunpack.c.h.b16 %v3252
        %v3434 = vunpack.c.l.b16 %v3253
        %v3435 = vunpack.c.h.b16 %v3253
        %v3436 = vunpack.c.l.b16 %v3254
        %v3437 = vunpack.c.h.b16 %v3254
        %v3438 = vunpack.c.l.b16 %v3255
        %v3439 = vunpack.c.h.b16 %v3255
        %v3440 = vunpack.c.l.b16 %v3256
        %v3441 = vunpack.c.h.b16 %v3256
        %v3442 = vunpack.c.l.b16 %v3257
        %v3443 = vunpack.c.h.b16 %v3257
        %v3444 = vunpack.c.l.b16 %v3258
        %v3445 = vunpack.c.h.b16 %v3258
        %v3446 = vunpack.c.l.b16 %v3259
        %v3447 = vunpack.c.h.b16 %v3259
        %v3448 = vunpack.c.l.b16 %v3260
        %v3449 = vunpack.c.h.b16 %v3260
        %v3450 = vunpack.c.l.b16 %v3261
        %v3451 = vunpack.c.h.b16 %v3261
        %v3452 = vunpack.c.l.b16 %v3262
        %v3453 = vunpack.c.h.b16 %v3262
        %v3454 = vunpack.c.l.b16 %v3263
        %v3455 = vunpack.c.h.b16 %v3263
        %v3456 = vunpack.c.l.b16 %v3264
        %v3457 = vunpack.c.h.b16 %v3264
        %v3458 = vunpack.c.l.b16 %v3265
        %v3459 = vunpack.c.h.b16 %v3265
        %v3460 = vunpack.c.l.b16 %v3266
        %v3461 = vunpack.c.h.b16 %v3266
        %v3462 = vunpack.c.l.b16 %v3267
        %v3463 = vunpack.c.h.b16 %v3267
        %v3464 = vunpack.c.l.b16 %v3268
        %v3465 = vunpack.c.h.b16 %v3268
        %v3466 = vunpack.c.l.b16 %v3269
        %v3467 = vunpack.c.h.b16 %v3269
        %v3468 = vunpack.c.l.b16 %v3270
        %v3469 = vunpack.c.h.b16 %v3270
        %v3470 = vunpack.c.l.b16 %v3271
        %v3471 = vunpack.c.h.b16 %v3271
        %v3472 = vunpack.c.l.b16 %v3272
        %v3473 = vunpack.c.h.b16 %v3272
        %v3474 = vunpack.c.l.b16 %v3273
        %v3475 = vunpack.c.h.b16 %v3273
        %v3476 = vpack.c.b16 %v3352, %v3348
        %v3477 = vpack.c.b16 %v3353, %v3349
        %v3478 = vpack.c.b16 %v3354, %v3350
        %v3479 = vpack.c.b16 %v3355, %v3351
        %v3480 = vpack.c.b16 %v3360, %v3356
        %v3481 = vpack.c.b16 %v3361, %v3357
        %v3482 = vpack.c.b16 %v3362, %v3358
        %v3483 = vpack.c.b16 %v3363, %v3359
        %v3484 = vpack.c.b16 %v3368, %v3364
        %v3485 = vpack.c.b16 %v3369, %v3365
        %v3486 = vpack.c.b16 %v3370, %v3366
        %v3487 = vpack.c.b16 %v3371, %v3367
        %v3488 = vpack.c.b16 %v3376, %v3372
        %v3489 = vpack.c.b16 %v3377, %v3373
        %v3490 = vpack.c.b16 %v3378, %v3374
        %v3491 = vpack.c.b16 %v3379, %v3375
        %v3492 = vpack.c.b16 %v3384, %v3380
        %v3493 = vpack.c.b16 %v3385, %v3381
        %v3494 = vpack.c.b16 %v3386, %v3382
        %v3495 = vpack.c.b16 %v3387, %v3383
        %v3496 = vpack.c.b16 %v3392, %v3388
        %v3497 = vpack.c.b16 %v3393, %v3389
        %v3498 = vpack.c.b16 %v3394, %v3390
        %v3499 = vpack.c.b16 %v3395, %v3391
        %v3500 = vpack.c.b16 %v3400, %v3396
        %v3501 = vpack.c.b16 %v3401, %v3397
        %v3502 = vpack.c.b16 %v3402, %v3398
        %v3503 = vpack.c.b16 %v3403, %v3399
        %v3504 = vpack.c.b16 %v3408, %v3404
        %v3505 = vpack.c.b16 %v3409, %v3405
        %v3506 = vpack.c.b16 %v3410, %v3406
        %v3507 = vpack.c.b16 %v3411, %v3407
        %v3508 = vpack.c.b16 %v3416, %v3412
        %v3509 = vpack.c.b16 %v3417, %v3413
        %v3510 = vpack.c.b16 %v3418, %v3414
        %v3511 = vpack.c.b16 %v3419, %v3415
        %v3512 = vpack.c.b16 %v3424, %v3420
        %v3513 = vpack.c.b16 %v3425, %v3421
        %v3514 = vpack.c.b16 %v3426, %v3422
        %v3515 = vpack.c.b16 %v3427, %v3423
        %v3516 = vpack.c.b16 %v3432, %v3428
        %v3517 = vpack.c.b16 %v3433, %v3429
        %v3518 = vpack.c.b16 %v3434, %v3430
        %v3519 = vpack.c.b16 %v3435, %v3431
        %v3520 = vpack.c.b16 %v3440, %v3436
        %v3521 = vpack.c.b16 %v3441, %v3437
        %v3522 = vpack.c.b16 %v3442, %v3438
        %v3523 = vpack.c.b16 %v3443, %v3439
        %v3524 = vpack.c.b16 %v3448, %v3444
        %v3525 = vpack.c.b16 %v3449, %v3445
        %v3526 = vpack.c.b16 %v3450, %v3446
        %v3527 = vpack.c.b16 %v3451, %v3447
        %v3528 = vpack.c.b16 %v3456, %v3452
        %v3529 = vpack.c.b16 %v3457, %v3453
        %v3530 = vpack.c.b16 %v3458, %v3454
        %v3531 = vpack.c.b16 %v3459, %v3455
        %v3532 = vpack.c.b16 %v3464, %v3460
        %v3533 = vpack.c.b16 %v3465, %v3461
        %v3534 = vpack.c.b16 %v3466, %v3462
        %v3535 = vpack.c.b16 %v3467, %v3463
        %v3536 = vpack.c.b16 %v3472, %v3468
        %v3537 = vpack.c.b16 %v3473, %v3469
        %v3538 = vpack.c.b16 %v3474, %v3470
        %v3539 = vpack.c.b16 %v3475, %v3471
        %3604 = vmatpush.bf16.msra.mxu0 %v3504
        %3605 = vmatpush.bf16.msra.mxu0 %v3500
        %3606 = vmatpush.bf16.msra.mxu0 %v3496
        %3607 = vmatpush.bf16.msra.mxu0 %v3492
        %3608 = vmatpush.bf16.msra.mxu0 %v3488
        %3609 = vmatpush.bf16.msra.mxu0 %v3484
        %3610 = vmatpush.bf16.msra.mxu0 %v3480
        %3611 = vmatpush.bf16.msra.mxu0 %v3476
        %3612 = vmatmul.bf16.gmra.mxu0 %v3208
        %v3613 = vpop.f32.mrf.mxu0
        %v3614 = vadd.f32 %v3276, %v3613
        %v3615 = vpop.f32.mrf.mxu0
        %v3616 = vadd.f32 %v3276, %v3615
        %3617 = vdwg.mxu0
        %3618 = vmatpush.bf16.msra.mxu0 %v3536
        %3619 = vmatpush.bf16.msra.mxu0 %v3532
        %3620 = vmatpush.bf16.msra.mxu0 %v3528
        %3621 = vmatpush.bf16.msra.mxu0 %v3524
        %3622 = vmatpush.bf16.msra.mxu0 %v3520
        %3623 = vmatpush.bf16.msra.mxu0 %v3516
        %3624 = vmatpush.bf16.msra.mxu0 %v3512
        %3625 = vmatpush.bf16.msra.mxu0 %v3508
        %3626 = vmatmul.bf16.gmra.mxu0 %v3209
        %v3627 = vpop.f32.mrf.mxu0
        %v3628 = vadd.f32 %v3614, %v3627
        %v3629 = vpop.f32.mrf.mxu0
        %v3630 = vadd.f32 %v3616, %v3629
        %3631 = vdwg.mxu0
        %3632 = vmatpush.bf16.msra.mxu0 %v3505
        %3633 = vmatpush.bf16.msra.mxu0 %v3501
        %3634 = vmatpush.bf16.msra.mxu0 %v3497
        %3635 = vmatpush.bf16.msra.mxu0 %v3493
        %3636 = vmatpush.bf16.msra.mxu0 %v3489
        %3637 = vmatpush.bf16.msra.mxu0 %v3485
        %3638 = vmatpush.bf16.msra.mxu0 %v3481
        %3639 = vmatpush.bf16.msra.mxu0 %v3477
        %3640 = vmatmul.bf16.gmra.mxu0 %v3208
        %v3641 = vpop.f32.mrf.mxu0
        %v3642 = vadd.f32 %v3277, %v3641
        %v3643 = vpop.f32.mrf.mxu0
        %v3644 = vadd.f32 %v3277, %v3643
        %3645 = vdwg.mxu0
        %3646 = vmatpush.bf16.msra.mxu0 %v3537
        %3647 = vmatpush.bf16.msra.mxu0 %v3533
        %3648 = vmatpush.bf16.msra.mxu0 %v3529
        %3649 = vmatpush.bf16.msra.mxu0 %v3525
        %3650 = vmatpush.bf16.msra.mxu0 %v3521
        %3651 = vmatpush.bf16.msra.mxu0 %v3517
        %3652 = vmatpush.bf16.msra.mxu0 %v3513
        %3653 = vmatpush.bf16.msra.mxu0 %v3509
        %3654 = vmatmul.bf16.gmra.mxu0 %v3209
        %v3655 = vpop.f32.mrf.mxu0
        %v3656 = vadd.f32 %v3642, %v3655
        %v3657 = vpop.f32.mrf.mxu0
        %v3658 = vadd.f32 %v3644, %v3657
        %3659 = vdwg.mxu0
        %3660 = vmatpush.bf16.msra.mxu0 %v3506
        %3661 = vmatpush.bf16.msra.mxu0 %v3502
        %3662 = vmatpush.bf16.msra.mxu0 %v3498
        %3663 = vmatpush.bf16.msra.mxu0 %v3494
        %3664 = vmatpush.bf16.msra.mxu0 %v3490
        %3665 = vmatpush.bf16.msra.mxu0 %v3486
        %3666 = vmatpush.bf16.msra.mxu0 %v3482
        %3667 = vmatpush.bf16.msra.mxu0 %v3478
        %3668 = vmatmul.bf16.gmra.mxu0 %v3208
        %v3669 = vpop.f32.mrf.mxu0
        %v3670 = vadd.f32 %v3278, %v3669
        %v3671 = vpop.f32.mrf.mxu0
        %v3672 = vadd.f32 %v3278, %v3671
        %3673 = vdwg.mxu0
        %3674 = vmatpush.bf16.msra.mxu0 %v3538
        %3675 = vmatpush.bf16.msra.mxu0 %v3534
        %3676 = vmatpush.bf16.msra.mxu0 %v3530
        %3677 = vmatpush.bf16.msra.mxu0 %v3526
        %3678 = vmatpush.bf16.msra.mxu0 %v3522
        %3679 = vmatpush.bf16.msra.mxu0 %v3518
        %3680 = vmatpush.bf16.msra.mxu0 %v3514
        %3681 = vmatpush.bf16.msra.mxu0 %v3510
        %3682 = vmatmul.bf16.gmra.mxu0 %v3209
        %v3683 = vpop.f32.mrf.mxu0
        %v3684 = vadd.f32 %v3670, %v3683
        %v3685 = vpop.f32.mrf.mxu0
        %v3686 = vadd.f32 %v3672, %v3685
        %3687 = vdwg.mxu0
        %3688 = vmatpush.bf16.msra.mxu0 %v3507
        %3689 = vmatpush.bf16.msra.mxu0 %v3503
        %3690 = vmatpush.bf16.msra.mxu0 %v3499
        %3691 = vmatpush.bf16.msra.mxu0 %v3495
        %3692 = vmatpush.bf16.msra.mxu0 %v3491
        %3693 = vmatpush.bf16.msra.mxu0 %v3487
        %3694 = vmatpush.bf16.msra.mxu0 %v3483
        %3695 = vmatpush.bf16.msra.mxu0 %v3479
        %3696 = vmatmul.bf16.gmra.mxu0 %v3208
        %v3697 = vpop.f32.mrf.mxu0
        %v3698 = vadd.f32 %v3279, %v3697
        %v3699 = vpop.f32.mrf.mxu0
        %v3700 = vadd.f32 %v3279, %v3699
        %3701 = vdwg.mxu0
        %3702 = vmatpush.bf16.msra.mxu0 %v3539
        %3703 = vmatpush.bf16.msra.mxu0 %v3535
        %3704 = vmatpush.bf16.msra.mxu0 %v3531
        %3705 = vmatpush.bf16.msra.mxu0 %v3527
        %3706 = vmatpush.bf16.msra.mxu0 %v3523
        %3707 = vmatpush.bf16.msra.mxu0 %v3519
        %3708 = vmatpush.bf16.msra.mxu0 %v3515
        %3709 = vmatpush.bf16.msra.mxu0 %v3511
        %3710 = vmatmul.bf16.gmra.mxu0 %v3209
        %v3711 = vpop.f32.mrf.mxu0
        %v3712 = vadd.f32 %v3698, %v3711
        %v3713 = vpop.f32.mrf.mxu0
        %v3714 = vadd.f32 %v3700, %v3713
        %3715 = vdwg.mxu0
        %v3716 = vmul.f32 %v3628, 0.5
        %v3717 = vmul.f32 %v3656, 0.5
        %v3718 = vmul.f32 %v3684, 0.5
        %v3719 = vmul.f32 %v3712, 0.5
        %v3720 = vmul.f32 %v3630, 0.5
        %v3721 = vmul.f32 %v3658, 0.5
        %v3722 = vmul.f32 %v3686, 0.5
        %v3723 = vmul.f32 %v3714, 0.5
        %v3724 = vmul.f32 %v3628, 0.70710677
        %v3725 = vmul.f32 %v3656, 0.70710677
        %v3726 = vmul.f32 %v3684, 0.70710677
        %v3727 = vmul.f32 %v3712, 0.70710677
        %v3728 = vmul.f32 %v3630, 0.70710677
        %v3729 = vmul.f32 %v3658, 0.70710677
        %v3730 = vmul.f32 %v3686, 0.70710677
        %v3731 = vmul.f32 %v3714, 0.70710677
        %v3732 = vmul.f32 %v3724, %v3724
        %v3733 = vmin.f32 16.0, %v3732
        %v3734 = vmul.f32 %v3733, 2.1237322e-06
        %v3735 = vadd.f32 %v3734, 0.00028619796
        %v3736 = vmul.f32 %v3733, %v3735
        %v3737 = vadd.f32 %v3736, 0.0036580483
        %v3738 = vmul.f32 %v3733, %v3737
        %v3739 = vadd.f32 %v3738, 0.05243302
        %v3740 = vmul.f32 %v3733, %v3739
        %v3741 = vadd.f32 %v3740, 0.18741608
        %v3742 = vmul.f32 %v3733, %v3741
        %v3743 = vadd.f32 %v3742, 1.1283791
        %v3744 = vmul.f32 %v3724, %v3743
        %v3745 = vmul.f32 %v3733, 3.8918573e-05
        %v3746 = vadd.f32 %v3745, 0.001143296
        %v3747 = vmul.f32 %v3733, %v3746
        %v3748 = vadd.f32 %v3747, 0.014752088
        %v3749 = vmul.f32 %v3733, %v3748
        %v3750 = vadd.f32 %v3749, 0.112945676
        %v3751 = vmul.f32 %v3733, %v3750
        %v3752 = vadd.f32 %v3751, 0.4994258
        %v3753 = vmul.f32 %v3733, %v3752
        %v3754 = vadd.f32 %v3753, 1.0
        %v3755 = vrcp.pop %v3754
        %v3756 = vmul.f32 %v3754, %v3755
        %v3757 = vsub.f32 1.0, %v3756
        %v3758 = vmul.f32 %v3755, %v3757
        %v3759 = vadd.f32 %v3755, %v3758
        %vm3760 = vweird.f32 %v3754
        %vm3761 = vweird.f32 %v3755
        %vm3762 = vmor %vm3760, %vm3761
        %v3763 = vsel %vm3762, %v3755, %v3759
        %v3764 = vand.u32 2147483647, %v3754
        %vm3765 = vcmp.eq.f32.partialorder %v3764, 8.507059e+37
        %v3766 = vand.u32 %v3754, 2147483648
        %v3767 = vor.u32 1.1754944e-38, %v3766
        %v3768 = vsel %vm3765, %v3767, %v3763
        %v3769 = vmul.f32 %v3744, %v3768
        %v3770 = vmin.f32 %v3769, 1.0
        %v3771 = vmax.f32 %v3770, -1.0
        %v3772 = vmul.f32 %v3725, %v3725
        %v3773 = vmin.f32 16.0, %v3772
        %v3774 = vmul.f32 %v3773, 2.1237322e-06
        %v3775 = vadd.f32 %v3774, 0.00028619796
        %v3776 = vmul.f32 %v3773, %v3775
        %v3777 = vadd.f32 %v3776, 0.0036580483
        %v3778 = vmul.f32 %v3773, %v3777
        %v3779 = vadd.f32 %v3778, 0.05243302
        %v3780 = vmul.f32 %v3773, %v3779
        %v3781 = vadd.f32 %v3780, 0.18741608
        %v3782 = vmul.f32 %v3773, %v3781
        %v3783 = vadd.f32 %v3782, 1.1283791
        %v3784 = vmul.f32 %v3725, %v3783
        %v3785 = vmul.f32 %v3773, 3.8918573e-05
        %v3786 = vadd.f32 %v3785, 0.001143296
        %v3787 = vmul.f32 %v3773, %v3786
        %v3788 = vadd.f32 %v3787, 0.014752088
        %v3789 = vmul.f32 %v3773, %v3788
        %v3790 = vadd.f32 %v3789, 0.112945676
        %v3791 = vmul.f32 %v3773, %v3790
        %v3792 = vadd.f32 %v3791, 0.4994258
        %v3793 = vmul.f32 %v3773, %v3792
        %v3794 = vadd.f32 %v3793, 1.0
        %v3795 = vrcp.pop %v3794
        %v3796 = vmul.f32 %v3794, %v3795
        %v3797 = vsub.f32 1.0, %v3796
        %v3798 = vmul.f32 %v3795, %v3797
        %v3799 = vadd.f32 %v3795, %v3798
        %vm3800 = vweird.f32 %v3794
        %vm3801 = vweird.f32 %v3795
        %vm3802 = vmor %vm3800, %vm3801
        %v3803 = vsel %vm3802, %v3795, %v3799
        %v3804 = vand.u32 2147483647, %v3794
        %vm3805 = vcmp.eq.f32.partialorder %v3804, 8.507059e+37
        %v3806 = vand.u32 %v3794, 2147483648
        %v3807 = vor.u32 1.1754944e-38, %v3806
        %v3808 = vsel %vm3805, %v3807, %v3803
        %v3809 = vmul.f32 %v3784, %v3808
        %v3810 = vmin.f32 %v3809, 1.0
        %v3811 = vmax.f32 %v3810, -1.0
        %v3812 = vmul.f32 %v3726, %v3726
        %v3813 = vmin.f32 16.0, %v3812
        %v3814 = vmul.f32 %v3813, 2.1237322e-06
        %v3815 = vadd.f32 %v3814, 0.00028619796
        %v3816 = vmul.f32 %v3813, %v3815
        %v3817 = vadd.f32 %v3816, 0.0036580483
        %v3818 = vmul.f32 %v3813, %v3817
        %v3819 = vadd.f32 %v3818, 0.05243302
        %v3820 = vmul.f32 %v3813, %v3819
        %v3821 = vadd.f32 %v3820, 0.18741608
        %v3822 = vmul.f32 %v3813, %v3821
        %v3823 = vadd.f32 %v3822, 1.1283791
        %v3824 = vmul.f32 %v3726, %v3823
        %v3825 = vmul.f32 %v3813, 3.8918573e-05
        %v3826 = vadd.f32 %v3825, 0.001143296
        %v3827 = vmul.f32 %v3813, %v3826
        %v3828 = vadd.f32 %v3827, 0.014752088
        %v3829 = vmul.f32 %v3813, %v3828
        %v3830 = vadd.f32 %v3829, 0.112945676
        %v3831 = vmul.f32 %v3813, %v3830
        %v3832 = vadd.f32 %v3831, 0.4994258
        %v3833 = vmul.f32 %v3813, %v3832
        %v3834 = vadd.f32 %v3833, 1.0
        %v3835 = vrcp.pop %v3834
        %v3836 = vmul.f32 %v3834, %v3835
        %v3837 = vsub.f32 1.0, %v3836
        %v3838 = vmul.f32 %v3835, %v3837
        %v3839 = vadd.f32 %v3835, %v3838
        %vm3840 = vweird.f32 %v3834
        %vm3841 = vweird.f32 %v3835
        %vm3842 = vmor %vm3840, %vm3841
        %v3843 = vsel %vm3842, %v3835, %v3839
        %v3844 = vand.u32 2147483647, %v3834
        %vm3845 = vcmp.eq.f32.partialorder %v3844, 8.507059e+37
        %v3846 = vand.u32 %v3834, 2147483648
        %v3847 = vor.u32 1.1754944e-38, %v3846
        %v3848 = vsel %vm3845, %v3847, %v3843
        %v3849 = vmul.f32 %v3824, %v3848
        %v3850 = vmin.f32 %v3849, 1.0
        %v3851 = vmax.f32 %v3850, -1.0
        %v3852 = vmul.f32 %v3727, %v3727
        %v3853 = vmin.f32 16.0, %v3852
        %v3854 = vmul.f32 %v3853, 2.1237322e-06
        %v3855 = vadd.f32 %v3854, 0.00028619796
        %v3856 = vmul.f32 %v3853, %v3855
        %v3857 = vadd.f32 %v3856, 0.0036580483
        %v3858 = vmul.f32 %v3853, %v3857
        %v3859 = vadd.f32 %v3858, 0.05243302
        %v3860 = vmul.f32 %v3853, %v3859
        %v3861 = vadd.f32 %v3860, 0.18741608
        %v3862 = vmul.f32 %v3853, %v3861
        %v3863 = vadd.f32 %v3862, 1.1283791
        %v3864 = vmul.f32 %v3727, %v3863
        %v3865 = vmul.f32 %v3853, 3.8918573e-05
        %v3866 = vadd.f32 %v3865, 0.001143296
        %v3867 = vmul.f32 %v3853, %v3866
        %v3868 = vadd.f32 %v3867, 0.014752088
        %v3869 = vmul.f32 %v3853, %v3868
        %v3870 = vadd.f32 %v3869, 0.112945676
        %v3871 = vmul.f32 %v3853, %v3870
        %v3872 = vadd.f32 %v3871, 0.4994258
        %v3873 = vmul.f32 %v3853, %v3872
        %v3874 = vadd.f32 %v3873, 1.0
        %v3875 = vrcp.pop %v3874
        %v3876 = vmul.f32 %v3874, %v3875
        %v3877 = vsub.f32 1.0, %v3876
        %v3878 = vmul.f32 %v3875, %v3877
        %v3879 = vadd.f32 %v3875, %v3878
        %vm3880 = vweird.f32 %v3874
        %vm3881 = vweird.f32 %v3875
        %vm3882 = vmor %vm3880, %vm3881
        %v3883 = vsel %vm3882, %v3875, %v3879
        %v3884 = vand.u32 2147483647, %v3874
        %vm3885 = vcmp.eq.f32.partialorder %v3884, 8.507059e+37
        %v3886 = vand.u32 %v3874, 2147483648
        %v3887 = vor.u32 1.1754944e-38, %v3886
        %v3888 = vsel %vm3885, %v3887, %v3883
        %v3889 = vmul.f32 %v3864, %v3888
        %v3890 = vmin.f32 %v3889, 1.0
        %v3891 = vmax.f32 %v3890, -1.0
        %v3892 = vmul.f32 %v3728, %v3728
        %v3893 = vmin.f32 16.0, %v3892
        %v3894 = vmul.f32 %v3893, 2.1237322e-06
        %v3895 = vadd.f32 %v3894, 0.00028619796
        %v3896 = vmul.f32 %v3893, %v3895
        %v3897 = vadd.f32 %v3896, 0.0036580483
        %v3898 = vmul.f32 %v3893, %v3897
        %v3899 = vadd.f32 %v3898, 0.05243302
        %v3900 = vmul.f32 %v3893, %v3899
        %v3901 = vadd.f32 %v3900, 0.18741608
        %v3902 = vmul.f32 %v3893, %v3901
        %v3903 = vadd.f32 %v3902, 1.1283791
        %v3904 = vmul.f32 %v3728, %v3903
        %v3905 = vmul.f32 %v3893, 3.8918573e-05
        %v3906 = vadd.f32 %v3905, 0.001143296
        %v3907 = vmul.f32 %v3893, %v3906
        %v3908 = vadd.f32 %v3907, 0.014752088
        %v3909 = vmul.f32 %v3893, %v3908
        %v3910 = vadd.f32 %v3909, 0.112945676
        %v3911 = vmul.f32 %v3893, %v3910
        %v3912 = vadd.f32 %v3911, 0.4994258
        %v3913 = vmul.f32 %v3893, %v3912
        %v3914 = vadd.f32 %v3913, 1.0
        %v3915 = vrcp.pop %v3914
        %v3916 = vmul.f32 %v3914, %v3915
        %v3917 = vsub.f32 1.0, %v3916
        %v3918 = vmul.f32 %v3915, %v3917
        %v3919 = vadd.f32 %v3915, %v3918
        %vm3920 = vweird.f32 %v3914
        %vm3921 = vweird.f32 %v3915
        %vm3922 = vmor %vm3920, %vm3921
        %v3923 = vsel %vm3922, %v3915, %v3919
        %v3924 = vand.u32 2147483647, %v3914
        %vm3925 = vcmp.eq.f32.partialorder %v3924, 8.507059e+37
        %v3926 = vand.u32 %v3914, 2147483648
        %v3927 = vor.u32 1.1754944e-38, %v3926
        %v3928 = vsel %vm3925, %v3927, %v3923
        %v3929 = vmul.f32 %v3904, %v3928
        %v3930 = vmin.f32 %v3929, 1.0
        %v3931 = vmax.f32 %v3930, -1.0
        %v3932 = vmul.f32 %v3729, %v3729
        %v3933 = vmin.f32 16.0, %v3932
        %v3934 = vmul.f32 %v3933, 2.1237322e-06
        %v3935 = vadd.f32 %v3934, 0.00028619796
        %v3936 = vmul.f32 %v3933, %v3935
        %v3937 = vadd.f32 %v3936, 0.0036580483
        %v3938 = vmul.f32 %v3933, %v3937
        %v3939 = vadd.f32 %v3938, 0.05243302
        %v3940 = vmul.f32 %v3933, %v3939
        %v3941 = vadd.f32 %v3940, 0.18741608
        %v3942 = vmul.f32 %v3933, %v3941
        %v3943 = vadd.f32 %v3942, 1.1283791
        %v3944 = vmul.f32 %v3729, %v3943
        %v3945 = vmul.f32 %v3933, 3.8918573e-05
        %v3946 = vadd.f32 %v3945, 0.001143296
        %v3947 = vmul.f32 %v3933, %v3946
        %v3948 = vadd.f32 %v3947, 0.014752088
        %v3949 = vmul.f32 %v3933, %v3948
        %v3950 = vadd.f32 %v3949, 0.112945676
        %v3951 = vmul.f32 %v3933, %v3950
        %v3952 = vadd.f32 %v3951, 0.4994258
        %v3953 = vmul.f32 %v3933, %v3952
        %v3954 = vadd.f32 %v3953, 1.0
        %v3955 = vrcp.pop %v3954
        %v3956 = vmul.f32 %v3954, %v3955
        %v3957 = vsub.f32 1.0, %v3956
        %v3958 = vmul.f32 %v3955, %v3957
        %v3959 = vadd.f32 %v3955, %v3958
        %vm3960 = vweird.f32 %v3954
        %vm3961 = vweird.f32 %v3955
        %vm3962 = vmor %vm3960, %vm3961
        %v3963 = vsel %vm3962, %v3955, %v3959
        %v3964 = vand.u32 2147483647, %v3954
        %vm3965 = vcmp.eq.f32.partialorder %v3964, 8.507059e+37
        %v3966 = vand.u32 %v3954, 2147483648
        %v3967 = vor.u32 1.1754944e-38, %v3966
        %v3968 = vsel %vm3965, %v3967, %v3963
        %v3969 = vmul.f32 %v3944, %v3968
        %v3970 = vmin.f32 %v3969, 1.0
        %v3971 = vmax.f32 %v3970, -1.0
        %v3972 = vmul.f32 %v3730, %v3730
        %v3973 = vmin.f32 16.0, %v3972
        %v3974 = vmul.f32 %v3973, 2.1237322e-06
        %v3975 = vadd.f32 %v3974, 0.00028619796
        %v3976 = vmul.f32 %v3973, %v3975
        %v3977 = vadd.f32 %v3976, 0.0036580483
        %v3978 = vmul.f32 %v3973, %v3977
        %v3979 = vadd.f32 %v3978, 0.05243302
        %v3980 = vmul.f32 %v3973, %v3979
        %v3981 = vadd.f32 %v3980, 0.18741608
        %v3982 = vmul.f32 %v3973, %v3981
        %v3983 = vadd.f32 %v3982, 1.1283791
        %v3984 = vmul.f32 %v3730, %v3983
        %v3985 = vmul.f32 %v3973, 3.8918573e-05
        %v3986 = vadd.f32 %v3985, 0.001143296
        %v3987 = vmul.f32 %v3973, %v3986
        %v3988 = vadd.f32 %v3987, 0.014752088
        %v3989 = vmul.f32 %v3973, %v3988
        %v3990 = vadd.f32 %v3989, 0.112945676
        %v3991 = vmul.f32 %v3973, %v3990
        %v3992 = vadd.f32 %v3991, 0.4994258
        %v3993 = vmul.f32 %v3973, %v3992
        %v3994 = vadd.f32 %v3993, 1.0
        %v3995 = vrcp.pop %v3994
        %v3996 = vmul.f32 %v3994, %v3995
        %v3997 = vsub.f32 1.0, %v3996
        %v3998 = vmul.f32 %v3995, %v3997
        %v3999 = vadd.f32 %v3995, %v3998
        %vm4000 = vweird.f32 %v3994
        %vm4001 = vweird.f32 %v3995
        %vm4002 = vmor %vm4000, %vm4001
        %v4003 = vsel %vm4002, %v3995, %v3999
        %v4004 = vand.u32 2147483647, %v3994
        %vm4005 = vcmp.eq.f32.partialorder %v4004, 8.507059e+37
        %v4006 = vand.u32 %v3994, 2147483648
        %v4007 = vor.u32 1.1754944e-38, %v4006
        %v4008 = vsel %vm4005, %v4007, %v4003
        %v4009 = vmul.f32 %v3984, %v4008
        %v4010 = vmin.f32 %v4009, 1.0
        %v4011 = vmax.f32 %v4010, -1.0
        %v4012 = vmul.f32 %v3731, %v3731
        %v4013 = vmin.f32 16.0, %v4012
        %v4014 = vmul.f32 %v4013, 2.1237322e-06
        %v4015 = vadd.f32 %v4014, 0.00028619796
        %v4016 = vmul.f32 %v4013, %v4015
        %v4017 = vadd.f32 %v4016, 0.0036580483
        %v4018 = vmul.f32 %v4013, %v4017
        %v4019 = vadd.f32 %v4018, 0.05243302
        %v4020 = vmul.f32 %v4013, %v4019
        %v4021 = vadd.f32 %v4020, 0.18741608
        %v4022 = vmul.f32 %v4013, %v4021
        %v4023 = vadd.f32 %v4022, 1.1283791
        %v4024 = vmul.f32 %v3731, %v4023
        %v4025 = vmul.f32 %v4013, 3.8918573e-05
        %v4026 = vadd.f32 %v4025, 0.001143296
        %v4027 = vmul.f32 %v4013, %v4026
        %v4028 = vadd.f32 %v4027, 0.014752088
        %v4029 = vmul.f32 %v4013, %v4028
        %v4030 = vadd.f32 %v4029, 0.112945676
        %v4031 = vmul.f32 %v4013, %v4030
        %v4032 = vadd.f32 %v4031, 0.4994258
        %v4033 = vmul.f32 %v4013, %v4032
        %v4034 = vadd.f32 %v4033, 1.0
        %v4035 = vrcp.pop %v4034
        %v4036 = vmul.f32 %v4034, %v4035
        %v4037 = vsub.f32 1.0, %v4036
        %v4038 = vmul.f32 %v4035, %v4037
        %v4039 = vadd.f32 %v4035, %v4038
        %vm4040 = vweird.f32 %v4034
        %vm4041 = vweird.f32 %v4035
        %vm4042 = vmor %vm4040, %vm4041
        %v4043 = vsel %vm4042, %v4035, %v4039
        %v4044 = vand.u32 2147483647, %v4034
        %vm4045 = vcmp.eq.f32.partialorder %v4044, 8.507059e+37
        %v4046 = vand.u32 %v4034, 2147483648
        %v4047 = vor.u32 1.1754944e-38, %v4046
        %v4048 = vsel %vm4045, %v4047, %v4043
        %v4049 = vmul.f32 %v4024, %v4048
        %v4050 = vmin.f32 %v4049, 1.0
        %v4051 = vmax.f32 %v4050, -1.0
        %v4052 = vadd.f32 %v3771, 1.0
        %v4053 = vadd.f32 %v3811, 1.0
        %v4054 = vadd.f32 %v3851, 1.0
        %v4055 = vadd.f32 %v3891, 1.0
        %v4056 = vadd.f32 %v3931, 1.0
        %v4057 = vadd.f32 %v3971, 1.0
        %v4058 = vadd.f32 %v4011, 1.0
        %v4059 = vadd.f32 %v4051, 1.0
        %v4060 = vmul.f32 %v3716, %v4052
        %v4061 = vmul.f32 %v3717, %v4053
        %v4062 = vmul.f32 %v3718, %v4054
        %v4063 = vmul.f32 %v3719, %v4055
        %v4064 = vmul.f32 %v3720, %v4056
        %v4065 = vmul.f32 %v3721, %v4057
        %v4066 = vmul.f32 %v3722, %v4058
        %v4067 = vmul.f32 %v3723, %v4059
        %v4068 = vpack.c.bf16 %v4064, %v4060
        %v4069 = vpack.c.bf16 %v4065, %v4061
        %v4070 = vpack.c.bf16 %v4066, %v4062
        %v4071 = vpack.c.bf16 %v4067, %v4063
        %v4072 = vld [vmem:[%s704] sm:$0xff]
        %v4073 = vld [vmem:[%s704 + $0x8] sm:$0xff]
        %v4074 = vld [vmem:[%s704 + $0x10] sm:$0xff]
        %v4075 = vld [vmem:[%s704 + $0x18] sm:$0xff]
        %v4076 = vld [vmem:[%s704 + $0x20] sm:$0xff]
        %v4077 = vld [vmem:[%s704 + $0x28] sm:$0xff]
        %v4078 = vld [vmem:[%s704 + $0x30] sm:$0xff]
        %v4079 = vld [vmem:[%s704 + $0x38] sm:$0xff]
        %v4080 = vld [vmem:[%s704 + $0x40] sm:$0xff]
        %v4081 = vld [vmem:[%s704 + $0x48] sm:$0xff]
        %v4082 = vld [vmem:[%s704 + $0x50] sm:$0xff]
        %v4083 = vld [vmem:[%s704 + $0x58] sm:$0xff]
        %v4084 = vld [vmem:[%s704 + $0x60] sm:$0xff]
        %v4085 = vld [vmem:[%s704 + $0x68] sm:$0xff]
        %v4086 = vld [vmem:[%s704 + $0x70] sm:$0xff]
        %v4087 = vld [vmem:[%s704 + $0x78] sm:$0xff]
        %v4088 = vld [vmem:[%s704 + $0x80] sm:$0xff]
        %v4089 = vld [vmem:[%s704 + $0x88] sm:$0xff]
        %v4090 = vld [vmem:[%s704 + $0x90] sm:$0xff]
        %v4091 = vld [vmem:[%s704 + $0x98] sm:$0xff]
        %v4092 = vld [vmem:[%s704 + $0xa0] sm:$0xff]
        %v4093 = vld [vmem:[%s704 + $0xa8] sm:$0xff]
        %v4094 = vld [vmem:[%s704 + $0xb0] sm:$0xff]
        %v4095 = vld [vmem:[%s704 + $0xb8] sm:$0xff]
        %v4096 = vld [vmem:[%s704 + $0xc0] sm:$0xff]
        %v4097 = vld [vmem:[%s704 + $0xc8] sm:$0xff]
        %v4098 = vld [vmem:[%s704 + $0xd0] sm:$0xff]
        %v4099 = vld [vmem:[%s704 + $0xd8] sm:$0xff]
        %v4100 = vld [vmem:[%s704 + $0xe0] sm:$0xff]
        %v4101 = vld [vmem:[%s704 + $0xe8] sm:$0xff]
        %v4102 = vld [vmem:[%s704 + $0xf0] sm:$0xff]
        %v4103 = vld [vmem:[%s704 + $0xf8] sm:$0xff]
        %v4104 = vld [vmem:[%s704 + $0x100] sm:$0xff]
        %v4105 = vld [vmem:[%s704 + $0x108] sm:$0xff]
        %v4106 = vld [vmem:[%s704 + $0x110] sm:$0xff]
        %v4107 = vld [vmem:[%s704 + $0x118] sm:$0xff]
        %v4108 = vld [vmem:[%s704 + $0x120] sm:$0xff]
        %v4109 = vld [vmem:[%s704 + $0x128] sm:$0xff]
        %v4110 = vld [vmem:[%s704 + $0x130] sm:$0xff]
        %v4111 = vld [vmem:[%s704 + $0x138] sm:$0xff]
        %v4112 = vld [vmem:[%s704 + $0x140] sm:$0xff]
        %v4113 = vld [vmem:[%s704 + $0x148] sm:$0xff]
        %v4114 = vld [vmem:[%s704 + $0x150] sm:$0xff]
        %v4115 = vld [vmem:[%s704 + $0x158] sm:$0xff]
        %v4116 = vld [vmem:[%s704 + $0x160] sm:$0xff]
        %v4117 = vld [vmem:[%s704 + $0x168] sm:$0xff]
        %v4118 = vld [vmem:[%s704 + $0x170] sm:$0xff]
        %v4119 = vld [vmem:[%s704 + $0x178] sm:$0xff]
        %v4120 = vld [vmem:[%s704 + $0x180] sm:$0xff]
        %v4121 = vld [vmem:[%s704 + $0x188] sm:$0xff]
        %v4122 = vld [vmem:[%s704 + $0x190] sm:$0xff]
        %v4123 = vld [vmem:[%s704 + $0x198] sm:$0xff]
        %v4124 = vld [vmem:[%s704 + $0x1a0] sm:$0xff]
        %v4125 = vld [vmem:[%s704 + $0x1a8] sm:$0xff]
        %v4126 = vld [vmem:[%s704 + $0x1b0] sm:$0xff]
        %v4127 = vld [vmem:[%s704 + $0x1b8] sm:$0xff]
        %v4128 = vld [vmem:[%s704 + $0x1c0] sm:$0xff]
        %v4129 = vld [vmem:[%s704 + $0x1c8] sm:$0xff]
        %v4130 = vld [vmem:[%s704 + $0x1d0] sm:$0xff]
        %v4131 = vld [vmem:[%s704 + $0x1d8] sm:$0xff]
        %v4132 = vld [vmem:[%s704 + $0x1e0] sm:$0xff]
        %v4133 = vld [vmem:[%s704 + $0x1e8] sm:$0xff]
        %v4134 = vld [vmem:[%s704 + $0x1f0] sm:$0xff]
        %v4135 = vld [vmem:[%s704 + $0x1f8] sm:$0xff]
        %v4200 = vunpack.c.l.b16 %v4072
        %v4201 = vunpack.c.h.b16 %v4072
        %v4202 = vunpack.c.l.b16 %v4073
        %v4203 = vunpack.c.h.b16 %v4073
        %v4204 = vunpack.c.l.b16 %v4074
        %v4205 = vunpack.c.h.b16 %v4074
        %v4206 = vunpack.c.l.b16 %v4075
        %v4207 = vunpack.c.h.b16 %v4075
        %v4208 = vunpack.c.l.b16 %v4076
        %v4209 = vunpack.c.h.b16 %v4076
        %v4210 = vunpack.c.l.b16 %v4077
        %v4211 = vunpack.c.h.b16 %v4077
        %v4212 = vunpack.c.l.b16 %v4078
        %v4213 = vunpack.c.h.b16 %v4078
        %v4214 = vunpack.c.l.b16 %v4079
        %v4215 = vunpack.c.h.b16 %v4079
        %v4216 = vunpack.c.l.b16 %v4080
        %v4217 = vunpack.c.h.b16 %v4080
        %v4218 = vunpack.c.l.b16 %v4081
        %v4219 = vunpack.c.h.b16 %v4081
        %v4220 = vunpack.c.l.b16 %v4082
        %v4221 = vunpack.c.h.b16 %v4082
        %v4222 = vunpack.c.l.b16 %v4083
        %v4223 = vunpack.c.h.b16 %v4083
        %v4224 = vunpack.c.l.b16 %v4084
        %v4225 = vunpack.c.h.b16 %v4084
        %v4226 = vunpack.c.l.b16 %v4085
        %v4227 = vunpack.c.h.b16 %v4085
        %v4228 = vunpack.c.l.b16 %v4086
        %v4229 = vunpack.c.h.b16 %v4086
        %v4230 = vunpack.c.l.b16 %v4087
        %v4231 = vunpack.c.h.b16 %v4087
        %v4232 = vunpack.c.l.b16 %v4088
        %v4233 = vunpack.c.h.b16 %v4088
        %v4234 = vunpack.c.l.b16 %v4089
        %v4235 = vunpack.c.h.b16 %v4089
        %v4236 = vunpack.c.l.b16 %v4090
        %v4237 = vunpack.c.h.b16 %v4090
        %v4238 = vunpack.c.l.b16 %v4091
        %v4239 = vunpack.c.h.b16 %v4091
        %v4240 = vunpack.c.l.b16 %v4092
        %v4241 = vunpack.c.h.b16 %v4092
        %v4242 = vunpack.c.l.b16 %v4093
        %v4243 = vunpack.c.h.b16 %v4093
        %v4244 = vunpack.c.l.b16 %v4094
        %v4245 = vunpack.c.h.b16 %v4094
        %v4246 = vunpack.c.l.b16 %v4095
        %v4247 = vunpack.c.h.b16 %v4095
        %v4248 = vunpack.c.l.b16 %v4096
        %v4249 = vunpack.c.h.b16 %v4096
        %v4250 = vunpack.c.l.b16 %v4097
        %v4251 = vunpack.c.h.b16 %v4097
        %v4252 = vunpack.c.l.b16 %v4098
        %v4253 = vunpack.c.h.b16 %v4098
        %v4254 = vunpack.c.l.b16 %v4099
        %v4255 = vunpack.c.h.b16 %v4099
        %v4256 = vunpack.c.l.b16 %v4100
        %v4257 = vunpack.c.h.b16 %v4100
        %v4258 = vunpack.c.l.b16 %v4101
        %v4259 = vunpack.c.h.b16 %v4101
        %v4260 = vunpack.c.l.b16 %v4102
        %v4261 = vunpack.c.h.b16 %v4102
        %v4262 = vunpack.c.l.b16 %v4103
        %v4263 = vunpack.c.h.b16 %v4103
        %v4264 = vunpack.c.l.b16 %v4104
        %v4265 = vunpack.c.h.b16 %v4104
        %v4266 = vunpack.c.l.b16 %v4105
        %v4267 = vunpack.c.h.b16 %v4105
        %v4268 = vunpack.c.l.b16 %v4106
        %v4269 = vunpack.c.h.b16 %v4106
        %v4270 = vunpack.c.l.b16 %v4107
        %v4271 = vunpack.c.h.b16 %v4107
        %v4272 = vunpack.c.l.b16 %v4108
        %v4273 = vunpack.c.h.b16 %v4108
        %v4274 = vunpack.c.l.b16 %v4109
        %v4275 = vunpack.c.h.b16 %v4109
        %v4276 = vunpack.c.l.b16 %v4110
        %v4277 = vunpack.c.h.b16 %v4110
        %v4278 = vunpack.c.l.b16 %v4111
        %v4279 = vunpack.c.h.b16 %v4111
        %v4280 = vunpack.c.l.b16 %v4112
        %v4281 = vunpack.c.h.b16 %v4112
        %v4282 = vunpack.c.l.b16 %v4113
        %v4283 = vunpack.c.h.b16 %v4113
        %v4284 = vunpack.c.l.b16 %v4114
        %v4285 = vunpack.c.h.b16 %v4114
        %v4286 = vunpack.c.l.b16 %v4115
        %v4287 = vunpack.c.h.b16 %v4115
        %v4288 = vunpack.c.l.b16 %v4116
        %v4289 = vunpack.c.h.b16 %v4116
        %v4290 = vunpack.c.l.b16 %v4117
        %v4291 = vunpack.c.h.b16 %v4117
        %v4292 = vunpack.c.l.b16 %v4118
        %v4293 = vunpack.c.h.b16 %v4118
        %v4294 = vunpack.c.l.b16 %v4119
        %v4295 = vunpack.c.h.b16 %v4119
        %v4296 = vunpack.c.l.b16 %v4120
        %v4297 = vunpack.c.h.b16 %v4120
        %v4298 = vunpack.c.l.b16 %v4121
        %v4299 = vunpack.c.h.b16 %v4121
        %v4300 = vunpack.c.l.b16 %v4122
        %v4301 = vunpack.c.h.b16 %v4122
        %v4302 = vunpack.c.l.b16 %v4123
        %v4303 = vunpack.c.h.b16 %v4123
        %v4304 = vunpack.c.l.b16 %v4124
        %v4305 = vunpack.c.h.b16 %v4124
        %v4306 = vunpack.c.l.b16 %v4125
        %v4307 = vunpack.c.h.b16 %v4125
        %v4308 = vunpack.c.l.b16 %v4126
        %v4309 = vunpack.c.h.b16 %v4126
        %v4310 = vunpack.c.l.b16 %v4127
        %v4311 = vunpack.c.h.b16 %v4127
        %v4312 = vunpack.c.l.b16 %v4128
        %v4313 = vunpack.c.h.b16 %v4128
        %v4314 = vunpack.c.l.b16 %v4129
        %v4315 = vunpack.c.h.b16 %v4129
        %v4316 = vunpack.c.l.b16 %v4130
        %v4317 = vunpack.c.h.b16 %v4130
        %v4318 = vunpack.c.l.b16 %v4131
        %v4319 = vunpack.c.h.b16 %v4131
        %v4320 = vunpack.c.l.b16 %v4132
        %v4321 = vunpack.c.h.b16 %v4132
        %v4322 = vunpack.c.l.b16 %v4133
        %v4323 = vunpack.c.h.b16 %v4133
        %v4324 = vunpack.c.l.b16 %v4134
        %v4325 = vunpack.c.h.b16 %v4134
        %v4326 = vunpack.c.l.b16 %v4135
        %v4327 = vunpack.c.h.b16 %v4135
        %v4328 = vpack.c.b16 %v4202, %v4200
        %v4329 = vpack.c.b16 %v4203, %v4201
        %v4330 = vpack.c.b16 %v4206, %v4204
        %v4331 = vpack.c.b16 %v4207, %v4205
        %v4332 = vpack.c.b16 %v4210, %v4208
        %v4333 = vpack.c.b16 %v4211, %v4209
        %v4334 = vpack.c.b16 %v4214, %v4212
        %v4335 = vpack.c.b16 %v4215, %v4213
        %v4336 = vpack.c.b16 %v4218, %v4216
        %v4337 = vpack.c.b16 %v4219, %v4217
        %v4338 = vpack.c.b16 %v4222, %v4220
        %v4339 = vpack.c.b16 %v4223, %v4221
        %v4340 = vpack.c.b16 %v4226, %v4224
        %v4341 = vpack.c.b16 %v4227, %v4225
        %v4342 = vpack.c.b16 %v4230, %v4228
        %v4343 = vpack.c.b16 %v4231, %v4229
        %v4344 = vpack.c.b16 %v4234, %v4232
        %v4345 = vpack.c.b16 %v4235, %v4233
        %v4346 = vpack.c.b16 %v4238, %v4236
        %v4347 = vpack.c.b16 %v4239, %v4237
        %v4348 = vpack.c.b16 %v4242, %v4240
        %v4349 = vpack.c.b16 %v4243, %v4241
        %v4350 = vpack.c.b16 %v4246, %v4244
        %v4351 = vpack.c.b16 %v4247, %v4245
        %v4352 = vpack.c.b16 %v4250, %v4248
        %v4353 = vpack.c.b16 %v4251, %v4249
        %v4354 = vpack.c.b16 %v4254, %v4252
        %v4355 = vpack.c.b16 %v4255, %v4253
        %v4356 = vpack.c.b16 %v4258, %v4256
        %v4357 = vpack.c.b16 %v4259, %v4257
        %v4358 = vpack.c.b16 %v4262, %v4260
        %v4359 = vpack.c.b16 %v4263, %v4261
        %v4360 = vpack.c.b16 %v4266, %v4264
        %v4361 = vpack.c.b16 %v4267, %v4265
        %v4362 = vpack.c.b16 %v4270, %v4268
        %v4363 = vpack.c.b16 %v4271, %v4269
        %v4364 = vpack.c.b16 %v4274, %v4272
        %v4365 = vpack.c.b16 %v4275, %v4273
        %v4366 = vpack.c.b16 %v4278, %v4276
        %v4367 = vpack.c.b16 %v4279, %v4277
        %v4368 = vpack.c.b16 %v4282, %v4280
        %v4369 = vpack.c.b16 %v4283, %v4281
        %v4370 = vpack.c.b16 %v4286, %v4284
        %v4371 = vpack.c.b16 %v4287, %v4285
        %v4372 = vpack.c.b16 %v4290, %v4288
        %v4373 = vpack.c.b16 %v4291, %v4289
        %v4374 = vpack.c.b16 %v4294, %v4292
        %v4375 = vpack.c.b16 %v4295, %v4293
        %v4376 = vpack.c.b16 %v4298, %v4296
        %v4377 = vpack.c.b16 %v4299, %v4297
        %v4378 = vpack.c.b16 %v4302, %v4300
        %v4379 = vpack.c.b16 %v4303, %v4301
        %v4380 = vpack.c.b16 %v4306, %v4304
        %v4381 = vpack.c.b16 %v4307, %v4305
        %v4382 = vpack.c.b16 %v4310, %v4308
        %v4383 = vpack.c.b16 %v4311, %v4309
        %v4384 = vpack.c.b16 %v4314, %v4312
        %v4385 = vpack.c.b16 %v4315, %v4313
        %v4386 = vpack.c.b16 %v4318, %v4316
        %v4387 = vpack.c.b16 %v4319, %v4317
        %v4388 = vpack.c.b16 %v4322, %v4320
        %v4389 = vpack.c.b16 %v4323, %v4321
        %v4390 = vpack.c.b16 %v4326, %v4324
        %v4391 = vpack.c.b16 %v4327, %v4325
        %4456 = vmatpush.bf16.msra.mxu0 %v4342
        %4457 = vmatpush.bf16.msra.mxu0 %v4340
        %4458 = vmatpush.bf16.msra.mxu0 %v4338
        %4459 = vmatpush.bf16.msra.mxu0 %v4336
        %4460 = vmatpush.bf16.msra.mxu0 %v4334
        %4461 = vmatpush.bf16.msra.mxu0 %v4332
        %4462 = vmatpush.bf16.msra.mxu0 %v4330
        %4463 = vmatpush.bf16.msra.mxu0 %v4328
        %4464 = vmatmul.bf16.gmra.mxu0 %v4068
        %v4465 = vpop.f32.mrf.mxu0
        %v4466 = vadd.f32 0.0, %v4465
        %v4467 = vpop.f32.mrf.mxu0
        %v4468 = vadd.f32 0.0, %v4467
        %4469 = vdwg.mxu0
        %4470 = vmatpush.bf16.msra.mxu0 %v4358
        %4471 = vmatpush.bf16.msra.mxu0 %v4356
        %4472 = vmatpush.bf16.msra.mxu0 %v4354
        %4473 = vmatpush.bf16.msra.mxu0 %v4352
        %4474 = vmatpush.bf16.msra.mxu0 %v4350
        %4475 = vmatpush.bf16.msra.mxu0 %v4348
        %4476 = vmatpush.bf16.msra.mxu0 %v4346
        %4477 = vmatpush.bf16.msra.mxu0 %v4344
        %4478 = vmatmul.bf16.gmra.mxu0 %v4069
        %v4479 = vpop.f32.mrf.mxu0
        %v4480 = vadd.f32 %v4466, %v4479
        %v4481 = vpop.f32.mrf.mxu0
        %v4482 = vadd.f32 %v4468, %v4481
        %4483 = vdwg.mxu0
        %4484 = vmatpush.bf16.msra.mxu0 %v4374
        %4485 = vmatpush.bf16.msra.mxu0 %v4372
        %4486 = vmatpush.bf16.msra.mxu0 %v4370
        %4487 = vmatpush.bf16.msra.mxu0 %v4368
        %4488 = vmatpush.bf16.msra.mxu0 %v4366
        %4489 = vmatpush.bf16.msra.mxu0 %v4364
        %4490 = vmatpush.bf16.msra.mxu0 %v4362
        %4491 = vmatpush.bf16.msra.mxu0 %v4360
        %4492 = vmatmul.bf16.gmra.mxu0 %v4070
        %v4493 = vpop.f32.mrf.mxu0
        %v4494 = vadd.f32 %v4480, %v4493
        %v4495 = vpop.f32.mrf.mxu0
        %v4496 = vadd.f32 %v4482, %v4495
        %4497 = vdwg.mxu0
        %4498 = vmatpush.bf16.msra.mxu0 %v4390
        %4499 = vmatpush.bf16.msra.mxu0 %v4388
        %4500 = vmatpush.bf16.msra.mxu0 %v4386
        %4501 = vmatpush.bf16.msra.mxu0 %v4384
        %4502 = vmatpush.bf16.msra.mxu0 %v4382
        %4503 = vmatpush.bf16.msra.mxu0 %v4380
        %4504 = vmatpush.bf16.msra.mxu0 %v4378
        %4505 = vmatpush.bf16.msra.mxu0 %v4376
        %4506 = vmatmul.bf16.gmra.mxu0 %v4071
        %v4507 = vpop.f32.mrf.mxu0
        %v4508 = vadd.f32 %v4494, %v4507
        %v4509 = vpop.f32.mrf.mxu0
        %v4510 = vadd.f32 %v4496, %v4509
        %4511 = vdwg.mxu0
        %4512 = vmatpush.bf16.msra.mxu0 %v4343
        %4513 = vmatpush.bf16.msra.mxu0 %v4341
        %4514 = vmatpush.bf16.msra.mxu0 %v4339
        %4515 = vmatpush.bf16.msra.mxu0 %v4337
        %4516 = vmatpush.bf16.msra.mxu0 %v4335
        %4517 = vmatpush.bf16.msra.mxu0 %v4333
        %4518 = vmatpush.bf16.msra.mxu0 %v4331
        %4519 = vmatpush.bf16.msra.mxu0 %v4329
        %4520 = vmatmul.bf16.gmra.mxu0 %v4068
        %v4521 = vpop.f32.mrf.mxu0
        %v4522 = vadd.f32 0.0, %v4521
        %v4523 = vpop.f32.mrf.mxu0
        %v4524 = vadd.f32 0.0, %v4523
        %4525 = vdwg.mxu0
        %4526 = vmatpush.bf16.msra.mxu0 %v4359
        %4527 = vmatpush.bf16.msra.mxu0 %v4357
        %4528 = vmatpush.bf16.msra.mxu0 %v4355
        %4529 = vmatpush.bf16.msra.mxu0 %v4353
        %4530 = vmatpush.bf16.msra.mxu0 %v4351
        %4531 = vmatpush.bf16.msra.mxu0 %v4349
        %4532 = vmatpush.bf16.msra.mxu0 %v4347
        %4533 = vmatpush.bf16.msra.mxu0 %v4345
        %4534 = vmatmul.bf16.gmra.mxu0 %v4069
        %v4535 = vpop.f32.mrf.mxu0
        %v4536 = vadd.f32 %v4522, %v4535
        %v4537 = vpop.f32.mrf.mxu0
        %v4538 = vadd.f32 %v4524, %v4537
        %4539 = vdwg.mxu0
        %4540 = vmatpush.bf16.msra.mxu0 %v4375
        %4541 = vmatpush.bf16.msra.mxu0 %v4373
        %4542 = vmatpush.bf16.msra.mxu0 %v4371
        %4543 = vmatpush.bf16.msra.mxu0 %v4369
        %4544 = vmatpush.bf16.msra.mxu0 %v4367
        %4545 = vmatpush.bf16.msra.mxu0 %v4365
        %4546 = vmatpush.bf16.msra.mxu0 %v4363
        %4547 = vmatpush.bf16.msra.mxu0 %v4361
        %4548 = vmatmul.bf16.gmra.mxu0 %v4070
        %v4549 = vpop.f32.mrf.mxu0
        %v4550 = vadd.f32 %v4536, %v4549
        %v4551 = vpop.f32.mrf.mxu0
        %v4552 = vadd.f32 %v4538, %v4551
        %4553 = vdwg.mxu0
        %4554 = vmatpush.bf16.msra.mxu0 %v4391
        %4555 = vmatpush.bf16.msra.mxu0 %v4389
        %4556 = vmatpush.bf16.msra.mxu0 %v4387
        %4557 = vmatpush.bf16.msra.mxu0 %v4385
        %4558 = vmatpush.bf16.msra.mxu0 %v4383
        %4559 = vmatpush.bf16.msra.mxu0 %v4381
        %4560 = vmatpush.bf16.msra.mxu0 %v4379
        %4561 = vmatpush.bf16.msra.mxu0 %v4377
        %4562 = vmatmul.bf16.gmra.mxu0 %v4071
        %v4563 = vpop.f32.mrf.mxu0
        %v4564 = vadd.f32 %v4550, %v4563
        %v4565 = vpop.f32.mrf.mxu0
        %v4566 = vadd.f32 %v4552, %v4565
        %4567 = vdwg.mxu0
        %v4568 = vadd.f32 %v3134, %v4508
        %v4569 = vadd.f32 %v3135, %v4564
        %v4570 = vadd.f32 %v3136, %v4510
        %v4571 = vadd.f32 %v3137, %v4566
        %v4572 = vld [vmem:[%s836] sm:$0x3]
        %v4574 = vperm.slane %v4572, 0
        %v4575 = vperm.slane %v4572, 1
        %v4578 = vadd.f32 %v4568, %v4574
        %v4579 = vadd.f32 %v4569, %v4575
        %v4580 = vadd.f32 %v4570, %v4574
        %v4581 = vadd.f32 %v4571, %v4575
        %4582 = vst [vmem:[#allocation2] sm:$0xff] %v4578
        %4583 = vst [vmem:[#allocation2 + $0x8] sm:$0xff] %v4579
        %4584 = vst [vmem:[#allocation2 + $0x10] sm:$0xff] %v4580
        %4585 = vst [vmem:[#allocation2 + $0x18] sm:$0xff] %v4581
        %p4586 = scmp.eq.s32.totalorder %s36, 1
        // Predicated region
        $region113: #{vit_forward.1} parent=91 // pred_check
          %p4587 = pneg %p4586
        $region114: #{vit_forward.1} parent=91 // pred_check_branch
          %4589 = sbr.rel (%p4587) target = $region116
        $region115: #{vit_forward.1} parent=91 // pred_region
          %v4590 = vld [vmem:[%s16] sm:$0x3]
          %v4591 = vld [vmem:[%s17] sm:$0x3]
          %v4592 = vadd.f32 %v4578, %v4579
          %4593 = vadd.xlane.f32.xlu0 %v4592
          %v4594 = vpop.xlane.xlu0 %4593
          %v4595 = vadd.f32 %v4580, %v4581
          %4596 = vadd.xlane.f32.xlu0 %v4595
          %v4597 = vpop.xlane.xlu0 %4596
          %v4598 = vmul.f32 %v4594, %v1650
          %v4599 = vmul.f32 %v4597, %v1650
          %v4600 = vsub.f32 %v4578, %v4598
          %v4601 = vsub.f32 %v4579, %v4598
          %v4602 = vsub.f32 %v4580, %v4599
          %v4603 = vsub.f32 %v4581, %v4599
          %v4604 = vmul.f32 %v4600, %v4600
          %v4605 = vmul.f32 %v4601, %v4601
          %v4606 = vmul.f32 %v4602, %v4602
          %v4607 = vmul.f32 %v4603, %v4603
          %v4608 = vadd.f32 %v4604, %v4605
          %4609 = vadd.xlane.f32.xlu0 %v4608
          %v4610 = vpop.xlane.xlu0 %4609
          %v4611 = vadd.f32 %v4606, %v4607
          %4612 = vadd.xlane.f32.xlu0 %v4611
          %v4613 = vpop.xlane.xlu0 %4612
          %v4614 = vmul.f32 %v4610, %v1650
          %v4615 = vmul.f32 %v4613, %v1650
          %v4616 = vadd.f32 %v4614, 1e-06
          %v4617 = vadd.f32 %v4615, 1e-06
          %v4618 = vrsqrt.pop %v4616
          %v4619 = vmul.f32 %v4618, %v4616
          %v4620 = vmul.f32 %v4619, %v4618
          %v4621 = vmul.f32 0.5, %v4620
          %v4622 = vsub.f32 1.5, %v4621
          %v4623 = vmul.f32 %v4618, %v4622
          %vm4624 = vweird.f32 %v4616
          %vm4625 = vweird.f32 %v4618
          %vm4626 = vmor %vm4624, %vm4625
          %v4627 = vsel %vm4626, %v4618, %v4623
          %v4628 = vrsqrt.pop %v4617
          %v4629 = vmul.f32 %v4628, %v4617
          %v4630 = vmul.f32 %v4629, %v4628
          %v4631 = vmul.f32 0.5, %v4630
          %v4632 = vsub.f32 1.5, %v4631
          %v4633 = vmul.f32 %v4628, %v4632
          %vm4634 = vweird.f32 %v4617
          %vm4635 = vweird.f32 %v4628
          %vm4636 = vmor %vm4634, %vm4635
          %v4637 = vsel %vm4636, %v4628, %v4633
          %v4638 = vmul.f32 %v4600, %v4627
          %v4639 = vmul.f32 %v4601, %v4627
          %v4640 = vmul.f32 %v4602, %v4637
          %v4641 = vmul.f32 %v4603, %v4637
          %v4643 = vperm.slane %v4590, 0
          %v4644 = vperm.slane %v4590, 1
          %v4647 = vmul.f32 %v4638, %v4643
          %v4648 = vmul.f32 %v4639, %v4644
          %v4649 = vmul.f32 %v4640, %v4643
          %v4650 = vmul.f32 %v4641, %v4644
          %v4652 = vperm.slane %v4591, 0
          %v4653 = vperm.slane %v4591, 1
          %v4656 = vadd.f32 %v4647, %v4652
          %v4657 = vadd.f32 %v4648, %v4653
          %v4658 = vadd.f32 %v4649, %v4652
          %v4659 = vadd.f32 %v4650, %v4653
          %4660 = vst [vmem:[%s18] sm:$0xff] %v4656
          %4661 = vst [vmem:[%s18 + $0x8] sm:$0xff] %v4657
          %4662 = vst [vmem:[%s18 + $0x10] sm:$0xff] %v4658
          %4663 = vst [vmem:[%s18 + $0x18] sm:$0xff] %v4659
        $region116: #{vit_forward.1} parent=91 // pred_fallthru
          _
        // Predicated region
        $region117: #{vit_forward.1} parent=91 // pred_check
          %p4664 = pneg %p487
        $region118: #{vit_forward.1} parent=91 // pred_check_branch
          %4666 = sbr.rel (%p4664) target = $region120
        $region119: #{vit_forward.1} parent=91 // pred_region
          _
        $region120: #{vit_forward.1} parent=91 // pred_fallthru
          _
        // Predicated region
        $region121: #{vit_forward.1} parent=91 // pred_check
          %p4667 = pneg %p487
        $region122: #{vit_forward.1} parent=91 // pred_check_branch
          %4669 = sbr.rel (%p4667) target = $region124
        $region123: #{vit_forward.1} parent=91 // pred_region
          _
        $region124: #{vit_forward.1} parent=91 // pred_fallthru
          _
      $region92: #{vit_forward.1} parent=5 // pred_fallthru
        _
      %p4670 = scmp.le.s32.totalorder 2, %s31
      // Predicated region
      $region125: #{vit_forward.1} parent=5 // pred_check
        %p4671 = pneg %p4670
      $region126: #{vit_forward.1} parent=5 // pred_check_branch
        %4673 = sbr.rel (%p4671) target = $region128
      $region127: #{vit_forward.1} parent=5 // pred_region
        %s4674 = ssub.s32 %s31, 2
      $region128: #{vit_forward.1} parent=5 // pred_fallthru
        _
    $region6: #{vit_forward.1} parent=1 // loop_footer
      %s35 = sadd.s32 1, %s31
    $region7: #{vit_forward.1} parent=1 // loop_footer_branch
      %30 = sbr.rel target = $region3
    $region8: #{vit_forward.1} parent=1 // loop_exit
      _
    %4675 = vsyncpa [#allocation5], 1
    %s4676 = scalar_lea.sflag [#allocation5], 1
    %4677 = vsyncpa %s4676, 1
    %4678 = vsyncpa [#allocation7], 1
    %s4679 = scalar_lea.sflag [#allocation7], 1
    %4680 = vsyncpa %s4679, 1
    %4681 = vsyncpa [#allocation10], 1
    %s4682 = scalar_lea.sflag [#allocation10], 1
    %4683 = vsyncpa %s4682, 1

</llo_original>
